<compile_context>
chip_gen: v5e
topology: v5e:2x2
jax: 0.10.0
libtpu: 0.0.40
codegen_flags: <defaults>
</compile_context>

<pallas_src>
import jax
import jax.numpy as jnp
from jax.experimental import pallas as pl
from jax.experimental.pallas import tpu as pltpu

H = W = 16                  # GridRowColNum (power of two -> masks use & (W-1))
HW = H * W                  # 256 lanes
MN = H // 2 // 2            # spatial size after the two 2x2 max-pools (4)
MNN = MN * MN               # 16
C_IN = 29
C_PAD = 32                  # channels padded to a sublane-aligned 32
POOL = 4                    # combined pooling factor (two 2x2 max-pools)
B = 2

# top-left lane of each disjoint 4x4 pooling window, in output row-major order
POOL_LANES = tuple(POOL * W * (r // MN) + POOL * (r % MN) for r in range(MNN))


# --------------------------- in-kernel helpers ------------------------------
def _conv5x5_fused(x, w, b, width):
    """Fused 5x5 'same' conv (stride 1, zero pad 2) on a [Cpad, h*w] activation.

    x:  [Cpad, hw] float32  (channels on sublanes, flattened spatial on lanes,
                             padded channels are zero)
    w:  [Cout, 25*Cpad] bf16 packed weights, column index (ky*5+kx)*Cpad + c
    b:  [Cout, 1]  float32
    returns [Cout, hw] float32 pre-activation.

    The image is zero-padded along the lane axis by 2*width+2 on each side, so
    every tap is a static contiguous lane slice and vertical out-of-image taps
    read real zeros; horizontal wraparound of the flattened layout is removed
    by 5 tiny per-kx masks.  All 25 tap patches are concatenated into one
    [25*Cpad, hw] bf16 im2col and consumed by a SINGLE MXU dot (K-fusion).
    """
    cpad, hw = x.shape
    pad = 2 * width + 2
    zer = jnp.zeros((cpad, pad), jnp.bfloat16)
    xz = jnp.concatenate([zer, x.astype(jnp.bfloat16), zer], axis=1)
    # width is a power of two, so `& (width - 1)` == modulo.
    jpos = jax.lax.broadcasted_iota(jnp.int32, (1, hw), 1) & (width - 1)
    patches = []
    for ky in range(5):
        for kx in range(5):
            off = (ky - 2) * width + (kx - 2)
            patch = xz[:, pad + off:pad + off + hw]
            jj = jpos + (kx - 2)
            patches.append(jnp.where((jj >= 0) & (jj < width), patch, 0.0))
    col = jnp.concatenate(patches, axis=0)                 # [25*Cpad, hw] bf16
    return jnp.dot(w, col, preferred_element_type=jnp.float32) + b


# ------------------------------- the kernel ---------------------------------
def lite_encoder_kernel(x_ref,
                        w1_ref, b1_ref,
                        g_ref, beta_ref,
                        we1_ref, be1_ref, we2_ref, be2_ref,
                        out_ref):
    # one sample: [29, 256]; pad channels to 32 (zero rows meet zero weights)
    x = jnp.concatenate(
        [x_ref[0], jnp.zeros((C_PAD - C_IN, HW), jnp.float32)], axis=0)

    # per-(sample, channel) torch.layer_norm over (H, W), eps=1e-30, exact f32.
    # Computed once for all rows; rows 27 (w) / 28 (rain) keep their raw
    # values; rows outside the qice/qsnow/qgroup slices hit zero weights.
    mu = jnp.mean(x, axis=1, keepdims=True)
    var = jnp.mean((x - mu) ** 2, axis=1, keepdims=True)
    xn = (x - mu) * jax.lax.rsqrt(var + 1e-30)
    ridx = jax.lax.broadcasted_iota(jnp.int32, (C_PAD, 1), 0)
    x_in = jnp.where(ridx >= 27, x, xn)

    # fused stage-1 conv: one Cin=32(pad) -> Cout=5 conv (+ReLU); output
    # channel order [qice, qsnow, qgroup, w, rain] matches the torch.cat.
    cat = jnp.maximum(
        _conv5x5_fused(x_in, w1_ref[...], b1_ref[...], W), 0.0)     # [5, 256]

    # two MaxPool2d(2,2) == one 4x4/stride-4 block max over disjoint windows,
    # done entirely on the VPU (15 shifted lane slices + maximum) -> exact.
    catz = jnp.concatenate([cat, jnp.zeros((5, 64), jnp.float32)], axis=1)
    m = cat
    for dy in range(POOL):
        for dx in range(POOL):
            if dy == 0 and dx == 0:
                continue
            m = jnp.maximum(m, catz[:, dy * W + dx:dy * W + dx + HW])
    # each window's max now sits at its top-left lane; gather those 16 lanes
    # with static single-lane slices (no MXU -> the max values stay bit-exact).
    pooled = jnp.concatenate([m[:, l:l + 1] for l in POOL_LANES], axis=1)

    # nn.LayerNorm([5, MN, MN]) with affine: normalize over all 5*MN*MN.
    mu2 = jnp.mean(pooled, axis=(0, 1), keepdims=True)
    var2 = jnp.mean((pooled - mu2) ** 2, axis=(0, 1), keepdims=True)
    normed = (pooled - mu2) * jax.lax.rsqrt(var2 + 1e-5) * g_ref[...] + beta_ref[...]

    # encoder: Conv2d(5->8)+ReLU, Conv2d(8->8)+ReLU on the 4x4 maps, each as a
    # single K-fused dot ([8,200] x [200,16]).
    n8 = jnp.concatenate([normed, jnp.zeros((8 - 5, MNN), jnp.float32)], axis=0)
    e1 = jnp.maximum(_conv5x5_fused(n8, we1_ref[...], be1_ref[...], MN), 0.0)
    e2 = jnp.maximum(_conv5x5_fused(e1, we2_ref[...], be2_ref[...], MN), 0.0)
    out_ref[0] = e2                                                 # [8, 16]


# ------------------------------- wrapper -------------------------------------
@jax.jit
def lite_encoder_forward(wrf, params):
    b = wrf.shape[0]
    # NCHW [B,29,16,16] -> [B,29,256]: contiguous reshape, no transpose.
    x = wrf.reshape(b, C_IN, HW).astype(jnp.float32)

    consts = (
        params["w_stage1"], params["b_stage1"],
        params["ln_gamma"], params["ln_beta"],
        params["w_enc1"], params["b_enc1"],
        params["w_enc2"], params["b_enc2"],
    )
    in_specs = [pl.BlockSpec((1, C_IN, HW), lambda i: (i, 0, 0))]
    # constants: full-array blocks with a constant index_map -> DMA'd once and
    # kept resident across grid steps (no per-step rebuild / re-fetch).
    in_specs += [pl.BlockSpec(a.shape, lambda i, _n=a.ndim: (0,) * _n)
                 for a in consts]

    out = pl.pallas_call(
        lite_encoder_kernel,
        out_shape=jax.ShapeDtypeStruct((b, 8, MNN), jnp.float32),
        grid=(b,),
        in_specs=in_specs,
        out_specs=pl.BlockSpec((1, 8, MNN), lambda i: (i, 0, 0)),
        compiler_params=pltpu.CompilerParams(
            # batch items are independent: v7x's two TensorCores split them.
            # (On single-TC v5e/v6e, folding B=2 into one grid step would save
            #  one ~0.35us pipeline step; kept per-sample for the v7x split.)
            dimension_semantics=("parallel",),
        ),
    )(x, *consts)

    # [B, 8, 16] -> NCHW [B, 8, 4, 4]: contiguous reshape, no transpose.
    return out.reshape(b, 8, MN, MN)


# --------------------------- parameter setup ---------------------------------
def init_params(key):
    keys = jax.random.split(key, 16)

    def conv_w(k, cout, cin):      # torch layout [Cout, Cin, ky, kx]
        return 0.1 * jax.random.normal(k, (cout, cin, 5, 5), jnp.float32)

    def conv_b(k, cout):
        return 0.1 * jax.random.normal(k, (cout, 1), jnp.float32)

    w_qice, b_qice = conv_w(keys[0], 1, 4), conv_b(keys[1], 1)
    w_qsnow, b_qsnow = conv_w(keys[2], 1, 4), conv_b(keys[3], 1)
    w_qgroup, b_qgroup = conv_w(keys[4], 1, 4), conv_b(keys[5], 1)
    w_w, b_w = conv_w(keys[6], 1, 1), conv_b(keys[7], 1)
    w_rain, b_rain = conv_w(keys[8], 1, 1), conv_b(keys[9], 1)

    # Pack the five branch convs into one Cin=32(pad) -> Cout=5 conv.
    # Kernel weight layout: [Cout, ky, kx, Cin_pad] -> reshape -> column index
    # (ky*5+kx)*32 + c, matching the kernel's tap-major im2col rows.
    w1 = jnp.zeros((5, 5, 5, C_PAD), jnp.float32)
    w1 = w1.at[0, :, :, 3:7].set(jnp.transpose(w_qice[0], (1, 2, 0)))
    w1 = w1.at[1, :, :, 12:16].set(jnp.transpose(w_qsnow[0], (1, 2, 0)))
    w1 = w1.at[2, :, :, 21:25].set(jnp.transpose(w_qgroup[0], (1, 2, 0)))
    w1 = w1.at[3, :, :, 27].set(w_w[0, 0])
    w1 = w1.at[4, :, :, 28].set(w_rain[0, 0])
    b1 = jnp.concatenate([b_qice, b_qsnow, b_qgroup, b_w, b_rain], axis=0)

    w_enc1, b_enc1 = conv_w(keys[10], 8, 5), conv_b(keys[11], 8)
    w_enc2, b_enc2 = conv_w(keys[12], 8, 8), conv_b(keys[13], 8)
    we1 = jnp.zeros((8, 5, 5, 8), jnp.float32)
    we1 = we1.at[:, :, :, :5].set(jnp.transpose(w_enc1, (0, 2, 3, 1)))
    we2 = jnp.transpose(w_enc2, (0, 2, 3, 1))                  # [8, ky, kx, 8]

    gamma = 1.0 + 0.1 * jax.random.normal(keys[14], (5, MN, MN), jnp.float32)
    beta = 0.1 * jax.random.normal(keys[15], (5, MN, MN), jnp.float32)

    return {
        # conv weights in bf16: explicit MXU operand precision (default f32
        # operands are truncated to bf16 on the MXU anyway); biases / LN in f32.
        "w_stage1": w1.reshape(5, 25 * C_PAD).astype(jnp.bfloat16),
        "b_stage1": b1,
        "w_enc1": we1.reshape(8, 25 * 8).astype(jnp.bfloat16),
        "b_enc1": b_enc1,
        "w_enc2": we2.reshape(8, 25 * 8).astype(jnp.bfloat16),
        "b_enc2": b_enc2,
        "ln_gamma": gamma.reshape(5, MNN),
        "ln_beta": beta.reshape(5, MNN),
    }


if __name__ == "__main__":
    key = jax.random.PRNGKey(0)
    k_param, k_in = jax.random.split(key)
    params = init_params(k_param)
    wrf = jax.random.normal(k_in, (B, C_IN, H, W), dtype=jnp.float32)

    out = lite_encoder_forward(wrf, params)
    out = jax.block_until_ready(out)

    assert out.shape == (B, 8, MN, MN), out.shape
    assert bool(jnp.isfinite(out).all())
    print("KERNEL_OK")
</pallas_src>

<mosaic_0001>
module attributes {stable_mosaic.version = 11 : i64} {
  func.func @lite_encoder_kernel(%arg0: i32, %arg1: memref<1x29x256xf32, #tpu.memory_space<vmem>>, %arg2: memref<5x800xbf16, #tpu.memory_space<vmem>>, %arg3: memref<5x1xf32, #tpu.memory_space<vmem>>, %arg4: memref<5x16xf32, #tpu.memory_space<vmem>>, %arg5: memref<5x16xf32, #tpu.memory_space<vmem>>, %arg6: memref<8x200xbf16, #tpu.memory_space<vmem>>, %arg7: memref<8x1xf32, #tpu.memory_space<vmem>>, %arg8: memref<8x200xbf16, #tpu.memory_space<vmem>>, %arg9: memref<8x1xf32, #tpu.memory_space<vmem>>, %arg10: memref<1x8x16xf32, #tpu.memory_space<vmem>>) attributes {dimension_semantics = [#tpu.dimension_semantics<parallel>], iteration_bounds = array<i64: 2>, scalar_prefetch = 0 : i64, scratch_operands = 0 : i64, tpu.core_type = #tpu.core_type<tc>, window_params = [{transform_indices = @transform_0, window_bounds = array<i64: 1, 29, 256>}, {pipeline_mode = #tpu.pipeline_mode<synchronous>, transform_indices = @transform_1, window_bounds = array<i64: 5, 800>}, {pipeline_mode = #tpu.pipeline_mode<synchronous>, transform_indices = @transform_2, window_bounds = array<i64: 5, 1>}, {pipeline_mode = #tpu.pipeline_mode<synchronous>, transform_indices = @transform_3, window_bounds = array<i64: 5, 16>}, {pipeline_mode = #tpu.pipeline_mode<synchronous>, transform_indices = @transform_4, window_bounds = array<i64: 5, 16>}, {pipeline_mode = #tpu.pipeline_mode<synchronous>, transform_indices = @transform_5, window_bounds = array<i64: 8, 200>}, {pipeline_mode = #tpu.pipeline_mode<synchronous>, transform_indices = @transform_6, window_bounds = array<i64: 8, 1>}, {pipeline_mode = #tpu.pipeline_mode<synchronous>, transform_indices = @transform_7, window_bounds = array<i64: 8, 200>}, {pipeline_mode = #tpu.pipeline_mode<synchronous>, transform_indices = @transform_8, window_bounds = array<i64: 8, 1>}, {transform_indices = @transform_9, window_bounds = array<i64: 1, 8, 16>}]} {
    %c0 = arith.constant 0 : index
    %c0_0 = arith.constant 0 : index
    %c0_1 = arith.constant 0 : index
    %0 = vector.load %arg1[%c0, %c0_0, %c0_1] : memref<1x29x256xf32, #tpu.memory_space<vmem>>, vector<1x29x256xf32>
    %1 = vector.shape_cast %0 : vector<1x29x256xf32> to vector<29x256xf32>
    %cst = arith.constant 0.000000e+00 : f32
    %2 = vector.broadcast %cst : f32 to vector<3x256xf32>
    %3 = tpu.concatenate %1, %2 in 0 : vector<29x256xf32>, vector<3x256xf32> -> vector<32x256xf32>
    %cst_2 = arith.constant dense<0.000000e+00> : vector<32xf32>
    %4 = vector.multi_reduction <add>, %3, %cst_2 [1] : vector<32x256xf32> to vector<32xf32>
    %5 = vector.shape_cast %4 : vector<32xf32> to vector<32x1xf32>
    %cst_3 = arith.constant 2.560000e+02 : f32
    %6 = vector.broadcast %cst_3 : f32 to vector<32x1xf32>
    %7 = arith.divf %5, %6 : vector<32x1xf32>
    %8 = vector.broadcast %7 : vector<32x1xf32> to vector<32x256xf32>
    %9 = arith.subf %3, %8 : vector<32x256xf32>
    %10 = arith.mulf %9, %9 : vector<32x256xf32>
    %cst_4 = arith.constant dense<0.000000e+00> : vector<32xf32>
    %11 = vector.multi_reduction <add>, %10, %cst_4 [1] : vector<32x256xf32> to vector<32xf32>
    %12 = vector.shape_cast %11 : vector<32xf32> to vector<32x1xf32>
    %cst_5 = arith.constant 2.560000e+02 : f32
    %13 = vector.broadcast %cst_5 : f32 to vector<32x1xf32>
    %14 = arith.divf %12, %13 : vector<32x1xf32>
    %15 = vector.broadcast %7 : vector<32x1xf32> to vector<32x256xf32>
    %16 = arith.subf %3, %15 : vector<32x256xf32>
    %cst_6 = arith.constant 1.000000e-30 : f32
    %17 = vector.broadcast %cst_6 : f32 to vector<32x1xf32>
    %18 = arith.addf %14, %17 : vector<32x1xf32>
    %19 = math.rsqrt %18 : vector<32x1xf32>
    %20 = vector.broadcast %19 : vector<32x1xf32> to vector<32x256xf32>
    %21 = arith.mulf %16, %20 : vector<32x256xf32>
    %22 = tpu.iota {dimensions = array<i32: 0>} : vector<32x1xi32>
    %c27_i32 = arith.constant 27 : i32
    %23 = vector.broadcast %c27_i32 : i32 to vector<32x1xi32>
    %24 = arith.cmpi sge, %22, %23 : vector<32x1xi32>
    %25 = vector.shape_cast %24 : vector<32x1xi1> to vector<32x1xi1>
    %26 = vector.broadcast %25 : vector<32x1xi1> to vector<32x256xi1>
    %27 = arith.select %26, %3, %21 : vector<32x256xi1>, vector<32x256xf32>
    %c0_7 = arith.constant 0 : index
    %c0_8 = arith.constant 0 : index
    %28 = vector.load %arg2[%c0_7, %c0_8] : memref<5x800xbf16, #tpu.memory_space<vmem>>, vector<5x800xbf16>
    %c0_9 = arith.constant 0 : index
    %c0_10 = arith.constant 0 : index
    %29 = vector.load %arg3[%c0_9, %c0_10] : memref<5x1xf32, #tpu.memory_space<vmem>>, vector<5x1xf32>
    %cst_11 = arith.constant 0.000000e+00 : bf16
    %30 = vector.broadcast %cst_11 : bf16 to vector<32x34xbf16>
    %31 = arith.truncf %27 : vector<32x256xf32> to vector<32x256xbf16>
    %32 = tpu.concatenate %30, %31, %30 in 1 : vector<32x34xbf16>, vector<32x256xbf16>, vector<32x34xbf16> -> vector<32x324xbf16>
    %33 = tpu.iota {dimensions = array<i32: 1>} : vector<1x256xi32>
    %c15_i32 = arith.constant 15 : i32
    %34 = vector.broadcast %c15_i32 : i32 to vector<1x256xi32>
    %35 = arith.andi %33, %34 : vector<1x256xi32>
    %36 = vector.extract_strided_slice %32 {offsets = [0, 0], sizes = [32, 256], strides = [1, 1]} : vector<32x324xbf16> to vector<32x256xbf16>
    %c-2_i32 = arith.constant -2 : i32
    %37 = vector.broadcast %c-2_i32 : i32 to vector<1x256xi32>
    %38 = arith.addi %35, %37 : vector<1x256xi32>
    %c0_i32 = arith.constant 0 : i32
    %39 = vector.broadcast %c0_i32 : i32 to vector<1x256xi32>
    %40 = arith.cmpi sge, %38, %39 : vector<1x256xi32>
    %c16_i32 = arith.constant 16 : i32
    %41 = vector.broadcast %c16_i32 : i32 to vector<1x256xi32>
    %42 = arith.cmpi slt, %38, %41 : vector<1x256xi32>
    %43 = arith.andi %40, %42 : vector<1x256xi1>
    %cst_12 = arith.constant 0.000000e+00 : f32
    %44 = arith.truncf %cst_12 : f32 to bf16
    %45 = vector.shape_cast %43 : vector<1x256xi1> to vector<1x256xi1>
    %46 = vector.broadcast %45 : vector<1x256xi1> to vector<32x256xi1>
    %47 = vector.broadcast %44 : bf16 to vector<32x256xbf16>
    %48 = arith.select %46, %36, %47 : vector<32x256xi1>, vector<32x256xbf16>
    %49 = vector.extract_strided_slice %32 {offsets = [0, 1], sizes = [32, 256], strides = [1, 1]} : vector<32x324xbf16> to vector<32x256xbf16>
    %c-1_i32 = arith.constant -1 : i32
    %50 = vector.broadcast %c-1_i32 : i32 to vector<1x256xi32>
    %51 = arith.addi %35, %50 : vector<1x256xi32>
    %c0_i32_13 = arith.constant 0 : i32
    %52 = vector.broadcast %c0_i32_13 : i32 to vector<1x256xi32>
    %53 = arith.cmpi sge, %51, %52 : vector<1x256xi32>
    %c16_i32_14 = arith.constant 16 : i32
    %54 = vector.broadcast %c16_i32_14 : i32 to vector<1x256xi32>
    %55 = arith.cmpi slt, %51, %54 : vector<1x256xi32>
    %56 = arith.andi %53, %55 : vector<1x256xi1>
    %cst_15 = arith.constant 0.000000e+00 : f32
    %57 = arith.truncf %cst_15 : f32 to bf16
    %58 = vector.shape_cast %56 : vector<1x256xi1> to vector<1x256xi1>
    %59 = vector.broadcast %58 : vector<1x256xi1> to vector<32x256xi1>
    %60 = vector.broadcast %57 : bf16 to vector<32x256xbf16>
    %61 = arith.select %59, %49, %60 : vector<32x256xi1>, vector<32x256xbf16>
    %62 = vector.extract_strided_slice %32 {offsets = [0, 2], sizes = [32, 256], strides = [1, 1]} : vector<32x324xbf16> to vector<32x256xbf16>
    %c0_i32_16 = arith.constant 0 : i32
    %63 = vector.broadcast %c0_i32_16 : i32 to vector<1x256xi32>
    %64 = arith.addi %35, %63 : vector<1x256xi32>
    %c0_i32_17 = arith.constant 0 : i32
    %65 = vector.broadcast %c0_i32_17 : i32 to vector<1x256xi32>
    %66 = arith.cmpi sge, %64, %65 : vector<1x256xi32>
    %c16_i32_18 = arith.constant 16 : i32
    %67 = vector.broadcast %c16_i32_18 : i32 to vector<1x256xi32>
    %68 = arith.cmpi slt, %64, %67 : vector<1x256xi32>
    %69 = arith.andi %66, %68 : vector<1x256xi1>
    %cst_19 = arith.constant 0.000000e+00 : f32
    %70 = arith.truncf %cst_19 : f32 to bf16
    %71 = vector.shape_cast %69 : vector<1x256xi1> to vector<1x256xi1>
    %72 = vector.broadcast %71 : vector<1x256xi1> to vector<32x256xi1>
    %73 = vector.broadcast %70 : bf16 to vector<32x256xbf16>
    %74 = arith.select %72, %62, %73 : vector<32x256xi1>, vector<32x256xbf16>
    %75 = vector.extract_strided_slice %32 {offsets = [0, 3], sizes = [32, 256], strides = [1, 1]} : vector<32x324xbf16> to vector<32x256xbf16>
    %c1_i32 = arith.constant 1 : i32
    %76 = vector.broadcast %c1_i32 : i32 to vector<1x256xi32>
    %77 = arith.addi %35, %76 : vector<1x256xi32>
    %c0_i32_20 = arith.constant 0 : i32
    %78 = vector.broadcast %c0_i32_20 : i32 to vector<1x256xi32>
    %79 = arith.cmpi sge, %77, %78 : vector<1x256xi32>
    %c16_i32_21 = arith.constant 16 : i32
    %80 = vector.broadcast %c16_i32_21 : i32 to vector<1x256xi32>
    %81 = arith.cmpi slt, %77, %80 : vector<1x256xi32>
    %82 = arith.andi %79, %81 : vector<1x256xi1>
    %cst_22 = arith.constant 0.000000e+00 : f32
    %83 = arith.truncf %cst_22 : f32 to bf16
    %84 = vector.shape_cast %82 : vector<1x256xi1> to vector<1x256xi1>
    %85 = vector.broadcast %84 : vector<1x256xi1> to vector<32x256xi1>
    %86 = vector.broadcast %83 : bf16 to vector<32x256xbf16>
    %87 = arith.select %85, %75, %86 : vector<32x256xi1>, vector<32x256xbf16>
    %88 = vector.extract_strided_slice %32 {offsets = [0, 4], sizes = [32, 256], strides = [1, 1]} : vector<32x324xbf16> to vector<32x256xbf16>
    %c2_i32 = arith.constant 2 : i32
    %89 = vector.broadcast %c2_i32 : i32 to vector<1x256xi32>
    %90 = arith.addi %35, %89 : vector<1x256xi32>
    %c0_i32_23 = arith.constant 0 : i32
    %91 = vector.broadcast %c0_i32_23 : i32 to vector<1x256xi32>
    %92 = arith.cmpi sge, %90, %91 : vector<1x256xi32>
    %c16_i32_24 = arith.constant 16 : i32
    %93 = vector.broadcast %c16_i32_24 : i32 to vector<1x256xi32>
    %94 = arith.cmpi slt, %90, %93 : vector<1x256xi32>
    %95 = arith.andi %92, %94 : vector<1x256xi1>
    %cst_25 = arith.constant 0.000000e+00 : f32
    %96 = arith.truncf %cst_25 : f32 to bf16
    %97 = vector.shape_cast %95 : vector<1x256xi1> to vector<1x256xi1>
    %98 = vector.broadcast %97 : vector<1x256xi1> to vector<32x256xi1>
    %99 = vector.broadcast %96 : bf16 to vector<32x256xbf16>
    %100 = arith.select %98, %88, %99 : vector<32x256xi1>, vector<32x256xbf16>
    %101 = vector.extract_strided_slice %32 {offsets = [0, 16], sizes = [32, 256], strides = [1, 1]} : vector<32x324xbf16> to vector<32x256xbf16>
    %c-2_i32_26 = arith.constant -2 : i32
    %102 = vector.broadcast %c-2_i32_26 : i32 to vector<1x256xi32>
    %103 = arith.addi %35, %102 : vector<1x256xi32>
    %c0_i32_27 = arith.constant 0 : i32
    %104 = vector.broadcast %c0_i32_27 : i32 to vector<1x256xi32>
    %105 = arith.cmpi sge, %103, %104 : vector<1x256xi32>
    %c16_i32_28 = arith.constant 16 : i32
    %106 = vector.broadcast %c16_i32_28 : i32 to vector<1x256xi32>
    %107 = arith.cmpi slt, %103, %106 : vector<1x256xi32>
    %108 = arith.andi %105, %107 : vector<1x256xi1>
    %cst_29 = arith.constant 0.000000e+00 : f32
    %109 = arith.truncf %cst_29 : f32 to bf16
    %110 = vector.shape_cast %108 : vector<1x256xi1> to vector<1x256xi1>
    %111 = vector.broadcast %110 : vector<1x256xi1> to vector<32x256xi1>
    %112 = vector.broadcast %109 : bf16 to vector<32x256xbf16>
    %113 = arith.select %111, %101, %112 : vector<32x256xi1>, vector<32x256xbf16>
    %114 = vector.extract_strided_slice %32 {offsets = [0, 17], sizes = [32, 256], strides = [1, 1]} : vector<32x324xbf16> to vector<32x256xbf16>
    %c-1_i32_30 = arith.constant -1 : i32
    %115 = vector.broadcast %c-1_i32_30 : i32 to vector<1x256xi32>
    %116 = arith.addi %35, %115 : vector<1x256xi32>
    %c0_i32_31 = arith.constant 0 : i32
    %117 = vector.broadcast %c0_i32_31 : i32 to vector<1x256xi32>
    %118 = arith.cmpi sge, %116, %117 : vector<1x256xi32>
    %c16_i32_32 = arith.constant 16 : i32
    %119 = vector.broadcast %c16_i32_32 : i32 to vector<1x256xi32>
    %120 = arith.cmpi slt, %116, %119 : vector<1x256xi32>
    %121 = arith.andi %118, %120 : vector<1x256xi1>
    %cst_33 = arith.constant 0.000000e+00 : f32
    %122 = arith.truncf %cst_33 : f32 to bf16
    %123 = vector.shape_cast %121 : vector<1x256xi1> to vector<1x256xi1>
    %124 = vector.broadcast %123 : vector<1x256xi1> to vector<32x256xi1>
    %125 = vector.broadcast %122 : bf16 to vector<32x256xbf16>
    %126 = arith.select %124, %114, %125 : vector<32x256xi1>, vector<32x256xbf16>
    %127 = vector.extract_strided_slice %32 {offsets = [0, 18], sizes = [32, 256], strides = [1, 1]} : vector<32x324xbf16> to vector<32x256xbf16>
    %c0_i32_34 = arith.constant 0 : i32
    %128 = vector.broadcast %c0_i32_34 : i32 to vector<1x256xi32>
    %129 = arith.addi %35, %128 : vector<1x256xi32>
    %c0_i32_35 = arith.constant 0 : i32
    %130 = vector.broadcast %c0_i32_35 : i32 to vector<1x256xi32>
    %131 = arith.cmpi sge, %129, %130 : vector<1x256xi32>
    %c16_i32_36 = arith.constant 16 : i32
    %132 = vector.broadcast %c16_i32_36 : i32 to vector<1x256xi32>
    %133 = arith.cmpi slt, %129, %132 : vector<1x256xi32>
    %134 = arith.andi %131, %133 : vector<1x256xi1>
    %cst_37 = arith.constant 0.000000e+00 : f32
    %135 = arith.truncf %cst_37 : f32 to bf16
    %136 = vector.shape_cast %134 : vector<1x256xi1> to vector<1x256xi1>
    %137 = vector.broadcast %136 : vector<1x256xi1> to vector<32x256xi1>
    %138 = vector.broadcast %135 : bf16 to vector<32x256xbf16>
    %139 = arith.select %137, %127, %138 : vector<32x256xi1>, vector<32x256xbf16>
    %140 = vector.extract_strided_slice %32 {offsets = [0, 19], sizes = [32, 256], strides = [1, 1]} : vector<32x324xbf16> to vector<32x256xbf16>
    %c1_i32_38 = arith.constant 1 : i32
    %141 = vector.broadcast %c1_i32_38 : i32 to vector<1x256xi32>
    %142 = arith.addi %35, %141 : vector<1x256xi32>
    %c0_i32_39 = arith.constant 0 : i32
    %143 = vector.broadcast %c0_i32_39 : i32 to vector<1x256xi32>
    %144 = arith.cmpi sge, %142, %143 : vector<1x256xi32>
    %c16_i32_40 = arith.constant 16 : i32
    %145 = vector.broadcast %c16_i32_40 : i32 to vector<1x256xi32>
    %146 = arith.cmpi slt, %142, %145 : vector<1x256xi32>
    %147 = arith.andi %144, %146 : vector<1x256xi1>
    %cst_41 = arith.constant 0.000000e+00 : f32
    %148 = arith.truncf %cst_41 : f32 to bf16
    %149 = vector.shape_cast %147 : vector<1x256xi1> to vector<1x256xi1>
    %150 = vector.broadcast %149 : vector<1x256xi1> to vector<32x256xi1>
    %151 = vector.broadcast %148 : bf16 to vector<32x256xbf16>
    %152 = arith.select %150, %140, %151 : vector<32x256xi1>, vector<32x256xbf16>
    %153 = vector.extract_strided_slice %32 {offsets = [0, 20], sizes = [32, 256], strides = [1, 1]} : vector<32x324xbf16> to vector<32x256xbf16>
    %c2_i32_42 = arith.constant 2 : i32
    %154 = vector.broadcast %c2_i32_42 : i32 to vector<1x256xi32>
    %155 = arith.addi %35, %154 : vector<1x256xi32>
    %c0_i32_43 = arith.constant 0 : i32
    %156 = vector.broadcast %c0_i32_43 : i32 to vector<1x256xi32>
    %157 = arith.cmpi sge, %155, %156 : vector<1x256xi32>
    %c16_i32_44 = arith.constant 16 : i32
    %158 = vector.broadcast %c16_i32_44 : i32 to vector<1x256xi32>
    %159 = arith.cmpi slt, %155, %158 : vector<1x256xi32>
    %160 = arith.andi %157, %159 : vector<1x256xi1>
    %cst_45 = arith.constant 0.000000e+00 : f32
    %161 = arith.truncf %cst_45 : f32 to bf16
    %162 = vector.shape_cast %160 : vector<1x256xi1> to vector<1x256xi1>
    %163 = vector.broadcast %162 : vector<1x256xi1> to vector<32x256xi1>
    %164 = vector.broadcast %161 : bf16 to vector<32x256xbf16>
    %165 = arith.select %163, %153, %164 : vector<32x256xi1>, vector<32x256xbf16>
    %166 = vector.extract_strided_slice %32 {offsets = [0, 32], sizes = [32, 256], strides = [1, 1]} : vector<32x324xbf16> to vector<32x256xbf16>
    %c-2_i32_46 = arith.constant -2 : i32
    %167 = vector.broadcast %c-2_i32_46 : i32 to vector<1x256xi32>
    %168 = arith.addi %35, %167 : vector<1x256xi32>
    %c0_i32_47 = arith.constant 0 : i32
    %169 = vector.broadcast %c0_i32_47 : i32 to vector<1x256xi32>
    %170 = arith.cmpi sge, %168, %169 : vector<1x256xi32>
    %c16_i32_48 = arith.constant 16 : i32
    %171 = vector.broadcast %c16_i32_48 : i32 to vector<1x256xi32>
    %172 = arith.cmpi slt, %168, %171 : vector<1x256xi32>
    %173 = arith.andi %170, %172 : vector<1x256xi1>
    %cst_49 = arith.constant 0.000000e+00 : f32
    %174 = arith.truncf %cst_49 : f32 to bf16
    %175 = vector.shape_cast %173 : vector<1x256xi1> to vector<1x256xi1>
    %176 = vector.broadcast %175 : vector<1x256xi1> to vector<32x256xi1>
    %177 = vector.broadcast %174 : bf16 to vector<32x256xbf16>
    %178 = arith.select %176, %166, %177 : vector<32x256xi1>, vector<32x256xbf16>
    %179 = vector.extract_strided_slice %32 {offsets = [0, 33], sizes = [32, 256], strides = [1, 1]} : vector<32x324xbf16> to vector<32x256xbf16>
    %c-1_i32_50 = arith.constant -1 : i32
    %180 = vector.broadcast %c-1_i32_50 : i32 to vector<1x256xi32>
    %181 = arith.addi %35, %180 : vector<1x256xi32>
    %c0_i32_51 = arith.constant 0 : i32
    %182 = vector.broadcast %c0_i32_51 : i32 to vector<1x256xi32>
    %183 = arith.cmpi sge, %181, %182 : vector<1x256xi32>
    %c16_i32_52 = arith.constant 16 : i32
    %184 = vector.broadcast %c16_i32_52 : i32 to vector<1x256xi32>
    %185 = arith.cmpi slt, %181, %184 : vector<1x256xi32>
    %186 = arith.andi %183, %185 : vector<1x256xi1>
    %cst_53 = arith.constant 0.000000e+00 : f32
    %187 = arith.truncf %cst_53 : f32 to bf16
    %188 = vector.shape_cast %186 : vector<1x256xi1> to vector<1x256xi1>
    %189 = vector.broadcast %188 : vector<1x256xi1> to vector<32x256xi1>
    %190 = vector.broadcast %187 : bf16 to vector<32x256xbf16>
    %191 = arith.select %189, %179, %190 : vector<32x256xi1>, vector<32x256xbf16>
    %192 = vector.extract_strided_slice %32 {offsets = [0, 34], sizes = [32, 256], strides = [1, 1]} : vector<32x324xbf16> to vector<32x256xbf16>
    %c0_i32_54 = arith.constant 0 : i32
    %193 = vector.broadcast %c0_i32_54 : i32 to vector<1x256xi32>
    %194 = arith.addi %35, %193 : vector<1x256xi32>
    %c0_i32_55 = arith.constant 0 : i32
    %195 = vector.broadcast %c0_i32_55 : i32 to vector<1x256xi32>
    %196 = arith.cmpi sge, %194, %195 : vector<1x256xi32>
    %c16_i32_56 = arith.constant 16 : i32
    %197 = vector.broadcast %c16_i32_56 : i32 to vector<1x256xi32>
    %198 = arith.cmpi slt, %194, %197 : vector<1x256xi32>
    %199 = arith.andi %196, %198 : vector<1x256xi1>
    %cst_57 = arith.constant 0.000000e+00 : f32
    %200 = arith.truncf %cst_57 : f32 to bf16
    %201 = vector.shape_cast %199 : vector<1x256xi1> to vector<1x256xi1>
    %202 = vector.broadcast %201 : vector<1x256xi1> to vector<32x256xi1>
    %203 = vector.broadcast %200 : bf16 to vector<32x256xbf16>
    %204 = arith.select %202, %192, %203 : vector<32x256xi1>, vector<32x256xbf16>
    %205 = vector.extract_strided_slice %32 {offsets = [0, 35], sizes = [32, 256], strides = [1, 1]} : vector<32x324xbf16> to vector<32x256xbf16>
    %c1_i32_58 = arith.constant 1 : i32
    %206 = vector.broadcast %c1_i32_58 : i32 to vector<1x256xi32>
    %207 = arith.addi %35, %206 : vector<1x256xi32>
    %c0_i32_59 = arith.constant 0 : i32
    %208 = vector.broadcast %c0_i32_59 : i32 to vector<1x256xi32>
    %209 = arith.cmpi sge, %207, %208 : vector<1x256xi32>
    %c16_i32_60 = arith.constant 16 : i32
    %210 = vector.broadcast %c16_i32_60 : i32 to vector<1x256xi32>
    %211 = arith.cmpi slt, %207, %210 : vector<1x256xi32>
    %212 = arith.andi %209, %211 : vector<1x256xi1>
    %cst_61 = arith.constant 0.000000e+00 : f32
    %213 = arith.truncf %cst_61 : f32 to bf16
    %214 = vector.shape_cast %212 : vector<1x256xi1> to vector<1x256xi1>
    %215 = vector.broadcast %214 : vector<1x256xi1> to vector<32x256xi1>
    %216 = vector.broadcast %213 : bf16 to vector<32x256xbf16>
    %217 = arith.select %215, %205, %216 : vector<32x256xi1>, vector<32x256xbf16>
    %218 = vector.extract_strided_slice %32 {offsets = [0, 36], sizes = [32, 256], strides = [1, 1]} : vector<32x324xbf16> to vector<32x256xbf16>
    %c2_i32_62 = arith.constant 2 : i32
    %219 = vector.broadcast %c2_i32_62 : i32 to vector<1x256xi32>
    %220 = arith.addi %35, %219 : vector<1x256xi32>
    %c0_i32_63 = arith.constant 0 : i32
    %221 = vector.broadcast %c0_i32_63 : i32 to vector<1x256xi32>
    %222 = arith.cmpi sge, %220, %221 : vector<1x256xi32>
    %c16_i32_64 = arith.constant 16 : i32
    %223 = vector.broadcast %c16_i32_64 : i32 to vector<1x256xi32>
    %224 = arith.cmpi slt, %220, %223 : vector<1x256xi32>
    %225 = arith.andi %222, %224 : vector<1x256xi1>
    %cst_65 = arith.constant 0.000000e+00 : f32
    %226 = arith.truncf %cst_65 : f32 to bf16
    %227 = vector.shape_cast %225 : vector<1x256xi1> to vector<1x256xi1>
    %228 = vector.broadcast %227 : vector<1x256xi1> to vector<32x256xi1>
    %229 = vector.broadcast %226 : bf16 to vector<32x256xbf16>
    %230 = arith.select %228, %218, %229 : vector<32x256xi1>, vector<32x256xbf16>
    %231 = vector.extract_strided_slice %32 {offsets = [0, 48], sizes = [32, 256], strides = [1, 1]} : vector<32x324xbf16> to vector<32x256xbf16>
    %c-2_i32_66 = arith.constant -2 : i32
    %232 = vector.broadcast %c-2_i32_66 : i32 to vector<1x256xi32>
    %233 = arith.addi %35, %232 : vector<1x256xi32>
    %c0_i32_67 = arith.constant 0 : i32
    %234 = vector.broadcast %c0_i32_67 : i32 to vector<1x256xi32>
    %235 = arith.cmpi sge, %233, %234 : vector<1x256xi32>
    %c16_i32_68 = arith.constant 16 : i32
    %236 = vector.broadcast %c16_i32_68 : i32 to vector<1x256xi32>
    %237 = arith.cmpi slt, %233, %236 : vector<1x256xi32>
    %238 = arith.andi %235, %237 : vector<1x256xi1>
    %cst_69 = arith.constant 0.000000e+00 : f32
    %239 = arith.truncf %cst_69 : f32 to bf16
    %240 = vector.shape_cast %238 : vector<1x256xi1> to vector<1x256xi1>
    %241 = vector.broadcast %240 : vector<1x256xi1> to vector<32x256xi1>
    %242 = vector.broadcast %239 : bf16 to vector<32x256xbf16>
    %243 = arith.select %241, %231, %242 : vector<32x256xi1>, vector<32x256xbf16>
    %244 = vector.extract_strided_slice %32 {offsets = [0, 49], sizes = [32, 256], strides = [1, 1]} : vector<32x324xbf16> to vector<32x256xbf16>
    %c-1_i32_70 = arith.constant -1 : i32
    %245 = vector.broadcast %c-1_i32_70 : i32 to vector<1x256xi32>
    %246 = arith.addi %35, %245 : vector<1x256xi32>
    %c0_i32_71 = arith.constant 0 : i32
    %247 = vector.broadcast %c0_i32_71 : i32 to vector<1x256xi32>
    %248 = arith.cmpi sge, %246, %247 : vector<1x256xi32>
    %c16_i32_72 = arith.constant 16 : i32
    %249 = vector.broadcast %c16_i32_72 : i32 to vector<1x256xi32>
    %250 = arith.cmpi slt, %246, %249 : vector<1x256xi32>
    %251 = arith.andi %248, %250 : vector<1x256xi1>
    %cst_73 = arith.constant 0.000000e+00 : f32
    %252 = arith.truncf %cst_73 : f32 to bf16
    %253 = vector.shape_cast %251 : vector<1x256xi1> to vector<1x256xi1>
    %254 = vector.broadcast %253 : vector<1x256xi1> to vector<32x256xi1>
    %255 = vector.broadcast %252 : bf16 to vector<32x256xbf16>
    %256 = arith.select %254, %244, %255 : vector<32x256xi1>, vector<32x256xbf16>
    %257 = vector.extract_strided_slice %32 {offsets = [0, 50], sizes = [32, 256], strides = [1, 1]} : vector<32x324xbf16> to vector<32x256xbf16>
    %c0_i32_74 = arith.constant 0 : i32
    %258 = vector.broadcast %c0_i32_74 : i32 to vector<1x256xi32>
    %259 = arith.addi %35, %258 : vector<1x256xi32>
    %c0_i32_75 = arith.constant 0 : i32
    %260 = vector.broadcast %c0_i32_75 : i32 to vector<1x256xi32>
    %261 = arith.cmpi sge, %259, %260 : vector<1x256xi32>
    %c16_i32_76 = arith.constant 16 : i32
    %262 = vector.broadcast %c16_i32_76 : i32 to vector<1x256xi32>
    %263 = arith.cmpi slt, %259, %262 : vector<1x256xi32>
    %264 = arith.andi %261, %263 : vector<1x256xi1>
    %cst_77 = arith.constant 0.000000e+00 : f32
    %265 = arith.truncf %cst_77 : f32 to bf16
    %266 = vector.shape_cast %264 : vector<1x256xi1> to vector<1x256xi1>
    %267 = vector.broadcast %266 : vector<1x256xi1> to vector<32x256xi1>
    %268 = vector.broadcast %265 : bf16 to vector<32x256xbf16>
    %269 = arith.select %267, %257, %268 : vector<32x256xi1>, vector<32x256xbf16>
    %270 = vector.extract_strided_slice %32 {offsets = [0, 51], sizes = [32, 256], strides = [1, 1]} : vector<32x324xbf16> to vector<32x256xbf16>
    %c1_i32_78 = arith.constant 1 : i32
    %271 = vector.broadcast %c1_i32_78 : i32 to vector<1x256xi32>
    %272 = arith.addi %35, %271 : vector<1x256xi32>
    %c0_i32_79 = arith.constant 0 : i32
    %273 = vector.broadcast %c0_i32_79 : i32 to vector<1x256xi32>
    %274 = arith.cmpi sge, %272, %273 : vector<1x256xi32>
    %c16_i32_80 = arith.constant 16 : i32
    %275 = vector.broadcast %c16_i32_80 : i32 to vector<1x256xi32>
    %276 = arith.cmpi slt, %272, %275 : vector<1x256xi32>
    %277 = arith.andi %274, %276 : vector<1x256xi1>
    %cst_81 = arith.constant 0.000000e+00 : f32
    %278 = arith.truncf %cst_81 : f32 to bf16
    %279 = vector.shape_cast %277 : vector<1x256xi1> to vector<1x256xi1>
    %280 = vector.broadcast %279 : vector<1x256xi1> to vector<32x256xi1>
    %281 = vector.broadcast %278 : bf16 to vector<32x256xbf16>
    %282 = arith.select %280, %270, %281 : vector<32x256xi1>, vector<32x256xbf16>
    %283 = vector.extract_strided_slice %32 {offsets = [0, 52], sizes = [32, 256], strides = [1, 1]} : vector<32x324xbf16> to vector<32x256xbf16>
    %c2_i32_82 = arith.constant 2 : i32
    %284 = vector.broadcast %c2_i32_82 : i32 to vector<1x256xi32>
    %285 = arith.addi %35, %284 : vector<1x256xi32>
    %c0_i32_83 = arith.constant 0 : i32
    %286 = vector.broadcast %c0_i32_83 : i32 to vector<1x256xi32>
    %287 = arith.cmpi sge, %285, %286 : vector<1x256xi32>
    %c16_i32_84 = arith.constant 16 : i32
    %288 = vector.broadcast %c16_i32_84 : i32 to vector<1x256xi32>
    %289 = arith.cmpi slt, %285, %288 : vector<1x256xi32>
    %290 = arith.andi %287, %289 : vector<1x256xi1>
    %cst_85 = arith.constant 0.000000e+00 : f32
    %291 = arith.truncf %cst_85 : f32 to bf16
    %292 = vector.shape_cast %290 : vector<1x256xi1> to vector<1x256xi1>
    %293 = vector.broadcast %292 : vector<1x256xi1> to vector<32x256xi1>
    %294 = vector.broadcast %291 : bf16 to vector<32x256xbf16>
    %295 = arith.select %293, %283, %294 : vector<32x256xi1>, vector<32x256xbf16>
    %296 = vector.extract_strided_slice %32 {offsets = [0, 64], sizes = [32, 256], strides = [1, 1]} : vector<32x324xbf16> to vector<32x256xbf16>
    %c-2_i32_86 = arith.constant -2 : i32
    %297 = vector.broadcast %c-2_i32_86 : i32 to vector<1x256xi32>
    %298 = arith.addi %35, %297 : vector<1x256xi32>
    %c0_i32_87 = arith.constant 0 : i32
    %299 = vector.broadcast %c0_i32_87 : i32 to vector<1x256xi32>
    %300 = arith.cmpi sge, %298, %299 : vector<1x256xi32>
    %c16_i32_88 = arith.constant 16 : i32
    %301 = vector.broadcast %c16_i32_88 : i32 to vector<1x256xi32>
    %302 = arith.cmpi slt, %298, %301 : vector<1x256xi32>
    %303 = arith.andi %300, %302 : vector<1x256xi1>
    %cst_89 = arith.constant 0.000000e+00 : f32
    %304 = arith.truncf %cst_89 : f32 to bf16
    %305 = vector.shape_cast %303 : vector<1x256xi1> to vector<1x256xi1>
    %306 = vector.broadcast %305 : vector<1x256xi1> to vector<32x256xi1>
    %307 = vector.broadcast %304 : bf16 to vector<32x256xbf16>
    %308 = arith.select %306, %296, %307 : vector<32x256xi1>, vector<32x256xbf16>
    %309 = vector.extract_strided_slice %32 {offsets = [0, 65], sizes = [32, 256], strides = [1, 1]} : vector<32x324xbf16> to vector<32x256xbf16>
    %c-1_i32_90 = arith.constant -1 : i32
    %310 = vector.broadcast %c-1_i32_90 : i32 to vector<1x256xi32>
    %311 = arith.addi %35, %310 : vector<1x256xi32>
    %c0_i32_91 = arith.constant 0 : i32
    %312 = vector.broadcast %c0_i32_91 : i32 to vector<1x256xi32>
    %313 = arith.cmpi sge, %311, %312 : vector<1x256xi32>
    %c16_i32_92 = arith.constant 16 : i32
    %314 = vector.broadcast %c16_i32_92 : i32 to vector<1x256xi32>
    %315 = arith.cmpi slt, %311, %314 : vector<1x256xi32>
    %316 = arith.andi %313, %315 : vector<1x256xi1>
    %cst_93 = arith.constant 0.000000e+00 : f32
    %317 = arith.truncf %cst_93 : f32 to bf16
    %318 = vector.shape_cast %316 : vector<1x256xi1> to vector<1x256xi1>
    %319 = vector.broadcast %318 : vector<1x256xi1> to vector<32x256xi1>
    %320 = vector.broadcast %317 : bf16 to vector<32x256xbf16>
    %321 = arith.select %319, %309, %320 : vector<32x256xi1>, vector<32x256xbf16>
    %322 = vector.extract_strided_slice %32 {offsets = [0, 66], sizes = [32, 256], strides = [1, 1]} : vector<32x324xbf16> to vector<32x256xbf16>
    %c0_i32_94 = arith.constant 0 : i32
    %323 = vector.broadcast %c0_i32_94 : i32 to vector<1x256xi32>
    %324 = arith.addi %35, %323 : vector<1x256xi32>
    %c0_i32_95 = arith.constant 0 : i32
    %325 = vector.broadcast %c0_i32_95 : i32 to vector<1x256xi32>
    %326 = arith.cmpi sge, %324, %325 : vector<1x256xi32>
    %c16_i32_96 = arith.constant 16 : i32
    %327 = vector.broadcast %c16_i32_96 : i32 to vector<1x256xi32>
    %328 = arith.cmpi slt, %324, %327 : vector<1x256xi32>
    %329 = arith.andi %326, %328 : vector<1x256xi1>
    %cst_97 = arith.constant 0.000000e+00 : f32
    %330 = arith.truncf %cst_97 : f32 to bf16
    %331 = vector.shape_cast %329 : vector<1x256xi1> to vector<1x256xi1>
    %332 = vector.broadcast %331 : vector<1x256xi1> to vector<32x256xi1>
    %333 = vector.broadcast %330 : bf16 to vector<32x256xbf16>
    %334 = arith.select %332, %322, %333 : vector<32x256xi1>, vector<32x256xbf16>
    %335 = vector.extract_strided_slice %32 {offsets = [0, 67], sizes = [32, 256], strides = [1, 1]} : vector<32x324xbf16> to vector<32x256xbf16>
    %c1_i32_98 = arith.constant 1 : i32
    %336 = vector.broadcast %c1_i32_98 : i32 to vector<1x256xi32>
    %337 = arith.addi %35, %336 : vector<1x256xi32>
    %c0_i32_99 = arith.constant 0 : i32
    %338 = vector.broadcast %c0_i32_99 : i32 to vector<1x256xi32>
    %339 = arith.cmpi sge, %337, %338 : vector<1x256xi32>
    %c16_i32_100 = arith.constant 16 : i32
    %340 = vector.broadcast %c16_i32_100 : i32 to vector<1x256xi32>
    %341 = arith.cmpi slt, %337, %340 : vector<1x256xi32>
    %342 = arith.andi %339, %341 : vector<1x256xi1>
    %cst_101 = arith.constant 0.000000e+00 : f32
    %343 = arith.truncf %cst_101 : f32 to bf16
    %344 = vector.shape_cast %342 : vector<1x256xi1> to vector<1x256xi1>
    %345 = vector.broadcast %344 : vector<1x256xi1> to vector<32x256xi1>
    %346 = vector.broadcast %343 : bf16 to vector<32x256xbf16>
    %347 = arith.select %345, %335, %346 : vector<32x256xi1>, vector<32x256xbf16>
    %348 = vector.extract_strided_slice %32 {offsets = [0, 68], sizes = [32, 256], strides = [1, 1]} : vector<32x324xbf16> to vector<32x256xbf16>
    %c2_i32_102 = arith.constant 2 : i32
    %349 = vector.broadcast %c2_i32_102 : i32 to vector<1x256xi32>
    %350 = arith.addi %35, %349 : vector<1x256xi32>
    %c0_i32_103 = arith.constant 0 : i32
    %351 = vector.broadcast %c0_i32_103 : i32 to vector<1x256xi32>
    %352 = arith.cmpi sge, %350, %351 : vector<1x256xi32>
    %c16_i32_104 = arith.constant 16 : i32
    %353 = vector.broadcast %c16_i32_104 : i32 to vector<1x256xi32>
    %354 = arith.cmpi slt, %350, %353 : vector<1x256xi32>
    %355 = arith.andi %352, %354 : vector<1x256xi1>
    %cst_105 = arith.constant 0.000000e+00 : f32
    %356 = arith.truncf %cst_105 : f32 to bf16
    %357 = vector.shape_cast %355 : vector<1x256xi1> to vector<1x256xi1>
    %358 = vector.broadcast %357 : vector<1x256xi1> to vector<32x256xi1>
    %359 = vector.broadcast %356 : bf16 to vector<32x256xbf16>
    %360 = arith.select %358, %348, %359 : vector<32x256xi1>, vector<32x256xbf16>
    %361 = tpu.concatenate %48, %61, %74, %87, %100, %113, %126, %139, %152, %165, %178, %191, %204, %217, %230, %243 in 0 : vector<32x256xbf16>, vector<32x256xbf16>, vector<32x256xbf16>, vector<32x256xbf16>, vector<32x256xbf16>, vector<32x256xbf16>, vector<32x256xbf16>, vector<32x256xbf16>, vector<32x256xbf16>, vector<32x256xbf16>, vector<32x256xbf16>, vector<32x256xbf16>, vector<32x256xbf16>, vector<32x256xbf16>, vector<32x256xbf16>, vector<32x256xbf16> -> vector<512x256xbf16>
    %362 = tpu.concatenate %256, %269, %282, %295, %308, %321, %334, %347, %360 in 0 : vector<32x256xbf16>, vector<32x256xbf16>, vector<32x256xbf16>, vector<32x256xbf16>, vector<32x256xbf16>, vector<32x256xbf16>, vector<32x256xbf16>, vector<32x256xbf16>, vector<32x256xbf16> -> vector<288x256xbf16>
    %363 = tpu.concatenate %361, %362 in 0 : vector<512x256xbf16>, vector<288x256xbf16> -> vector<800x256xbf16>
    %cst_106 = arith.constant dense<0.000000e+00> : vector<5x256xf32>
    %364 = tpu.matmul %28, %363, %cst_106 {dimension_numbers = #tpu.dot_dimension_numbers<[1], [0], [0], [1], [0, 0, 1, 1], [], []>} : vector<5x800xbf16>, vector<800x256xbf16>, vector<5x256xf32> -> vector<5x256xf32>
    %365 = vector.broadcast %29 : vector<5x1xf32> to vector<5x256xf32>
    %366 = arith.addf %364, %365 : vector<5x256xf32>
    %cst_107 = arith.constant 0.000000e+00 : f32
    %367 = vector.broadcast %cst_107 : f32 to vector<5x256xf32>
    %368 = arith.maximumf %366, %367 : vector<5x256xf32>
    %cst_108 = arith.constant 0.000000e+00 : f32
    %369 = vector.broadcast %cst_108 : f32 to vector<5x64xf32>
    %370 = tpu.concatenate %368, %369 in 1 : vector<5x256xf32>, vector<5x64xf32> -> vector<5x320xf32>
    %371 = vector.extract_strided_slice %370 {offsets = [0, 1], sizes = [5, 256], strides = [1, 1]} : vector<5x320xf32> to vector<5x256xf32>
    %372 = arith.maximumf %368, %371 : vector<5x256xf32>
    %373 = vector.extract_strided_slice %370 {offsets = [0, 2], sizes = [5, 256], strides = [1, 1]} : vector<5x320xf32> to vector<5x256xf32>
    %374 = arith.maximumf %372, %373 : vector<5x256xf32>
    %375 = vector.extract_strided_slice %370 {offsets = [0, 3], sizes = [5, 256], strides = [1, 1]} : vector<5x320xf32> to vector<5x256xf32>
    %376 = arith.maximumf %374, %375 : vector<5x256xf32>
    %377 = vector.extract_strided_slice %370 {offsets = [0, 16], sizes = [5, 256], strides = [1, 1]} : vector<5x320xf32> to vector<5x256xf32>
    %378 = arith.maximumf %376, %377 : vector<5x256xf32>
    %379 = vector.extract_strided_slice %370 {offsets = [0, 17], sizes = [5, 256], strides = [1, 1]} : vector<5x320xf32> to vector<5x256xf32>
    %380 = arith.maximumf %378, %379 : vector<5x256xf32>
    %381 = vector.extract_strided_slice %370 {offsets = [0, 18], sizes = [5, 256], strides = [1, 1]} : vector<5x320xf32> to vector<5x256xf32>
    %382 = arith.maximumf %380, %381 : vector<5x256xf32>
    %383 = vector.extract_strided_slice %370 {offsets = [0, 19], sizes = [5, 256], strides = [1, 1]} : vector<5x320xf32> to vector<5x256xf32>
    %384 = arith.maximumf %382, %383 : vector<5x256xf32>
    %385 = vector.extract_strided_slice %370 {offsets = [0, 32], sizes = [5, 256], strides = [1, 1]} : vector<5x320xf32> to vector<5x256xf32>
    %386 = arith.maximumf %384, %385 : vector<5x256xf32>
    %387 = vector.extract_strided_slice %370 {offsets = [0, 33], sizes = [5, 256], strides = [1, 1]} : vector<5x320xf32> to vector<5x256xf32>
    %388 = arith.maximumf %386, %387 : vector<5x256xf32>
    %389 = vector.extract_strided_slice %370 {offsets = [0, 34], sizes = [5, 256], strides = [1, 1]} : vector<5x320xf32> to vector<5x256xf32>
    %390 = arith.maximumf %388, %389 : vector<5x256xf32>
    %391 = vector.extract_strided_slice %370 {offsets = [0, 35], sizes = [5, 256], strides = [1, 1]} : vector<5x320xf32> to vector<5x256xf32>
    %392 = arith.maximumf %390, %391 : vector<5x256xf32>
    %393 = vector.extract_strided_slice %370 {offsets = [0, 48], sizes = [5, 256], strides = [1, 1]} : vector<5x320xf32> to vector<5x256xf32>
    %394 = arith.maximumf %392, %393 : vector<5x256xf32>
    %395 = vector.extract_strided_slice %370 {offsets = [0, 49], sizes = [5, 256], strides = [1, 1]} : vector<5x320xf32> to vector<5x256xf32>
    %396 = arith.maximumf %394, %395 : vector<5x256xf32>
    %397 = vector.extract_strided_slice %370 {offsets = [0, 50], sizes = [5, 256], strides = [1, 1]} : vector<5x320xf32> to vector<5x256xf32>
    %398 = arith.maximumf %396, %397 : vector<5x256xf32>
    %399 = vector.extract_strided_slice %370 {offsets = [0, 51], sizes = [5, 256], strides = [1, 1]} : vector<5x320xf32> to vector<5x256xf32>
    %400 = arith.maximumf %398, %399 : vector<5x256xf32>
    %401 = vector.extract_strided_slice %400 {offsets = [0, 0], sizes = [5, 1], strides = [1, 1]} : vector<5x256xf32> to vector<5x1xf32>
    %402 = vector.extract_strided_slice %400 {offsets = [0, 4], sizes = [5, 1], strides = [1, 1]} : vector<5x256xf32> to vector<5x1xf32>
    %403 = vector.extract_strided_slice %400 {offsets = [0, 8], sizes = [5, 1], strides = [1, 1]} : vector<5x256xf32> to vector<5x1xf32>
    %404 = vector.extract_strided_slice %400 {offsets = [0, 12], sizes = [5, 1], strides = [1, 1]} : vector<5x256xf32> to vector<5x1xf32>
    %405 = vector.extract_strided_slice %400 {offsets = [0, 64], sizes = [5, 1], strides = [1, 1]} : vector<5x256xf32> to vector<5x1xf32>
    %406 = vector.extract_strided_slice %400 {offsets = [0, 68], sizes = [5, 1], strides = [1, 1]} : vector<5x256xf32> to vector<5x1xf32>
    %407 = vector.extract_strided_slice %400 {offsets = [0, 72], sizes = [5, 1], strides = [1, 1]} : vector<5x256xf32> to vector<5x1xf32>
    %408 = vector.extract_strided_slice %400 {offsets = [0, 76], sizes = [5, 1], strides = [1, 1]} : vector<5x256xf32> to vector<5x1xf32>
    %409 = vector.extract_strided_slice %400 {offsets = [0, 128], sizes = [5, 1], strides = [1, 1]} : vector<5x256xf32> to vector<5x1xf32>
    %410 = vector.extract_strided_slice %400 {offsets = [0, 132], sizes = [5, 1], strides = [1, 1]} : vector<5x256xf32> to vector<5x1xf32>
    %411 = vector.extract_strided_slice %400 {offsets = [0, 136], sizes = [5, 1], strides = [1, 1]} : vector<5x256xf32> to vector<5x1xf32>
    %412 = vector.extract_strided_slice %400 {offsets = [0, 140], sizes = [5, 1], strides = [1, 1]} : vector<5x256xf32> to vector<5x1xf32>
    %413 = vector.extract_strided_slice %400 {offsets = [0, 192], sizes = [5, 1], strides = [1, 1]} : vector<5x256xf32> to vector<5x1xf32>
    %414 = vector.extract_strided_slice %400 {offsets = [0, 196], sizes = [5, 1], strides = [1, 1]} : vector<5x256xf32> to vector<5x1xf32>
    %415 = vector.extract_strided_slice %400 {offsets = [0, 200], sizes = [5, 1], strides = [1, 1]} : vector<5x256xf32> to vector<5x1xf32>
    %416 = vector.extract_strided_slice %400 {offsets = [0, 204], sizes = [5, 1], strides = [1, 1]} : vector<5x256xf32> to vector<5x1xf32>
    %417 = tpu.concatenate %401, %402, %403, %404, %405, %406, %407, %408, %409, %410, %411, %412, %413, %414, %415, %416 in 1 : vector<5x1xf32>, vector<5x1xf32>, vector<5x1xf32>, vector<5x1xf32>, vector<5x1xf32>, vector<5x1xf32>, vector<5x1xf32>, vector<5x1xf32>, vector<5x1xf32>, vector<5x1xf32>, vector<5x1xf32>, vector<5x1xf32>, vector<5x1xf32>, vector<5x1xf32>, vector<5x1xf32>, vector<5x1xf32> -> vector<5x16xf32>
    %418 = vector.shape_cast %417 : vector<5x16xf32> to vector<1x5x16xf32>
    %cst_109 = arith.constant dense<0.000000e+00> : vector<1xf32>
    %419 = vector.multi_reduction <add>, %418, %cst_109 [1, 2] : vector<1x5x16xf32> to vector<1xf32>
    %420 = vector.shape_cast %419 : vector<1xf32> to vector<1x1x1xf32>
    %421 = vector.extract %420[0, 0, 0] : f32 from vector<1x1x1xf32>
    %422 = vector.broadcast %421 : f32 to vector<1x1xf32>
    %cst_110 = arith.constant 8.000000e+01 : f32
    %423 = vector.broadcast %cst_110 : f32 to vector<1x1xf32>
    %424 = arith.divf %422, %423 : vector<1x1xf32>
    %425 = vector.broadcast %424 : vector<1x1xf32> to vector<5x16xf32>
    %426 = arith.subf %417, %425 : vector<5x16xf32>
    %427 = arith.mulf %426, %426 : vector<5x16xf32>
    %428 = vector.shape_cast %427 : vector<5x16xf32> to vector<1x5x16xf32>
    %cst_111 = arith.constant dense<0.000000e+00> : vector<1xf32>
    %429 = vector.multi_reduction <add>, %428, %cst_111 [1, 2] : vector<1x5x16xf32> to vector<1xf32>
    %430 = vector.shape_cast %429 : vector<1xf32> to vector<1x1x1xf32>
    %431 = vector.extract %430[0, 0, 0] : f32 from vector<1x1x1xf32>
    %432 = vector.broadcast %431 : f32 to vector<1x1xf32>
    %cst_112 = arith.constant 8.000000e+01 : f32
    %433 = vector.broadcast %cst_112 : f32 to vector<1x1xf32>
    %434 = arith.divf %432, %433 : vector<1x1xf32>
    %435 = vector.broadcast %424 : vector<1x1xf32> to vector<5x16xf32>
    %436 = arith.subf %417, %435 : vector<5x16xf32>
    %cst_113 = arith.constant 9.99999974E-6 : f32
    %437 = vector.broadcast %cst_113 : f32 to vector<1x1xf32>
    %438 = arith.addf %434, %437 : vector<1x1xf32>
    %439 = math.rsqrt %438 : vector<1x1xf32>
    %440 = vector.broadcast %439 : vector<1x1xf32> to vector<5x16xf32>
    %441 = arith.mulf %436, %440 : vector<5x16xf32>
    %c0_114 = arith.constant 0 : index
    %c0_115 = arith.constant 0 : index
    %442 = vector.load %arg4[%c0_114, %c0_115] : memref<5x16xf32, #tpu.memory_space<vmem>>, vector<5x16xf32>
    %443 = arith.mulf %441, %442 : vector<5x16xf32>
    %c0_116 = arith.constant 0 : index
    %c0_117 = arith.constant 0 : index
    %444 = vector.load %arg5[%c0_116, %c0_117] : memref<5x16xf32, #tpu.memory_space<vmem>>, vector<5x16xf32>
    %445 = arith.addf %443, %444 : vector<5x16xf32>
    %cst_118 = arith.constant 0.000000e+00 : f32
    %446 = vector.broadcast %cst_118 : f32 to vector<3x16xf32>
    %447 = tpu.concatenate %445, %446 in 0 : vector<5x16xf32>, vector<3x16xf32> -> vector<8x16xf32>
    %c0_119 = arith.constant 0 : index
    %c0_120 = arith.constant 0 : index
    %448 = vector.load %arg6[%c0_119, %c0_120] : memref<8x200xbf16, #tpu.memory_space<vmem>>, vector<8x200xbf16>
    %c0_121 = arith.constant 0 : index
    %c0_122 = arith.constant 0 : index
    %449 = vector.load %arg7[%c0_121, %c0_122] : memref<8x1xf32, #tpu.memory_space<vmem>>, vector<8x1xf32>
    %cst_123 = arith.constant 0.000000e+00 : bf16
    %450 = vector.broadcast %cst_123 : bf16 to vector<8x10xbf16>
    %451 = arith.truncf %447 : vector<8x16xf32> to vector<8x16xbf16>
    %452 = tpu.concatenate %450, %451, %450 in 1 : vector<8x10xbf16>, vector<8x16xbf16>, vector<8x10xbf16> -> vector<8x36xbf16>
    %453 = tpu.iota {dimensions = array<i32: 1>} : vector<1x16xi32>
    %c3_i32 = arith.constant 3 : i32
    %454 = vector.broadcast %c3_i32 : i32 to vector<1x16xi32>
    %455 = arith.andi %453, %454 : vector<1x16xi32>
    %456 = vector.extract_strided_slice %452 {offsets = [0, 0], sizes = [8, 16], strides = [1, 1]} : vector<8x36xbf16> to vector<8x16xbf16>
    %c-2_i32_124 = arith.constant -2 : i32
    %457 = vector.broadcast %c-2_i32_124 : i32 to vector<1x16xi32>
    %458 = arith.addi %455, %457 : vector<1x16xi32>
    %c0_i32_125 = arith.constant 0 : i32
    %459 = vector.broadcast %c0_i32_125 : i32 to vector<1x16xi32>
    %460 = arith.cmpi sge, %458, %459 : vector<1x16xi32>
    %c4_i32 = arith.constant 4 : i32
    %461 = vector.broadcast %c4_i32 : i32 to vector<1x16xi32>
    %462 = arith.cmpi slt, %458, %461 : vector<1x16xi32>
    %463 = arith.andi %460, %462 : vector<1x16xi1>
    %cst_126 = arith.constant 0.000000e+00 : f32
    %464 = arith.truncf %cst_126 : f32 to bf16
    %465 = vector.shape_cast %463 : vector<1x16xi1> to vector<1x16xi1>
    %466 = vector.broadcast %465 : vector<1x16xi1> to vector<8x16xi1>
    %467 = vector.broadcast %464 : bf16 to vector<8x16xbf16>
    %468 = arith.select %466, %456, %467 : vector<8x16xi1>, vector<8x16xbf16>
    %469 = vector.extract_strided_slice %452 {offsets = [0, 1], sizes = [8, 16], strides = [1, 1]} : vector<8x36xbf16> to vector<8x16xbf16>
    %c-1_i32_127 = arith.constant -1 : i32
    %470 = vector.broadcast %c-1_i32_127 : i32 to vector<1x16xi32>
    %471 = arith.addi %455, %470 : vector<1x16xi32>
    %c0_i32_128 = arith.constant 0 : i32
    %472 = vector.broadcast %c0_i32_128 : i32 to vector<1x16xi32>
    %473 = arith.cmpi sge, %471, %472 : vector<1x16xi32>
    %c4_i32_129 = arith.constant 4 : i32
    %474 = vector.broadcast %c4_i32_129 : i32 to vector<1x16xi32>
    %475 = arith.cmpi slt, %471, %474 : vector<1x16xi32>
    %476 = arith.andi %473, %475 : vector<1x16xi1>
    %cst_130 = arith.constant 0.000000e+00 : f32
    %477 = arith.truncf %cst_130 : f32 to bf16
    %478 = vector.shape_cast %476 : vector<1x16xi1> to vector<1x16xi1>
    %479 = vector.broadcast %478 : vector<1x16xi1> to vector<8x16xi1>
    %480 = vector.broadcast %477 : bf16 to vector<8x16xbf16>
    %481 = arith.select %479, %469, %480 : vector<8x16xi1>, vector<8x16xbf16>
    %482 = vector.extract_strided_slice %452 {offsets = [0, 2], sizes = [8, 16], strides = [1, 1]} : vector<8x36xbf16> to vector<8x16xbf16>
    %c0_i32_131 = arith.constant 0 : i32
    %483 = vector.broadcast %c0_i32_131 : i32 to vector<1x16xi32>
    %484 = arith.addi %455, %483 : vector<1x16xi32>
    %c0_i32_132 = arith.constant 0 : i32
    %485 = vector.broadcast %c0_i32_132 : i32 to vector<1x16xi32>
    %486 = arith.cmpi sge, %484, %485 : vector<1x16xi32>
    %c4_i32_133 = arith.constant 4 : i32
    %487 = vector.broadcast %c4_i32_133 : i32 to vector<1x16xi32>
    %488 = arith.cmpi slt, %484, %487 : vector<1x16xi32>
    %489 = arith.andi %486, %488 : vector<1x16xi1>
    %cst_134 = arith.constant 0.000000e+00 : f32
    %490 = arith.truncf %cst_134 : f32 to bf16
    %491 = vector.shape_cast %489 : vector<1x16xi1> to vector<1x16xi1>
    %492 = vector.broadcast %491 : vector<1x16xi1> to vector<8x16xi1>
    %493 = vector.broadcast %490 : bf16 to vector<8x16xbf16>
    %494 = arith.select %492, %482, %493 : vector<8x16xi1>, vector<8x16xbf16>
    %495 = vector.extract_strided_slice %452 {offsets = [0, 3], sizes = [8, 16], strides = [1, 1]} : vector<8x36xbf16> to vector<8x16xbf16>
    %c1_i32_135 = arith.constant 1 : i32
    %496 = vector.broadcast %c1_i32_135 : i32 to vector<1x16xi32>
    %497 = arith.addi %455, %496 : vector<1x16xi32>
    %c0_i32_136 = arith.constant 0 : i32
    %498 = vector.broadcast %c0_i32_136 : i32 to vector<1x16xi32>
    %499 = arith.cmpi sge, %497, %498 : vector<1x16xi32>
    %c4_i32_137 = arith.constant 4 : i32
    %500 = vector.broadcast %c4_i32_137 : i32 to vector<1x16xi32>
    %501 = arith.cmpi slt, %497, %500 : vector<1x16xi32>
    %502 = arith.andi %499, %501 : vector<1x16xi1>
    %cst_138 = arith.constant 0.000000e+00 : f32
    %503 = arith.truncf %cst_138 : f32 to bf16
    %504 = vector.shape_cast %502 : vector<1x16xi1> to vector<1x16xi1>
    %505 = vector.broadcast %504 : vector<1x16xi1> to vector<8x16xi1>
    %506 = vector.broadcast %503 : bf16 to vector<8x16xbf16>
    %507 = arith.select %505, %495, %506 : vector<8x16xi1>, vector<8x16xbf16>
    %508 = vector.extract_strided_slice %452 {offsets = [0, 4], sizes = [8, 16], strides = [1, 1]} : vector<8x36xbf16> to vector<8x16xbf16>
    %c2_i32_139 = arith.constant 2 : i32
    %509 = vector.broadcast %c2_i32_139 : i32 to vector<1x16xi32>
    %510 = arith.addi %455, %509 : vector<1x16xi32>
    %c0_i32_140 = arith.constant 0 : i32
    %511 = vector.broadcast %c0_i32_140 : i32 to vector<1x16xi32>
    %512 = arith.cmpi sge, %510, %511 : vector<1x16xi32>
    %c4_i32_141 = arith.constant 4 : i32
    %513 = vector.broadcast %c4_i32_141 : i32 to vector<1x16xi32>
    %514 = arith.cmpi slt, %510, %513 : vector<1x16xi32>
    %515 = arith.andi %512, %514 : vector<1x16xi1>
    %cst_142 = arith.constant 0.000000e+00 : f32
    %516 = arith.truncf %cst_142 : f32 to bf16
    %517 = vector.shape_cast %515 : vector<1x16xi1> to vector<1x16xi1>
    %518 = vector.broadcast %517 : vector<1x16xi1> to vector<8x16xi1>
    %519 = vector.broadcast %516 : bf16 to vector<8x16xbf16>
    %520 = arith.select %518, %508, %519 : vector<8x16xi1>, vector<8x16xbf16>
    %521 = vector.extract_strided_slice %452 {offsets = [0, 4], sizes = [8, 16], strides = [1, 1]} : vector<8x36xbf16> to vector<8x16xbf16>
    %c-2_i32_143 = arith.constant -2 : i32
    %522 = vector.broadcast %c-2_i32_143 : i32 to vector<1x16xi32>
    %523 = arith.addi %455, %522 : vector<1x16xi32>
    %c0_i32_144 = arith.constant 0 : i32
    %524 = vector.broadcast %c0_i32_144 : i32 to vector<1x16xi32>
    %525 = arith.cmpi sge, %523, %524 : vector<1x16xi32>
    %c4_i32_145 = arith.constant 4 : i32
    %526 = vector.broadcast %c4_i32_145 : i32 to vector<1x16xi32>
    %527 = arith.cmpi slt, %523, %526 : vector<1x16xi32>
    %528 = arith.andi %525, %527 : vector<1x16xi1>
    %cst_146 = arith.constant 0.000000e+00 : f32
    %529 = arith.truncf %cst_146 : f32 to bf16
    %530 = vector.shape_cast %528 : vector<1x16xi1> to vector<1x16xi1>
    %531 = vector.broadcast %530 : vector<1x16xi1> to vector<8x16xi1>
    %532 = vector.broadcast %529 : bf16 to vector<8x16xbf16>
    %533 = arith.select %531, %521, %532 : vector<8x16xi1>, vector<8x16xbf16>
    %534 = vector.extract_strided_slice %452 {offsets = [0, 5], sizes = [8, 16], strides = [1, 1]} : vector<8x36xbf16> to vector<8x16xbf16>
    %c-1_i32_147 = arith.constant -1 : i32
    %535 = vector.broadcast %c-1_i32_147 : i32 to vector<1x16xi32>
    %536 = arith.addi %455, %535 : vector<1x16xi32>
    %c0_i32_148 = arith.constant 0 : i32
    %537 = vector.broadcast %c0_i32_148 : i32 to vector<1x16xi32>
    %538 = arith.cmpi sge, %536, %537 : vector<1x16xi32>
    %c4_i32_149 = arith.constant 4 : i32
    %539 = vector.broadcast %c4_i32_149 : i32 to vector<1x16xi32>
    %540 = arith.cmpi slt, %536, %539 : vector<1x16xi32>
    %541 = arith.andi %538, %540 : vector<1x16xi1>
    %cst_150 = arith.constant 0.000000e+00 : f32
    %542 = arith.truncf %cst_150 : f32 to bf16
    %543 = vector.shape_cast %541 : vector<1x16xi1> to vector<1x16xi1>
    %544 = vector.broadcast %543 : vector<1x16xi1> to vector<8x16xi1>
    %545 = vector.broadcast %542 : bf16 to vector<8x16xbf16>
    %546 = arith.select %544, %534, %545 : vector<8x16xi1>, vector<8x16xbf16>
    %547 = vector.extract_strided_slice %452 {offsets = [0, 6], sizes = [8, 16], strides = [1, 1]} : vector<8x36xbf16> to vector<8x16xbf16>
    %c0_i32_151 = arith.constant 0 : i32
    %548 = vector.broadcast %c0_i32_151 : i32 to vector<1x16xi32>
    %549 = arith.addi %455, %548 : vector<1x16xi32>
    %c0_i32_152 = arith.constant 0 : i32
    %550 = vector.broadcast %c0_i32_152 : i32 to vector<1x16xi32>
    %551 = arith.cmpi sge, %549, %550 : vector<1x16xi32>
    %c4_i32_153 = arith.constant 4 : i32
    %552 = vector.broadcast %c4_i32_153 : i32 to vector<1x16xi32>
    %553 = arith.cmpi slt, %549, %552 : vector<1x16xi32>
    %554 = arith.andi %551, %553 : vector<1x16xi1>
    %cst_154 = arith.constant 0.000000e+00 : f32
    %555 = arith.truncf %cst_154 : f32 to bf16
    %556 = vector.shape_cast %554 : vector<1x16xi1> to vector<1x16xi1>
    %557 = vector.broadcast %556 : vector<1x16xi1> to vector<8x16xi1>
    %558 = vector.broadcast %555 : bf16 to vector<8x16xbf16>
    %559 = arith.select %557, %547, %558 : vector<8x16xi1>, vector<8x16xbf16>
    %560 = vector.extract_strided_slice %452 {offsets = [0, 7], sizes = [8, 16], strides = [1, 1]} : vector<8x36xbf16> to vector<8x16xbf16>
    %c1_i32_155 = arith.constant 1 : i32
    %561 = vector.broadcast %c1_i32_155 : i32 to vector<1x16xi32>
    %562 = arith.addi %455, %561 : vector<1x16xi32>
    %c0_i32_156 = arith.constant 0 : i32
    %563 = vector.broadcast %c0_i32_156 : i32 to vector<1x16xi32>
    %564 = arith.cmpi sge, %562, %563 : vector<1x16xi32>
    %c4_i32_157 = arith.constant 4 : i32
    %565 = vector.broadcast %c4_i32_157 : i32 to vector<1x16xi32>
    %566 = arith.cmpi slt, %562, %565 : vector<1x16xi32>
    %567 = arith.andi %564, %566 : vector<1x16xi1>
    %cst_158 = arith.constant 0.000000e+00 : f32
    %568 = arith.truncf %cst_158 : f32 to bf16
    %569 = vector.shape_cast %567 : vector<1x16xi1> to vector<1x16xi1>
    %570 = vector.broadcast %569 : vector<1x16xi1> to vector<8x16xi1>
    %571 = vector.broadcast %568 : bf16 to vector<8x16xbf16>
    %572 = arith.select %570, %560, %571 : vector<8x16xi1>, vector<8x16xbf16>
    %573 = vector.extract_strided_slice %452 {offsets = [0, 8], sizes = [8, 16], strides = [1, 1]} : vector<8x36xbf16> to vector<8x16xbf16>
    %c2_i32_159 = arith.constant 2 : i32
    %574 = vector.broadcast %c2_i32_159 : i32 to vector<1x16xi32>
    %575 = arith.addi %455, %574 : vector<1x16xi32>
    %c0_i32_160 = arith.constant 0 : i32
    %576 = vector.broadcast %c0_i32_160 : i32 to vector<1x16xi32>
    %577 = arith.cmpi sge, %575, %576 : vector<1x16xi32>
    %c4_i32_161 = arith.constant 4 : i32
    %578 = vector.broadcast %c4_i32_161 : i32 to vector<1x16xi32>
    %579 = arith.cmpi slt, %575, %578 : vector<1x16xi32>
    %580 = arith.andi %577, %579 : vector<1x16xi1>
    %cst_162 = arith.constant 0.000000e+00 : f32
    %581 = arith.truncf %cst_162 : f32 to bf16
    %582 = vector.shape_cast %580 : vector<1x16xi1> to vector<1x16xi1>
    %583 = vector.broadcast %582 : vector<1x16xi1> to vector<8x16xi1>
    %584 = vector.broadcast %581 : bf16 to vector<8x16xbf16>
    %585 = arith.select %583, %573, %584 : vector<8x16xi1>, vector<8x16xbf16>
    %586 = vector.extract_strided_slice %452 {offsets = [0, 8], sizes = [8, 16], strides = [1, 1]} : vector<8x36xbf16> to vector<8x16xbf16>
    %c-2_i32_163 = arith.constant -2 : i32
    %587 = vector.broadcast %c-2_i32_163 : i32 to vector<1x16xi32>
    %588 = arith.addi %455, %587 : vector<1x16xi32>
    %c0_i32_164 = arith.constant 0 : i32
    %589 = vector.broadcast %c0_i32_164 : i32 to vector<1x16xi32>
    %590 = arith.cmpi sge, %588, %589 : vector<1x16xi32>
    %c4_i32_165 = arith.constant 4 : i32
    %591 = vector.broadcast %c4_i32_165 : i32 to vector<1x16xi32>
    %592 = arith.cmpi slt, %588, %591 : vector<1x16xi32>
    %593 = arith.andi %590, %592 : vector<1x16xi1>
    %cst_166 = arith.constant 0.000000e+00 : f32
    %594 = arith.truncf %cst_166 : f32 to bf16
    %595 = vector.shape_cast %593 : vector<1x16xi1> to vector<1x16xi1>
    %596 = vector.broadcast %595 : vector<1x16xi1> to vector<8x16xi1>
    %597 = vector.broadcast %594 : bf16 to vector<8x16xbf16>
    %598 = arith.select %596, %586, %597 : vector<8x16xi1>, vector<8x16xbf16>
    %599 = vector.extract_strided_slice %452 {offsets = [0, 9], sizes = [8, 16], strides = [1, 1]} : vector<8x36xbf16> to vector<8x16xbf16>
    %c-1_i32_167 = arith.constant -1 : i32
    %600 = vector.broadcast %c-1_i32_167 : i32 to vector<1x16xi32>
    %601 = arith.addi %455, %600 : vector<1x16xi32>
    %c0_i32_168 = arith.constant 0 : i32
    %602 = vector.broadcast %c0_i32_168 : i32 to vector<1x16xi32>
    %603 = arith.cmpi sge, %601, %602 : vector<1x16xi32>
    %c4_i32_169 = arith.constant 4 : i32
    %604 = vector.broadcast %c4_i32_169 : i32 to vector<1x16xi32>
    %605 = arith.cmpi slt, %601, %604 : vector<1x16xi32>
    %606 = arith.andi %603, %605 : vector<1x16xi1>
    %cst_170 = arith.constant 0.000000e+00 : f32
    %607 = arith.truncf %cst_170 : f32 to bf16
    %608 = vector.shape_cast %606 : vector<1x16xi1> to vector<1x16xi1>
    %609 = vector.broadcast %608 : vector<1x16xi1> to vector<8x16xi1>
    %610 = vector.broadcast %607 : bf16 to vector<8x16xbf16>
    %611 = arith.select %609, %599, %610 : vector<8x16xi1>, vector<8x16xbf16>
    %612 = vector.extract_strided_slice %452 {offsets = [0, 10], sizes = [8, 16], strides = [1, 1]} : vector<8x36xbf16> to vector<8x16xbf16>
    %c0_i32_171 = arith.constant 0 : i32
    %613 = vector.broadcast %c0_i32_171 : i32 to vector<1x16xi32>
    %614 = arith.addi %455, %613 : vector<1x16xi32>
    %c0_i32_172 = arith.constant 0 : i32
    %615 = vector.broadcast %c0_i32_172 : i32 to vector<1x16xi32>
    %616 = arith.cmpi sge, %614, %615 : vector<1x16xi32>
    %c4_i32_173 = arith.constant 4 : i32
    %617 = vector.broadcast %c4_i32_173 : i32 to vector<1x16xi32>
    %618 = arith.cmpi slt, %614, %617 : vector<1x16xi32>
    %619 = arith.andi %616, %618 : vector<1x16xi1>
    %cst_174 = arith.constant 0.000000e+00 : f32
    %620 = arith.truncf %cst_174 : f32 to bf16
    %621 = vector.shape_cast %619 : vector<1x16xi1> to vector<1x16xi1>
    %622 = vector.broadcast %621 : vector<1x16xi1> to vector<8x16xi1>
    %623 = vector.broadcast %620 : bf16 to vector<8x16xbf16>
    %624 = arith.select %622, %612, %623 : vector<8x16xi1>, vector<8x16xbf16>
    %625 = vector.extract_strided_slice %452 {offsets = [0, 11], sizes = [8, 16], strides = [1, 1]} : vector<8x36xbf16> to vector<8x16xbf16>
    %c1_i32_175 = arith.constant 1 : i32
    %626 = vector.broadcast %c1_i32_175 : i32 to vector<1x16xi32>
    %627 = arith.addi %455, %626 : vector<1x16xi32>
    %c0_i32_176 = arith.constant 0 : i32
    %628 = vector.broadcast %c0_i32_176 : i32 to vector<1x16xi32>
    %629 = arith.cmpi sge, %627, %628 : vector<1x16xi32>
    %c4_i32_177 = arith.constant 4 : i32
    %630 = vector.broadcast %c4_i32_177 : i32 to vector<1x16xi32>
    %631 = arith.cmpi slt, %627, %630 : vector<1x16xi32>
    %632 = arith.andi %629, %631 : vector<1x16xi1>
    %cst_178 = arith.constant 0.000000e+00 : f32
    %633 = arith.truncf %cst_178 : f32 to bf16
    %634 = vector.shape_cast %632 : vector<1x16xi1> to vector<1x16xi1>
    %635 = vector.broadcast %634 : vector<1x16xi1> to vector<8x16xi1>
    %636 = vector.broadcast %633 : bf16 to vector<8x16xbf16>
    %637 = arith.select %635, %625, %636 : vector<8x16xi1>, vector<8x16xbf16>
    %638 = vector.extract_strided_slice %452 {offsets = [0, 12], sizes = [8, 16], strides = [1, 1]} : vector<8x36xbf16> to vector<8x16xbf16>
    %c2_i32_179 = arith.constant 2 : i32
    %639 = vector.broadcast %c2_i32_179 : i32 to vector<1x16xi32>
    %640 = arith.addi %455, %639 : vector<1x16xi32>
    %c0_i32_180 = arith.constant 0 : i32
    %641 = vector.broadcast %c0_i32_180 : i32 to vector<1x16xi32>
    %642 = arith.cmpi sge, %640, %641 : vector<1x16xi32>
    %c4_i32_181 = arith.constant 4 : i32
    %643 = vector.broadcast %c4_i32_181 : i32 to vector<1x16xi32>
    %644 = arith.cmpi slt, %640, %643 : vector<1x16xi32>
    %645 = arith.andi %642, %644 : vector<1x16xi1>
    %cst_182 = arith.constant 0.000000e+00 : f32
    %646 = arith.truncf %cst_182 : f32 to bf16
    %647 = vector.shape_cast %645 : vector<1x16xi1> to vector<1x16xi1>
    %648 = vector.broadcast %647 : vector<1x16xi1> to vector<8x16xi1>
    %649 = vector.broadcast %646 : bf16 to vector<8x16xbf16>
    %650 = arith.select %648, %638, %649 : vector<8x16xi1>, vector<8x16xbf16>
    %651 = vector.extract_strided_slice %452 {offsets = [0, 12], sizes = [8, 16], strides = [1, 1]} : vector<8x36xbf16> to vector<8x16xbf16>
    %c-2_i32_183 = arith.constant -2 : i32
    %652 = vector.broadcast %c-2_i32_183 : i32 to vector<1x16xi32>
    %653 = arith.addi %455, %652 : vector<1x16xi32>
    %c0_i32_184 = arith.constant 0 : i32
    %654 = vector.broadcast %c0_i32_184 : i32 to vector<1x16xi32>
    %655 = arith.cmpi sge, %653, %654 : vector<1x16xi32>
    %c4_i32_185 = arith.constant 4 : i32
    %656 = vector.broadcast %c4_i32_185 : i32 to vector<1x16xi32>
    %657 = arith.cmpi slt, %653, %656 : vector<1x16xi32>
    %658 = arith.andi %655, %657 : vector<1x16xi1>
    %cst_186 = arith.constant 0.000000e+00 : f32
    %659 = arith.truncf %cst_186 : f32 to bf16
    %660 = vector.shape_cast %658 : vector<1x16xi1> to vector<1x16xi1>
    %661 = vector.broadcast %660 : vector<1x16xi1> to vector<8x16xi1>
    %662 = vector.broadcast %659 : bf16 to vector<8x16xbf16>
    %663 = arith.select %661, %651, %662 : vector<8x16xi1>, vector<8x16xbf16>
    %664 = vector.extract_strided_slice %452 {offsets = [0, 13], sizes = [8, 16], strides = [1, 1]} : vector<8x36xbf16> to vector<8x16xbf16>
    %c-1_i32_187 = arith.constant -1 : i32
    %665 = vector.broadcast %c-1_i32_187 : i32 to vector<1x16xi32>
    %666 = arith.addi %455, %665 : vector<1x16xi32>
    %c0_i32_188 = arith.constant 0 : i32
    %667 = vector.broadcast %c0_i32_188 : i32 to vector<1x16xi32>
    %668 = arith.cmpi sge, %666, %667 : vector<1x16xi32>
    %c4_i32_189 = arith.constant 4 : i32
    %669 = vector.broadcast %c4_i32_189 : i32 to vector<1x16xi32>
    %670 = arith.cmpi slt, %666, %669 : vector<1x16xi32>
    %671 = arith.andi %668, %670 : vector<1x16xi1>
    %cst_190 = arith.constant 0.000000e+00 : f32
    %672 = arith.truncf %cst_190 : f32 to bf16
    %673 = vector.shape_cast %671 : vector<1x16xi1> to vector<1x16xi1>
    %674 = vector.broadcast %673 : vector<1x16xi1> to vector<8x16xi1>
    %675 = vector.broadcast %672 : bf16 to vector<8x16xbf16>
    %676 = arith.select %674, %664, %675 : vector<8x16xi1>, vector<8x16xbf16>
    %677 = vector.extract_strided_slice %452 {offsets = [0, 14], sizes = [8, 16], strides = [1, 1]} : vector<8x36xbf16> to vector<8x16xbf16>
    %c0_i32_191 = arith.constant 0 : i32
    %678 = vector.broadcast %c0_i32_191 : i32 to vector<1x16xi32>
    %679 = arith.addi %455, %678 : vector<1x16xi32>
    %c0_i32_192 = arith.constant 0 : i32
    %680 = vector.broadcast %c0_i32_192 : i32 to vector<1x16xi32>
    %681 = arith.cmpi sge, %679, %680 : vector<1x16xi32>
    %c4_i32_193 = arith.constant 4 : i32
    %682 = vector.broadcast %c4_i32_193 : i32 to vector<1x16xi32>
    %683 = arith.cmpi slt, %679, %682 : vector<1x16xi32>
    %684 = arith.andi %681, %683 : vector<1x16xi1>
    %cst_194 = arith.constant 0.000000e+00 : f32
    %685 = arith.truncf %cst_194 : f32 to bf16
    %686 = vector.shape_cast %684 : vector<1x16xi1> to vector<1x16xi1>
    %687 = vector.broadcast %686 : vector<1x16xi1> to vector<8x16xi1>
    %688 = vector.broadcast %685 : bf16 to vector<8x16xbf16>
    %689 = arith.select %687, %677, %688 : vector<8x16xi1>, vector<8x16xbf16>
    %690 = vector.extract_strided_slice %452 {offsets = [0, 15], sizes = [8, 16], strides = [1, 1]} : vector<8x36xbf16> to vector<8x16xbf16>
    %c1_i32_195 = arith.constant 1 : i32
    %691 = vector.broadcast %c1_i32_195 : i32 to vector<1x16xi32>
    %692 = arith.addi %455, %691 : vector<1x16xi32>
    %c0_i32_196 = arith.constant 0 : i32
    %693 = vector.broadcast %c0_i32_196 : i32 to vector<1x16xi32>
    %694 = arith.cmpi sge, %692, %693 : vector<1x16xi32>
    %c4_i32_197 = arith.constant 4 : i32
    %695 = vector.broadcast %c4_i32_197 : i32 to vector<1x16xi32>
    %696 = arith.cmpi slt, %692, %695 : vector<1x16xi32>
    %697 = arith.andi %694, %696 : vector<1x16xi1>
    %cst_198 = arith.constant 0.000000e+00 : f32
    %698 = arith.truncf %cst_198 : f32 to bf16
    %699 = vector.shape_cast %697 : vector<1x16xi1> to vector<1x16xi1>
    %700 = vector.broadcast %699 : vector<1x16xi1> to vector<8x16xi1>
    %701 = vector.broadcast %698 : bf16 to vector<8x16xbf16>
    %702 = arith.select %700, %690, %701 : vector<8x16xi1>, vector<8x16xbf16>
    %703 = vector.extract_strided_slice %452 {offsets = [0, 16], sizes = [8, 16], strides = [1, 1]} : vector<8x36xbf16> to vector<8x16xbf16>
    %c2_i32_199 = arith.constant 2 : i32
    %704 = vector.broadcast %c2_i32_199 : i32 to vector<1x16xi32>
    %705 = arith.addi %455, %704 : vector<1x16xi32>
    %c0_i32_200 = arith.constant 0 : i32
    %706 = vector.broadcast %c0_i32_200 : i32 to vector<1x16xi32>
    %707 = arith.cmpi sge, %705, %706 : vector<1x16xi32>
    %c4_i32_201 = arith.constant 4 : i32
    %708 = vector.broadcast %c4_i32_201 : i32 to vector<1x16xi32>
    %709 = arith.cmpi slt, %705, %708 : vector<1x16xi32>
    %710 = arith.andi %707, %709 : vector<1x16xi1>
    %cst_202 = arith.constant 0.000000e+00 : f32
    %711 = arith.truncf %cst_202 : f32 to bf16
    %712 = vector.shape_cast %710 : vector<1x16xi1> to vector<1x16xi1>
    %713 = vector.broadcast %712 : vector<1x16xi1> to vector<8x16xi1>
    %714 = vector.broadcast %711 : bf16 to vector<8x16xbf16>
    %715 = arith.select %713, %703, %714 : vector<8x16xi1>, vector<8x16xbf16>
    %716 = vector.extract_strided_slice %452 {offsets = [0, 16], sizes = [8, 16], strides = [1, 1]} : vector<8x36xbf16> to vector<8x16xbf16>
    %c-2_i32_203 = arith.constant -2 : i32
    %717 = vector.broadcast %c-2_i32_203 : i32 to vector<1x16xi32>
    %718 = arith.addi %455, %717 : vector<1x16xi32>
    %c0_i32_204 = arith.constant 0 : i32
    %719 = vector.broadcast %c0_i32_204 : i32 to vector<1x16xi32>
    %720 = arith.cmpi sge, %718, %719 : vector<1x16xi32>
    %c4_i32_205 = arith.constant 4 : i32
    %721 = vector.broadcast %c4_i32_205 : i32 to vector<1x16xi32>
    %722 = arith.cmpi slt, %718, %721 : vector<1x16xi32>
    %723 = arith.andi %720, %722 : vector<1x16xi1>
    %cst_206 = arith.constant 0.000000e+00 : f32
    %724 = arith.truncf %cst_206 : f32 to bf16
    %725 = vector.shape_cast %723 : vector<1x16xi1> to vector<1x16xi1>
    %726 = vector.broadcast %725 : vector<1x16xi1> to vector<8x16xi1>
    %727 = vector.broadcast %724 : bf16 to vector<8x16xbf16>
    %728 = arith.select %726, %716, %727 : vector<8x16xi1>, vector<8x16xbf16>
    %729 = vector.extract_strided_slice %452 {offsets = [0, 17], sizes = [8, 16], strides = [1, 1]} : vector<8x36xbf16> to vector<8x16xbf16>
    %c-1_i32_207 = arith.constant -1 : i32
    %730 = vector.broadcast %c-1_i32_207 : i32 to vector<1x16xi32>
    %731 = arith.addi %455, %730 : vector<1x16xi32>
    %c0_i32_208 = arith.constant 0 : i32
    %732 = vector.broadcast %c0_i32_208 : i32 to vector<1x16xi32>
    %733 = arith.cmpi sge, %731, %732 : vector<1x16xi32>
    %c4_i32_209 = arith.constant 4 : i32
    %734 = vector.broadcast %c4_i32_209 : i32 to vector<1x16xi32>
    %735 = arith.cmpi slt, %731, %734 : vector<1x16xi32>
    %736 = arith.andi %733, %735 : vector<1x16xi1>
    %cst_210 = arith.constant 0.000000e+00 : f32
    %737 = arith.truncf %cst_210 : f32 to bf16
    %738 = vector.shape_cast %736 : vector<1x16xi1> to vector<1x16xi1>
    %739 = vector.broadcast %738 : vector<1x16xi1> to vector<8x16xi1>
    %740 = vector.broadcast %737 : bf16 to vector<8x16xbf16>
    %741 = arith.select %739, %729, %740 : vector<8x16xi1>, vector<8x16xbf16>
    %742 = vector.extract_strided_slice %452 {offsets = [0, 18], sizes = [8, 16], strides = [1, 1]} : vector<8x36xbf16> to vector<8x16xbf16>
    %c0_i32_211 = arith.constant 0 : i32
    %743 = vector.broadcast %c0_i32_211 : i32 to vector<1x16xi32>
    %744 = arith.addi %455, %743 : vector<1x16xi32>
    %c0_i32_212 = arith.constant 0 : i32
    %745 = vector.broadcast %c0_i32_212 : i32 to vector<1x16xi32>
    %746 = arith.cmpi sge, %744, %745 : vector<1x16xi32>
    %c4_i32_213 = arith.constant 4 : i32
    %747 = vector.broadcast %c4_i32_213 : i32 to vector<1x16xi32>
    %748 = arith.cmpi slt, %744, %747 : vector<1x16xi32>
    %749 = arith.andi %746, %748 : vector<1x16xi1>
    %cst_214 = arith.constant 0.000000e+00 : f32
    %750 = arith.truncf %cst_214 : f32 to bf16
    %751 = vector.shape_cast %749 : vector<1x16xi1> to vector<1x16xi1>
    %752 = vector.broadcast %751 : vector<1x16xi1> to vector<8x16xi1>
    %753 = vector.broadcast %750 : bf16 to vector<8x16xbf16>
    %754 = arith.select %752, %742, %753 : vector<8x16xi1>, vector<8x16xbf16>
    %755 = vector.extract_strided_slice %452 {offsets = [0, 19], sizes = [8, 16], strides = [1, 1]} : vector<8x36xbf16> to vector<8x16xbf16>
    %c1_i32_215 = arith.constant 1 : i32
    %756 = vector.broadcast %c1_i32_215 : i32 to vector<1x16xi32>
    %757 = arith.addi %455, %756 : vector<1x16xi32>
    %c0_i32_216 = arith.constant 0 : i32
    %758 = vector.broadcast %c0_i32_216 : i32 to vector<1x16xi32>
    %759 = arith.cmpi sge, %757, %758 : vector<1x16xi32>
    %c4_i32_217 = arith.constant 4 : i32
    %760 = vector.broadcast %c4_i32_217 : i32 to vector<1x16xi32>
    %761 = arith.cmpi slt, %757, %760 : vector<1x16xi32>
    %762 = arith.andi %759, %761 : vector<1x16xi1>
    %cst_218 = arith.constant 0.000000e+00 : f32
    %763 = arith.truncf %cst_218 : f32 to bf16
    %764 = vector.shape_cast %762 : vector<1x16xi1> to vector<1x16xi1>
    %765 = vector.broadcast %764 : vector<1x16xi1> to vector<8x16xi1>
    %766 = vector.broadcast %763 : bf16 to vector<8x16xbf16>
    %767 = arith.select %765, %755, %766 : vector<8x16xi1>, vector<8x16xbf16>
    %768 = vector.extract_strided_slice %452 {offsets = [0, 20], sizes = [8, 16], strides = [1, 1]} : vector<8x36xbf16> to vector<8x16xbf16>
    %c2_i32_219 = arith.constant 2 : i32
    %769 = vector.broadcast %c2_i32_219 : i32 to vector<1x16xi32>
    %770 = arith.addi %455, %769 : vector<1x16xi32>
    %c0_i32_220 = arith.constant 0 : i32
    %771 = vector.broadcast %c0_i32_220 : i32 to vector<1x16xi32>
    %772 = arith.cmpi sge, %770, %771 : vector<1x16xi32>
    %c4_i32_221 = arith.constant 4 : i32
    %773 = vector.broadcast %c4_i32_221 : i32 to vector<1x16xi32>
    %774 = arith.cmpi slt, %770, %773 : vector<1x16xi32>
    %775 = arith.andi %772, %774 : vector<1x16xi1>
    %cst_222 = arith.constant 0.000000e+00 : f32
    %776 = arith.truncf %cst_222 : f32 to bf16
    %777 = vector.shape_cast %775 : vector<1x16xi1> to vector<1x16xi1>
    %778 = vector.broadcast %777 : vector<1x16xi1> to vector<8x16xi1>
    %779 = vector.broadcast %776 : bf16 to vector<8x16xbf16>
    %780 = arith.select %778, %768, %779 : vector<8x16xi1>, vector<8x16xbf16>
    %781 = tpu.concatenate %468, %481, %494, %507, %520, %533, %546, %559, %572, %585, %598, %611, %624, %637, %650, %663 in 0 : vector<8x16xbf16>, vector<8x16xbf16>, vector<8x16xbf16>, vector<8x16xbf16>, vector<8x16xbf16>, vector<8x16xbf16>, vector<8x16xbf16>, vector<8x16xbf16>, vector<8x16xbf16>, vector<8x16xbf16>, vector<8x16xbf16>, vector<8x16xbf16>, vector<8x16xbf16>, vector<8x16xbf16>, vector<8x16xbf16>, vector<8x16xbf16> -> vector<128x16xbf16>
    %782 = tpu.concatenate %676, %689, %702, %715, %728, %741, %754, %767, %780 in 0 : vector<8x16xbf16>, vector<8x16xbf16>, vector<8x16xbf16>, vector<8x16xbf16>, vector<8x16xbf16>, vector<8x16xbf16>, vector<8x16xbf16>, vector<8x16xbf16>, vector<8x16xbf16> -> vector<72x16xbf16>
    %783 = tpu.concatenate %781, %782 in 0 : vector<128x16xbf16>, vector<72x16xbf16> -> vector<200x16xbf16>
    %cst_223 = arith.constant dense<0.000000e+00> : vector<8x16xf32>
    %784 = tpu.matmul %448, %783, %cst_223 {dimension_numbers = #tpu.dot_dimension_numbers<[1], [0], [0], [1], [0, 0, 1, 1], [], []>} : vector<8x200xbf16>, vector<200x16xbf16>, vector<8x16xf32> -> vector<8x16xf32>
    %785 = vector.broadcast %449 : vector<8x1xf32> to vector<8x16xf32>
    %786 = arith.addf %784, %785 : vector<8x16xf32>
    %cst_224 = arith.constant 0.000000e+00 : f32
    %787 = vector.broadcast %cst_224 : f32 to vector<8x16xf32>
    %788 = arith.maximumf %786, %787 : vector<8x16xf32>
    %c0_225 = arith.constant 0 : index
    %c0_226 = arith.constant 0 : index
    %789 = vector.load %arg8[%c0_225, %c0_226] : memref<8x200xbf16, #tpu.memory_space<vmem>>, vector<8x200xbf16>
    %c0_227 = arith.constant 0 : index
    %c0_228 = arith.constant 0 : index
    %790 = vector.load %arg9[%c0_227, %c0_228] : memref<8x1xf32, #tpu.memory_space<vmem>>, vector<8x1xf32>
    %cst_229 = arith.constant 0.000000e+00 : bf16
    %791 = vector.broadcast %cst_229 : bf16 to vector<8x10xbf16>
    %792 = arith.truncf %788 : vector<8x16xf32> to vector<8x16xbf16>
    %793 = tpu.concatenate %791, %792, %791 in 1 : vector<8x10xbf16>, vector<8x16xbf16>, vector<8x10xbf16> -> vector<8x36xbf16>
    %794 = tpu.iota {dimensions = array<i32: 1>} : vector<1x16xi32>
    %c3_i32_230 = arith.constant 3 : i32
    %795 = vector.broadcast %c3_i32_230 : i32 to vector<1x16xi32>
    %796 = arith.andi %794, %795 : vector<1x16xi32>
    %797 = vector.extract_strided_slice %793 {offsets = [0, 0], sizes = [8, 16], strides = [1, 1]} : vector<8x36xbf16> to vector<8x16xbf16>
    %c-2_i32_231 = arith.constant -2 : i32
    %798 = vector.broadcast %c-2_i32_231 : i32 to vector<1x16xi32>
    %799 = arith.addi %796, %798 : vector<1x16xi32>
    %c0_i32_232 = arith.constant 0 : i32
    %800 = vector.broadcast %c0_i32_232 : i32 to vector<1x16xi32>
    %801 = arith.cmpi sge, %799, %800 : vector<1x16xi32>
    %c4_i32_233 = arith.constant 4 : i32
    %802 = vector.broadcast %c4_i32_233 : i32 to vector<1x16xi32>
    %803 = arith.cmpi slt, %799, %802 : vector<1x16xi32>
    %804 = arith.andi %801, %803 : vector<1x16xi1>
    %cst_234 = arith.constant 0.000000e+00 : f32
    %805 = arith.truncf %cst_234 : f32 to bf16
    %806 = vector.shape_cast %804 : vector<1x16xi1> to vector<1x16xi1>
    %807 = vector.broadcast %806 : vector<1x16xi1> to vector<8x16xi1>
    %808 = vector.broadcast %805 : bf16 to vector<8x16xbf16>
    %809 = arith.select %807, %797, %808 : vector<8x16xi1>, vector<8x16xbf16>
    %810 = vector.extract_strided_slice %793 {offsets = [0, 1], sizes = [8, 16], strides = [1, 1]} : vector<8x36xbf16> to vector<8x16xbf16>
    %c-1_i32_235 = arith.constant -1 : i32
    %811 = vector.broadcast %c-1_i32_235 : i32 to vector<1x16xi32>
    %812 = arith.addi %796, %811 : vector<1x16xi32>
    %c0_i32_236 = arith.constant 0 : i32
    %813 = vector.broadcast %c0_i32_236 : i32 to vector<1x16xi32>
    %814 = arith.cmpi sge, %812, %813 : vector<1x16xi32>
    %c4_i32_237 = arith.constant 4 : i32
    %815 = vector.broadcast %c4_i32_237 : i32 to vector<1x16xi32>
    %816 = arith.cmpi slt, %812, %815 : vector<1x16xi32>
    %817 = arith.andi %814, %816 : vector<1x16xi1>
    %cst_238 = arith.constant 0.000000e+00 : f32
    %818 = arith.truncf %cst_238 : f32 to bf16
    %819 = vector.shape_cast %817 : vector<1x16xi1> to vector<1x16xi1>
    %820 = vector.broadcast %819 : vector<1x16xi1> to vector<8x16xi1>
    %821 = vector.broadcast %818 : bf16 to vector<8x16xbf16>
    %822 = arith.select %820, %810, %821 : vector<8x16xi1>, vector<8x16xbf16>
    %823 = vector.extract_strided_slice %793 {offsets = [0, 2], sizes = [8, 16], strides = [1, 1]} : vector<8x36xbf16> to vector<8x16xbf16>
    %c0_i32_239 = arith.constant 0 : i32
    %824 = vector.broadcast %c0_i32_239 : i32 to vector<1x16xi32>
    %825 = arith.addi %796, %824 : vector<1x16xi32>
    %c0_i32_240 = arith.constant 0 : i32
    %826 = vector.broadcast %c0_i32_240 : i32 to vector<1x16xi32>
    %827 = arith.cmpi sge, %825, %826 : vector<1x16xi32>
    %c4_i32_241 = arith.constant 4 : i32
    %828 = vector.broadcast %c4_i32_241 : i32 to vector<1x16xi32>
    %829 = arith.cmpi slt, %825, %828 : vector<1x16xi32>
    %830 = arith.andi %827, %829 : vector<1x16xi1>
    %cst_242 = arith.constant 0.000000e+00 : f32
    %831 = arith.truncf %cst_242 : f32 to bf16
    %832 = vector.shape_cast %830 : vector<1x16xi1> to vector<1x16xi1>
    %833 = vector.broadcast %832 : vector<1x16xi1> to vector<8x16xi1>
    %834 = vector.broadcast %831 : bf16 to vector<8x16xbf16>
    %835 = arith.select %833, %823, %834 : vector<8x16xi1>, vector<8x16xbf16>
    %836 = vector.extract_strided_slice %793 {offsets = [0, 3], sizes = [8, 16], strides = [1, 1]} : vector<8x36xbf16> to vector<8x16xbf16>
    %c1_i32_243 = arith.constant 1 : i32
    %837 = vector.broadcast %c1_i32_243 : i32 to vector<1x16xi32>
    %838 = arith.addi %796, %837 : vector<1x16xi32>
    %c0_i32_244 = arith.constant 0 : i32
    %839 = vector.broadcast %c0_i32_244 : i32 to vector<1x16xi32>
    %840 = arith.cmpi sge, %838, %839 : vector<1x16xi32>
    %c4_i32_245 = arith.constant 4 : i32
    %841 = vector.broadcast %c4_i32_245 : i32 to vector<1x16xi32>
    %842 = arith.cmpi slt, %838, %841 : vector<1x16xi32>
    %843 = arith.andi %840, %842 : vector<1x16xi1>
    %cst_246 = arith.constant 0.000000e+00 : f32
    %844 = arith.truncf %cst_246 : f32 to bf16
    %845 = vector.shape_cast %843 : vector<1x16xi1> to vector<1x16xi1>
    %846 = vector.broadcast %845 : vector<1x16xi1> to vector<8x16xi1>
    %847 = vector.broadcast %844 : bf16 to vector<8x16xbf16>
    %848 = arith.select %846, %836, %847 : vector<8x16xi1>, vector<8x16xbf16>
    %849 = vector.extract_strided_slice %793 {offsets = [0, 4], sizes = [8, 16], strides = [1, 1]} : vector<8x36xbf16> to vector<8x16xbf16>
    %c2_i32_247 = arith.constant 2 : i32
    %850 = vector.broadcast %c2_i32_247 : i32 to vector<1x16xi32>
    %851 = arith.addi %796, %850 : vector<1x16xi32>
    %c0_i32_248 = arith.constant 0 : i32
    %852 = vector.broadcast %c0_i32_248 : i32 to vector<1x16xi32>
    %853 = arith.cmpi sge, %851, %852 : vector<1x16xi32>
    %c4_i32_249 = arith.constant 4 : i32
    %854 = vector.broadcast %c4_i32_249 : i32 to vector<1x16xi32>
    %855 = arith.cmpi slt, %851, %854 : vector<1x16xi32>
    %856 = arith.andi %853, %855 : vector<1x16xi1>
    %cst_250 = arith.constant 0.000000e+00 : f32
    %857 = arith.truncf %cst_250 : f32 to bf16
    %858 = vector.shape_cast %856 : vector<1x16xi1> to vector<1x16xi1>
    %859 = vector.broadcast %858 : vector<1x16xi1> to vector<8x16xi1>
    %860 = vector.broadcast %857 : bf16 to vector<8x16xbf16>
    %861 = arith.select %859, %849, %860 : vector<8x16xi1>, vector<8x16xbf16>
    %862 = vector.extract_strided_slice %793 {offsets = [0, 4], sizes = [8, 16], strides = [1, 1]} : vector<8x36xbf16> to vector<8x16xbf16>
    %c-2_i32_251 = arith.constant -2 : i32
    %863 = vector.broadcast %c-2_i32_251 : i32 to vector<1x16xi32>
    %864 = arith.addi %796, %863 : vector<1x16xi32>
    %c0_i32_252 = arith.constant 0 : i32
    %865 = vector.broadcast %c0_i32_252 : i32 to vector<1x16xi32>
    %866 = arith.cmpi sge, %864, %865 : vector<1x16xi32>
    %c4_i32_253 = arith.constant 4 : i32
    %867 = vector.broadcast %c4_i32_253 : i32 to vector<1x16xi32>
    %868 = arith.cmpi slt, %864, %867 : vector<1x16xi32>
    %869 = arith.andi %866, %868 : vector<1x16xi1>
    %cst_254 = arith.constant 0.000000e+00 : f32
    %870 = arith.truncf %cst_254 : f32 to bf16
    %871 = vector.shape_cast %869 : vector<1x16xi1> to vector<1x16xi1>
    %872 = vector.broadcast %871 : vector<1x16xi1> to vector<8x16xi1>
    %873 = vector.broadcast %870 : bf16 to vector<8x16xbf16>
    %874 = arith.select %872, %862, %873 : vector<8x16xi1>, vector<8x16xbf16>
    %875 = vector.extract_strided_slice %793 {offsets = [0, 5], sizes = [8, 16], strides = [1, 1]} : vector<8x36xbf16> to vector<8x16xbf16>
    %c-1_i32_255 = arith.constant -1 : i32
    %876 = vector.broadcast %c-1_i32_255 : i32 to vector<1x16xi32>
    %877 = arith.addi %796, %876 : vector<1x16xi32>
    %c0_i32_256 = arith.constant 0 : i32
    %878 = vector.broadcast %c0_i32_256 : i32 to vector<1x16xi32>
    %879 = arith.cmpi sge, %877, %878 : vector<1x16xi32>
    %c4_i32_257 = arith.constant 4 : i32
    %880 = vector.broadcast %c4_i32_257 : i32 to vector<1x16xi32>
    %881 = arith.cmpi slt, %877, %880 : vector<1x16xi32>
    %882 = arith.andi %879, %881 : vector<1x16xi1>
    %cst_258 = arith.constant 0.000000e+00 : f32
    %883 = arith.truncf %cst_258 : f32 to bf16
    %884 = vector.shape_cast %882 : vector<1x16xi1> to vector<1x16xi1>
    %885 = vector.broadcast %884 : vector<1x16xi1> to vector<8x16xi1>
    %886 = vector.broadcast %883 : bf16 to vector<8x16xbf16>
    %887 = arith.select %885, %875, %886 : vector<8x16xi1>, vector<8x16xbf16>
    %888 = vector.extract_strided_slice %793 {offsets = [0, 6], sizes = [8, 16], strides = [1, 1]} : vector<8x36xbf16> to vector<8x16xbf16>
    %c0_i32_259 = arith.constant 0 : i32
    %889 = vector.broadcast %c0_i32_259 : i32 to vector<1x16xi32>
    %890 = arith.addi %796, %889 : vector<1x16xi32>
    %c0_i32_260 = arith.constant 0 : i32
    %891 = vector.broadcast %c0_i32_260 : i32 to vector<1x16xi32>
    %892 = arith.cmpi sge, %890, %891 : vector<1x16xi32>
    %c4_i32_261 = arith.constant 4 : i32
    %893 = vector.broadcast %c4_i32_261 : i32 to vector<1x16xi32>
    %894 = arith.cmpi slt, %890, %893 : vector<1x16xi32>
    %895 = arith.andi %892, %894 : vector<1x16xi1>
    %cst_262 = arith.constant 0.000000e+00 : f32
    %896 = arith.truncf %cst_262 : f32 to bf16
    %897 = vector.shape_cast %895 : vector<1x16xi1> to vector<1x16xi1>
    %898 = vector.broadcast %897 : vector<1x16xi1> to vector<8x16xi1>
    %899 = vector.broadcast %896 : bf16 to vector<8x16xbf16>
    %900 = arith.select %898, %888, %899 : vector<8x16xi1>, vector<8x16xbf16>
    %901 = vector.extract_strided_slice %793 {offsets = [0, 7], sizes = [8, 16], strides = [1, 1]} : vector<8x36xbf16> to vector<8x16xbf16>
    %c1_i32_263 = arith.constant 1 : i32
    %902 = vector.broadcast %c1_i32_263 : i32 to vector<1x16xi32>
    %903 = arith.addi %796, %902 : vector<1x16xi32>
    %c0_i32_264 = arith.constant 0 : i32
    %904 = vector.broadcast %c0_i32_264 : i32 to vector<1x16xi32>
    %905 = arith.cmpi sge, %903, %904 : vector<1x16xi32>
    %c4_i32_265 = arith.constant 4 : i32
    %906 = vector.broadcast %c4_i32_265 : i32 to vector<1x16xi32>
    %907 = arith.cmpi slt, %903, %906 : vector<1x16xi32>
    %908 = arith.andi %905, %907 : vector<1x16xi1>
    %cst_266 = arith.constant 0.000000e+00 : f32
    %909 = arith.truncf %cst_266 : f32 to bf16
    %910 = vector.shape_cast %908 : vector<1x16xi1> to vector<1x16xi1>
    %911 = vector.broadcast %910 : vector<1x16xi1> to vector<8x16xi1>
    %912 = vector.broadcast %909 : bf16 to vector<8x16xbf16>
    %913 = arith.select %911, %901, %912 : vector<8x16xi1>, vector<8x16xbf16>
    %914 = vector.extract_strided_slice %793 {offsets = [0, 8], sizes = [8, 16], strides = [1, 1]} : vector<8x36xbf16> to vector<8x16xbf16>
    %c2_i32_267 = arith.constant 2 : i32
    %915 = vector.broadcast %c2_i32_267 : i32 to vector<1x16xi32>
    %916 = arith.addi %796, %915 : vector<1x16xi32>
    %c0_i32_268 = arith.constant 0 : i32
    %917 = vector.broadcast %c0_i32_268 : i32 to vector<1x16xi32>
    %918 = arith.cmpi sge, %916, %917 : vector<1x16xi32>
    %c4_i32_269 = arith.constant 4 : i32
    %919 = vector.broadcast %c4_i32_269 : i32 to vector<1x16xi32>
    %920 = arith.cmpi slt, %916, %919 : vector<1x16xi32>
    %921 = arith.andi %918, %920 : vector<1x16xi1>
    %cst_270 = arith.constant 0.000000e+00 : f32
    %922 = arith.truncf %cst_270 : f32 to bf16
    %923 = vector.shape_cast %921 : vector<1x16xi1> to vector<1x16xi1>
    %924 = vector.broadcast %923 : vector<1x16xi1> to vector<8x16xi1>
    %925 = vector.broadcast %922 : bf16 to vector<8x16xbf16>
    %926 = arith.select %924, %914, %925 : vector<8x16xi1>, vector<8x16xbf16>
    %927 = vector.extract_strided_slice %793 {offsets = [0, 8], sizes = [8, 16], strides = [1, 1]} : vector<8x36xbf16> to vector<8x16xbf16>
    %c-2_i32_271 = arith.constant -2 : i32
    %928 = vector.broadcast %c-2_i32_271 : i32 to vector<1x16xi32>
    %929 = arith.addi %796, %928 : vector<1x16xi32>
    %c0_i32_272 = arith.constant 0 : i32
    %930 = vector.broadcast %c0_i32_272 : i32 to vector<1x16xi32>
    %931 = arith.cmpi sge, %929, %930 : vector<1x16xi32>
    %c4_i32_273 = arith.constant 4 : i32
    %932 = vector.broadcast %c4_i32_273 : i32 to vector<1x16xi32>
    %933 = arith.cmpi slt, %929, %932 : vector<1x16xi32>
    %934 = arith.andi %931, %933 : vector<1x16xi1>
    %cst_274 = arith.constant 0.000000e+00 : f32
    %935 = arith.truncf %cst_274 : f32 to bf16
    %936 = vector.shape_cast %934 : vector<1x16xi1> to vector<1x16xi1>
    %937 = vector.broadcast %936 : vector<1x16xi1> to vector<8x16xi1>
    %938 = vector.broadcast %935 : bf16 to vector<8x16xbf16>
    %939 = arith.select %937, %927, %938 : vector<8x16xi1>, vector<8x16xbf16>
    %940 = vector.extract_strided_slice %793 {offsets = [0, 9], sizes = [8, 16], strides = [1, 1]} : vector<8x36xbf16> to vector<8x16xbf16>
    %c-1_i32_275 = arith.constant -1 : i32
    %941 = vector.broadcast %c-1_i32_275 : i32 to vector<1x16xi32>
    %942 = arith.addi %796, %941 : vector<1x16xi32>
    %c0_i32_276 = arith.constant 0 : i32
    %943 = vector.broadcast %c0_i32_276 : i32 to vector<1x16xi32>
    %944 = arith.cmpi sge, %942, %943 : vector<1x16xi32>
    %c4_i32_277 = arith.constant 4 : i32
    %945 = vector.broadcast %c4_i32_277 : i32 to vector<1x16xi32>
    %946 = arith.cmpi slt, %942, %945 : vector<1x16xi32>
    %947 = arith.andi %944, %946 : vector<1x16xi1>
    %cst_278 = arith.constant 0.000000e+00 : f32
    %948 = arith.truncf %cst_278 : f32 to bf16
    %949 = vector.shape_cast %947 : vector<1x16xi1> to vector<1x16xi1>
    %950 = vector.broadcast %949 : vector<1x16xi1> to vector<8x16xi1>
    %951 = vector.broadcast %948 : bf16 to vector<8x16xbf16>
    %952 = arith.select %950, %940, %951 : vector<8x16xi1>, vector<8x16xbf16>
    %953 = vector.extract_strided_slice %793 {offsets = [0, 10], sizes = [8, 16], strides = [1, 1]} : vector<8x36xbf16> to vector<8x16xbf16>
    %c0_i32_279 = arith.constant 0 : i32
    %954 = vector.broadcast %c0_i32_279 : i32 to vector<1x16xi32>
    %955 = arith.addi %796, %954 : vector<1x16xi32>
    %c0_i32_280 = arith.constant 0 : i32
    %956 = vector.broadcast %c0_i32_280 : i32 to vector<1x16xi32>
    %957 = arith.cmpi sge, %955, %956 : vector<1x16xi32>
    %c4_i32_281 = arith.constant 4 : i32
    %958 = vector.broadcast %c4_i32_281 : i32 to vector<1x16xi32>
    %959 = arith.cmpi slt, %955, %958 : vector<1x16xi32>
    %960 = arith.andi %957, %959 : vector<1x16xi1>
    %cst_282 = arith.constant 0.000000e+00 : f32
    %961 = arith.truncf %cst_282 : f32 to bf16
    %962 = vector.shape_cast %960 : vector<1x16xi1> to vector<1x16xi1>
    %963 = vector.broadcast %962 : vector<1x16xi1> to vector<8x16xi1>
    %964 = vector.broadcast %961 : bf16 to vector<8x16xbf16>
    %965 = arith.select %963, %953, %964 : vector<8x16xi1>, vector<8x16xbf16>
    %966 = vector.extract_strided_slice %793 {offsets = [0, 11], sizes = [8, 16], strides = [1, 1]} : vector<8x36xbf16> to vector<8x16xbf16>
    %c1_i32_283 = arith.constant 1 : i32
    %967 = vector.broadcast %c1_i32_283 : i32 to vector<1x16xi32>
    %968 = arith.addi %796, %967 : vector<1x16xi32>
    %c0_i32_284 = arith.constant 0 : i32
    %969 = vector.broadcast %c0_i32_284 : i32 to vector<1x16xi32>
    %970 = arith.cmpi sge, %968, %969 : vector<1x16xi32>
    %c4_i32_285 = arith.constant 4 : i32
    %971 = vector.broadcast %c4_i32_285 : i32 to vector<1x16xi32>
    %972 = arith.cmpi slt, %968, %971 : vector<1x16xi32>
    %973 = arith.andi %970, %972 : vector<1x16xi1>
    %cst_286 = arith.constant 0.000000e+00 : f32
    %974 = arith.truncf %cst_286 : f32 to bf16
    %975 = vector.shape_cast %973 : vector<1x16xi1> to vector<1x16xi1>
    %976 = vector.broadcast %975 : vector<1x16xi1> to vector<8x16xi1>
    %977 = vector.broadcast %974 : bf16 to vector<8x16xbf16>
    %978 = arith.select %976, %966, %977 : vector<8x16xi1>, vector<8x16xbf16>
    %979 = vector.extract_strided_slice %793 {offsets = [0, 12], sizes = [8, 16], strides = [1, 1]} : vector<8x36xbf16> to vector<8x16xbf16>
    %c2_i32_287 = arith.constant 2 : i32
    %980 = vector.broadcast %c2_i32_287 : i32 to vector<1x16xi32>
    %981 = arith.addi %796, %980 : vector<1x16xi32>
    %c0_i32_288 = arith.constant 0 : i32
    %982 = vector.broadcast %c0_i32_288 : i32 to vector<1x16xi32>
    %983 = arith.cmpi sge, %981, %982 : vector<1x16xi32>
    %c4_i32_289 = arith.constant 4 : i32
    %984 = vector.broadcast %c4_i32_289 : i32 to vector<1x16xi32>
    %985 = arith.cmpi slt, %981, %984 : vector<1x16xi32>
    %986 = arith.andi %983, %985 : vector<1x16xi1>
    %cst_290 = arith.constant 0.000000e+00 : f32
    %987 = arith.truncf %cst_290 : f32 to bf16
    %988 = vector.shape_cast %986 : vector<1x16xi1> to vector<1x16xi1>
    %989 = vector.broadcast %988 : vector<1x16xi1> to vector<8x16xi1>
    %990 = vector.broadcast %987 : bf16 to vector<8x16xbf16>
    %991 = arith.select %989, %979, %990 : vector<8x16xi1>, vector<8x16xbf16>
    %992 = vector.extract_strided_slice %793 {offsets = [0, 12], sizes = [8, 16], strides = [1, 1]} : vector<8x36xbf16> to vector<8x16xbf16>
    %c-2_i32_291 = arith.constant -2 : i32
    %993 = vector.broadcast %c-2_i32_291 : i32 to vector<1x16xi32>
    %994 = arith.addi %796, %993 : vector<1x16xi32>
    %c0_i32_292 = arith.constant 0 : i32
    %995 = vector.broadcast %c0_i32_292 : i32 to vector<1x16xi32>
    %996 = arith.cmpi sge, %994, %995 : vector<1x16xi32>
    %c4_i32_293 = arith.constant 4 : i32
    %997 = vector.broadcast %c4_i32_293 : i32 to vector<1x16xi32>
    %998 = arith.cmpi slt, %994, %997 : vector<1x16xi32>
    %999 = arith.andi %996, %998 : vector<1x16xi1>
    %cst_294 = arith.constant 0.000000e+00 : f32
    %1000 = arith.truncf %cst_294 : f32 to bf16
    %1001 = vector.shape_cast %999 : vector<1x16xi1> to vector<1x16xi1>
    %1002 = vector.broadcast %1001 : vector<1x16xi1> to vector<8x16xi1>
    %1003 = vector.broadcast %1000 : bf16 to vector<8x16xbf16>
    %1004 = arith.select %1002, %992, %1003 : vector<8x16xi1>, vector<8x16xbf16>
    %1005 = vector.extract_strided_slice %793 {offsets = [0, 13], sizes = [8, 16], strides = [1, 1]} : vector<8x36xbf16> to vector<8x16xbf16>
    %c-1_i32_295 = arith.constant -1 : i32
    %1006 = vector.broadcast %c-1_i32_295 : i32 to vector<1x16xi32>
    %1007 = arith.addi %796, %1006 : vector<1x16xi32>
    %c0_i32_296 = arith.constant 0 : i32
    %1008 = vector.broadcast %c0_i32_296 : i32 to vector<1x16xi32>
    %1009 = arith.cmpi sge, %1007, %1008 : vector<1x16xi32>
    %c4_i32_297 = arith.constant 4 : i32
    %1010 = vector.broadcast %c4_i32_297 : i32 to vector<1x16xi32>
    %1011 = arith.cmpi slt, %1007, %1010 : vector<1x16xi32>
    %1012 = arith.andi %1009, %1011 : vector<1x16xi1>
    %cst_298 = arith.constant 0.000000e+00 : f32
    %1013 = arith.truncf %cst_298 : f32 to bf16
    %1014 = vector.shape_cast %1012 : vector<1x16xi1> to vector<1x16xi1>
    %1015 = vector.broadcast %1014 : vector<1x16xi1> to vector<8x16xi1>
    %1016 = vector.broadcast %1013 : bf16 to vector<8x16xbf16>
    %1017 = arith.select %1015, %1005, %1016 : vector<8x16xi1>, vector<8x16xbf16>
    %1018 = vector.extract_strided_slice %793 {offsets = [0, 14], sizes = [8, 16], strides = [1, 1]} : vector<8x36xbf16> to vector<8x16xbf16>
    %c0_i32_299 = arith.constant 0 : i32
    %1019 = vector.broadcast %c0_i32_299 : i32 to vector<1x16xi32>
    %1020 = arith.addi %796, %1019 : vector<1x16xi32>
    %c0_i32_300 = arith.constant 0 : i32
    %1021 = vector.broadcast %c0_i32_300 : i32 to vector<1x16xi32>
    %1022 = arith.cmpi sge, %1020, %1021 : vector<1x16xi32>
    %c4_i32_301 = arith.constant 4 : i32
    %1023 = vector.broadcast %c4_i32_301 : i32 to vector<1x16xi32>
    %1024 = arith.cmpi slt, %1020, %1023 : vector<1x16xi32>
    %1025 = arith.andi %1022, %1024 : vector<1x16xi1>
    %cst_302 = arith.constant 0.000000e+00 : f32
    %1026 = arith.truncf %cst_302 : f32 to bf16
    %1027 = vector.shape_cast %1025 : vector<1x16xi1> to vector<1x16xi1>
    %1028 = vector.broadcast %1027 : vector<1x16xi1> to vector<8x16xi1>
    %1029 = vector.broadcast %1026 : bf16 to vector<8x16xbf16>
    %1030 = arith.select %1028, %1018, %1029 : vector<8x16xi1>, vector<8x16xbf16>
    %1031 = vector.extract_strided_slice %793 {offsets = [0, 15], sizes = [8, 16], strides = [1, 1]} : vector<8x36xbf16> to vector<8x16xbf16>
    %c1_i32_303 = arith.constant 1 : i32
    %1032 = vector.broadcast %c1_i32_303 : i32 to vector<1x16xi32>
    %1033 = arith.addi %796, %1032 : vector<1x16xi32>
    %c0_i32_304 = arith.constant 0 : i32
    %1034 = vector.broadcast %c0_i32_304 : i32 to vector<1x16xi32>
    %1035 = arith.cmpi sge, %1033, %1034 : vector<1x16xi32>
    %c4_i32_305 = arith.constant 4 : i32
    %1036 = vector.broadcast %c4_i32_305 : i32 to vector<1x16xi32>
    %1037 = arith.cmpi slt, %1033, %1036 : vector<1x16xi32>
    %1038 = arith.andi %1035, %1037 : vector<1x16xi1>
    %cst_306 = arith.constant 0.000000e+00 : f32
    %1039 = arith.truncf %cst_306 : f32 to bf16
    %1040 = vector.shape_cast %1038 : vector<1x16xi1> to vector<1x16xi1>
    %1041 = vector.broadcast %1040 : vector<1x16xi1> to vector<8x16xi1>
    %1042 = vector.broadcast %1039 : bf16 to vector<8x16xbf16>
    %1043 = arith.select %1041, %1031, %1042 : vector<8x16xi1>, vector<8x16xbf16>
    %1044 = vector.extract_strided_slice %793 {offsets = [0, 16], sizes = [8, 16], strides = [1, 1]} : vector<8x36xbf16> to vector<8x16xbf16>
    %c2_i32_307 = arith.constant 2 : i32
    %1045 = vector.broadcast %c2_i32_307 : i32 to vector<1x16xi32>
    %1046 = arith.addi %796, %1045 : vector<1x16xi32>
    %c0_i32_308 = arith.constant 0 : i32
    %1047 = vector.broadcast %c0_i32_308 : i32 to vector<1x16xi32>
    %1048 = arith.cmpi sge, %1046, %1047 : vector<1x16xi32>
    %c4_i32_309 = arith.constant 4 : i32
    %1049 = vector.broadcast %c4_i32_309 : i32 to vector<1x16xi32>
    %1050 = arith.cmpi slt, %1046, %1049 : vector<1x16xi32>
    %1051 = arith.andi %1048, %1050 : vector<1x16xi1>
    %cst_310 = arith.constant 0.000000e+00 : f32
    %1052 = arith.truncf %cst_310 : f32 to bf16
    %1053 = vector.shape_cast %1051 : vector<1x16xi1> to vector<1x16xi1>
    %1054 = vector.broadcast %1053 : vector<1x16xi1> to vector<8x16xi1>
    %1055 = vector.broadcast %1052 : bf16 to vector<8x16xbf16>
    %1056 = arith.select %1054, %1044, %1055 : vector<8x16xi1>, vector<8x16xbf16>
    %1057 = vector.extract_strided_slice %793 {offsets = [0, 16], sizes = [8, 16], strides = [1, 1]} : vector<8x36xbf16> to vector<8x16xbf16>
    %c-2_i32_311 = arith.constant -2 : i32
    %1058 = vector.broadcast %c-2_i32_311 : i32 to vector<1x16xi32>
    %1059 = arith.addi %796, %1058 : vector<1x16xi32>
    %c0_i32_312 = arith.constant 0 : i32
    %1060 = vector.broadcast %c0_i32_312 : i32 to vector<1x16xi32>
    %1061 = arith.cmpi sge, %1059, %1060 : vector<1x16xi32>
    %c4_i32_313 = arith.constant 4 : i32
    %1062 = vector.broadcast %c4_i32_313 : i32 to vector<1x16xi32>
    %1063 = arith.cmpi slt, %1059, %1062 : vector<1x16xi32>
    %1064 = arith.andi %1061, %1063 : vector<1x16xi1>
    %cst_314 = arith.constant 0.000000e+00 : f32
    %1065 = arith.truncf %cst_314 : f32 to bf16
    %1066 = vector.shape_cast %1064 : vector<1x16xi1> to vector<1x16xi1>
    %1067 = vector.broadcast %1066 : vector<1x16xi1> to vector<8x16xi1>
    %1068 = vector.broadcast %1065 : bf16 to vector<8x16xbf16>
    %1069 = arith.select %1067, %1057, %1068 : vector<8x16xi1>, vector<8x16xbf16>
    %1070 = vector.extract_strided_slice %793 {offsets = [0, 17], sizes = [8, 16], strides = [1, 1]} : vector<8x36xbf16> to vector<8x16xbf16>
    %c-1_i32_315 = arith.constant -1 : i32
    %1071 = vector.broadcast %c-1_i32_315 : i32 to vector<1x16xi32>
    %1072 = arith.addi %796, %1071 : vector<1x16xi32>
    %c0_i32_316 = arith.constant 0 : i32
    %1073 = vector.broadcast %c0_i32_316 : i32 to vector<1x16xi32>
    %1074 = arith.cmpi sge, %1072, %1073 : vector<1x16xi32>
    %c4_i32_317 = arith.constant 4 : i32
    %1075 = vector.broadcast %c4_i32_317 : i32 to vector<1x16xi32>
    %1076 = arith.cmpi slt, %1072, %1075 : vector<1x16xi32>
    %1077 = arith.andi %1074, %1076 : vector<1x16xi1>
    %cst_318 = arith.constant 0.000000e+00 : f32
    %1078 = arith.truncf %cst_318 : f32 to bf16
    %1079 = vector.shape_cast %1077 : vector<1x16xi1> to vector<1x16xi1>
    %1080 = vector.broadcast %1079 : vector<1x16xi1> to vector<8x16xi1>
    %1081 = vector.broadcast %1078 : bf16 to vector<8x16xbf16>
    %1082 = arith.select %1080, %1070, %1081 : vector<8x16xi1>, vector<8x16xbf16>
    %1083 = vector.extract_strided_slice %793 {offsets = [0, 18], sizes = [8, 16], strides = [1, 1]} : vector<8x36xbf16> to vector<8x16xbf16>
    %c0_i32_319 = arith.constant 0 : i32
    %1084 = vector.broadcast %c0_i32_319 : i32 to vector<1x16xi32>
    %1085 = arith.addi %796, %1084 : vector<1x16xi32>
    %c0_i32_320 = arith.constant 0 : i32
    %1086 = vector.broadcast %c0_i32_320 : i32 to vector<1x16xi32>
    %1087 = arith.cmpi sge, %1085, %1086 : vector<1x16xi32>
    %c4_i32_321 = arith.constant 4 : i32
    %1088 = vector.broadcast %c4_i32_321 : i32 to vector<1x16xi32>
    %1089 = arith.cmpi slt, %1085, %1088 : vector<1x16xi32>
    %1090 = arith.andi %1087, %1089 : vector<1x16xi1>
    %cst_322 = arith.constant 0.000000e+00 : f32
    %1091 = arith.truncf %cst_322 : f32 to bf16
    %1092 = vector.shape_cast %1090 : vector<1x16xi1> to vector<1x16xi1>
    %1093 = vector.broadcast %1092 : vector<1x16xi1> to vector<8x16xi1>
    %1094 = vector.broadcast %1091 : bf16 to vector<8x16xbf16>
    %1095 = arith.select %1093, %1083, %1094 : vector<8x16xi1>, vector<8x16xbf16>
    %1096 = vector.extract_strided_slice %793 {offsets = [0, 19], sizes = [8, 16], strides = [1, 1]} : vector<8x36xbf16> to vector<8x16xbf16>
    %c1_i32_323 = arith.constant 1 : i32
    %1097 = vector.broadcast %c1_i32_323 : i32 to vector<1x16xi32>
    %1098 = arith.addi %796, %1097 : vector<1x16xi32>
    %c0_i32_324 = arith.constant 0 : i32
    %1099 = vector.broadcast %c0_i32_324 : i32 to vector<1x16xi32>
    %1100 = arith.cmpi sge, %1098, %1099 : vector<1x16xi32>
    %c4_i32_325 = arith.constant 4 : i32
    %1101 = vector.broadcast %c4_i32_325 : i32 to vector<1x16xi32>
    %1102 = arith.cmpi slt, %1098, %1101 : vector<1x16xi32>
    %1103 = arith.andi %1100, %1102 : vector<1x16xi1>
    %cst_326 = arith.constant 0.000000e+00 : f32
    %1104 = arith.truncf %cst_326 : f32 to bf16
    %1105 = vector.shape_cast %1103 : vector<1x16xi1> to vector<1x16xi1>
    %1106 = vector.broadcast %1105 : vector<1x16xi1> to vector<8x16xi1>
    %1107 = vector.broadcast %1104 : bf16 to vector<8x16xbf16>
    %1108 = arith.select %1106, %1096, %1107 : vector<8x16xi1>, vector<8x16xbf16>
    %1109 = vector.extract_strided_slice %793 {offsets = [0, 20], sizes = [8, 16], strides = [1, 1]} : vector<8x36xbf16> to vector<8x16xbf16>
    %c2_i32_327 = arith.constant 2 : i32
    %1110 = vector.broadcast %c2_i32_327 : i32 to vector<1x16xi32>
    %1111 = arith.addi %796, %1110 : vector<1x16xi32>
    %c0_i32_328 = arith.constant 0 : i32
    %1112 = vector.broadcast %c0_i32_328 : i32 to vector<1x16xi32>
    %1113 = arith.cmpi sge, %1111, %1112 : vector<1x16xi32>
    %c4_i32_329 = arith.constant 4 : i32
    %1114 = vector.broadcast %c4_i32_329 : i32 to vector<1x16xi32>
    %1115 = arith.cmpi slt, %1111, %1114 : vector<1x16xi32>
    %1116 = arith.andi %1113, %1115 : vector<1x16xi1>
    %cst_330 = arith.constant 0.000000e+00 : f32
    %1117 = arith.truncf %cst_330 : f32 to bf16
    %1118 = vector.shape_cast %1116 : vector<1x16xi1> to vector<1x16xi1>
    %1119 = vector.broadcast %1118 : vector<1x16xi1> to vector<8x16xi1>
    %1120 = vector.broadcast %1117 : bf16 to vector<8x16xbf16>
    %1121 = arith.select %1119, %1109, %1120 : vector<8x16xi1>, vector<8x16xbf16>
    %1122 = tpu.concatenate %809, %822, %835, %848, %861, %874, %887, %900, %913, %926, %939, %952, %965, %978, %991, %1004 in 0 : vector<8x16xbf16>, vector<8x16xbf16>, vector<8x16xbf16>, vector<8x16xbf16>, vector<8x16xbf16>, vector<8x16xbf16>, vector<8x16xbf16>, vector<8x16xbf16>, vector<8x16xbf16>, vector<8x16xbf16>, vector<8x16xbf16>, vector<8x16xbf16>, vector<8x16xbf16>, vector<8x16xbf16>, vector<8x16xbf16>, vector<8x16xbf16> -> vector<128x16xbf16>
    %1123 = tpu.concatenate %1017, %1030, %1043, %1056, %1069, %1082, %1095, %1108, %1121 in 0 : vector<8x16xbf16>, vector<8x16xbf16>, vector<8x16xbf16>, vector<8x16xbf16>, vector<8x16xbf16>, vector<8x16xbf16>, vector<8x16xbf16>, vector<8x16xbf16>, vector<8x16xbf16> -> vector<72x16xbf16>
    %1124 = tpu.concatenate %1122, %1123 in 0 : vector<128x16xbf16>, vector<72x16xbf16> -> vector<200x16xbf16>
    %cst_331 = arith.constant dense<0.000000e+00> : vector<8x16xf32>
    %1125 = tpu.matmul %789, %1124, %cst_331 {dimension_numbers = #tpu.dot_dimension_numbers<[1], [0], [0], [1], [0, 0, 1, 1], [], []>} : vector<8x200xbf16>, vector<200x16xbf16>, vector<8x16xf32> -> vector<8x16xf32>
    %1126 = vector.broadcast %790 : vector<8x1xf32> to vector<8x16xf32>
    %1127 = arith.addf %1125, %1126 : vector<8x16xf32>
    %cst_332 = arith.constant 0.000000e+00 : f32
    %1128 = vector.broadcast %cst_332 : f32 to vector<8x16xf32>
    %1129 = arith.maximumf %1127, %1128 : vector<8x16xf32>
    %c0_333 = arith.constant 0 : index
    %c0_334 = arith.constant 0 : index
    %c0_335 = arith.constant 0 : index
    %1130 = vector.load %arg10[%c0_333, %c0_334, %c0_335] : memref<1x8x16xf32, #tpu.memory_space<vmem>>, vector<1x8x16xf32>
    %1131 = vector.shape_cast %1130 : vector<1x8x16xf32> to vector<8x16xf32>
    %1132 = vector.shape_cast %1129 : vector<8x16xf32> to vector<1x8x16xf32>
    tpu.vector_store %arg10[%c0_333, %c0_334, %c0_335], %1132 {strides = array<i32>} : memref<1x8x16xf32, #tpu.memory_space<vmem>>, vector<1x8x16xf32>,
    return
  }
  func.func @transform_0(%arg0: i32) -> (i32, i32, i32) {
    %c0_i32 = arith.constant 0 : i32
    %c0_i32_0 = arith.constant 0 : i32
    %c0_i32_1 = arith.constant 0 : i32
    return %arg0, %c0_i32, %c0_i32_0 : i32, i32, i32
  }
  func.func @transform_1(%arg0: i32) -> (i32, i32) {
    %c0_i32 = arith.constant 0 : i32
    %c0_i32_0 = arith.constant 0 : i32
    %c0_i32_1 = arith.constant 0 : i32
    return %c0_i32, %c0_i32_0 : i32, i32
  }
  func.func @transform_2(%arg0: i32) -> (i32, i32) {
    %c0_i32 = arith.constant 0 : i32
    %c0_i32_0 = arith.constant 0 : i32
    %c0_i32_1 = arith.constant 0 : i32
    return %c0_i32, %c0_i32_0 : i32, i32
  }
  func.func @transform_3(%arg0: i32) -> (i32, i32) {
    %c0_i32 = arith.constant 0 : i32
    %c0_i32_0 = arith.constant 0 : i32
    %c0_i32_1 = arith.constant 0 : i32
    return %c0_i32, %c0_i32_0 : i32, i32
  }
  func.func @transform_4(%arg0: i32) -> (i32, i32) {
    %c0_i32 = arith.constant 0 : i32
    %c0_i32_0 = arith.constant 0 : i32
    %c0_i32_1 = arith.constant 0 : i32
    return %c0_i32, %c0_i32_0 : i32, i32
  }
  func.func @transform_5(%arg0: i32) -> (i32, i32) {
    %c0_i32 = arith.constant 0 : i32
    %c0_i32_0 = arith.constant 0 : i32
    %c0_i32_1 = arith.constant 0 : i32
    return %c0_i32, %c0_i32_0 : i32, i32
  }
  func.func @transform_6(%arg0: i32) -> (i32, i32) {
    %c0_i32 = arith.constant 0 : i32
    %c0_i32_0 = arith.constant 0 : i32
    %c0_i32_1 = arith.constant 0 : i32
    return %c0_i32, %c0_i32_0 : i32, i32
  }
  func.func @transform_7(%arg0: i32) -> (i32, i32) {
    %c0_i32 = arith.constant 0 : i32
    %c0_i32_0 = arith.constant 0 : i32
    %c0_i32_1 = arith.constant 0 : i32
    return %c0_i32, %c0_i32_0 : i32, i32
  }
  func.func @transform_8(%arg0: i32) -> (i32, i32) {
    %c0_i32 = arith.constant 0 : i32
    %c0_i32_0 = arith.constant 0 : i32
    %c0_i32_1 = arith.constant 0 : i32
    return %c0_i32, %c0_i32_0 : i32, i32
  }
  func.func @transform_9(%arg0: i32) -> (i32, i32, i32) {
    %c0_i32 = arith.constant 0 : i32
    %c0_i32_0 = arith.constant 0 : i32
    %c0_i32_1 = arith.constant 0 : i32
    return %arg0, %c0_i32, %c0_i32_0 : i32, i32, i32
  }
}

</mosaic_0001>

<llo_original>
// kernel: lite_encoder_forward.1
$region0: #{lite_encoder_forward.1}
  #allocation0 [shape = 'u32[]', space=smem, size = 0x4, offset = 0x4, fixed_abs, tag = 'smem constant byte address 0x4 - core index']
  #allocation1 [shape = 'u32[72,128]{1,0:T(1,128)}', space=vmem, size = 0x9000, scoped, tag = 'internal scratch']
  %s0 = inlined_call_operand.vmem [shape: f32[2,29,256], index: 0, kind: input, shape index: {}]
  %s1 = inlined_call_operand.vmem [shape: bf16[5,800], index: 1, kind: input, shape index: {}]
  %s2 = inlined_call_operand.vmem [shape: f32[5,1], index: 2, kind: input, shape index: {}]
  %s3 = inlined_call_operand.vmem [shape: f32[5,16], index: 3, kind: input, shape index: {}]
  %s4 = inlined_call_operand.vmem [shape: f32[5,16], index: 4, kind: input, shape index: {}]
  %s5 = inlined_call_operand.vmem [shape: bf16[8,200], index: 5, kind: input, shape index: {}]
  %s6 = inlined_call_operand.vmem [shape: f32[8,1], index: 6, kind: input, shape index: {}]
  %s7 = inlined_call_operand.vmem [shape: bf16[8,200], index: 7, kind: input, shape index: {}]
  %s8 = inlined_call_operand.vmem [shape: f32[8,1], index: 8, kind: input, shape index: {}]
  %s9 = inlined_call_operand.vmem [shape: f32[2,8,16], index: 9, kind: output, shape index: {}]
  %s10 = sld [smem:[#allocation0]]
  $region69: #{lite_encoder_forward.1} parent=0
    _
  %s12 = ssub.s32 1, %s10
  %s13 = scalar_select 0, %s12, %s10
  loop: start=0, step=1, limit=4
  $region2: #{lite_encoder_forward.1} parent=0 // loop_pre_header
    _
  $region3: #{lite_encoder_forward.1} parent=0 // loop_header
    %s15 = sphi 0, %s19
    %p16 = scmp.ge.s32.totalorder %s15, 4
    %s25 = sphi 0, %s27
    %s28 = sphi 0, %s25
    %s29 = sphi 0, %s28
    %s45 = sphi 0, %s29
    %s49 = sphi 0, %s49
    %s51 = sphi 0, %s49
    %s52 = sphi 0, %s51
    %s66 = sphi 0, %s52
    %s70 = sphi 0, %s70
    %s72 = sphi 0, %s70
    %s73 = sphi 0, %s72
    %s87 = sphi 0, %s73
    %s91 = sphi 0, %s91
    %s93 = sphi 0, %s91
    %s94 = sphi 0, %s93
    %s108 = sphi 0, %s94
    %s112 = sphi 0, %s112
    %s114 = sphi 0, %s112
    %s115 = sphi 0, %s114
    %s129 = sphi 0, %s115
    %s133 = sphi 0, %s133
    %s135 = sphi 0, %s133
    %s136 = sphi 0, %s135
    %s150 = sphi 0, %s136
    %s154 = sphi 0, %s154
    %s156 = sphi 0, %s154
    %s157 = sphi 0, %s156
    %s171 = sphi 0, %s157
    %s175 = sphi 0, %s175
    %s177 = sphi 0, %s175
    %s178 = sphi 0, %s177
    %s192 = sphi 0, %s178
    %s196 = sphi 0, %s196
    %s198 = sphi 0, %s196
    %s199 = sphi 0, %s198
    %s213 = sphi 0, %s199
    %s219 = sphi 0, %s221
    %s222 = sphi 0, %s219
    %s223 = sphi 0, %s222
    %s239 = sphi 0, %s223
  $region4: #{lite_encoder_forward.1} parent=0 // loop_header_branch
    %18 = sbr.rel (%p16) target = $region8
  $region5: #{lite_encoder_forward.1} parent=0 // loop_body
    %s20 = ssub.s32 %s15, 1
    %s21 = ssub.s32 %s15, 2
    %s22 = sadd.s32 %s15, 1
    %s23 = ssub.s32 %s15, %s22
    %p24 = scmp.eq.s32.totalorder %s23, 0
    %s26 = sadd.s32 %s25, 1
    %s27 = scalar_select %p24, %s25, %s26
    %p30 = pneg %p24
    %p31 = scmp.eq.s32.totalorder %s15, 1
    %p32 = por %p30, %p31
    %p33 = scmp.ne.s32.totalorder %s25, %s28
    %p34 = scmp.eq.s32.totalorder %s15, 0
    %p35 = por %p33, %p34
    %p36 = scmp.ne.s32.totalorder %s25, %s28
    %p37 = scmp.eq.s32.totalorder %s20, 1
    %p38 = por %p36, %p37
    %p39 = scmp.ne.s32.totalorder %s28, %s29
    %p40 = scmp.eq.s32.totalorder %s20, 0
    %p41 = por %p39, %p40
    %p42 = scmp.ne.s32.totalorder %s28, %s29
    %p43 = scmp.eq.s32.totalorder %s21, 1
    %p44 = por %p42, %p43
    %p46 = scmp.ne.s32.totalorder %s29, %s45
    %p47 = scmp.eq.s32.totalorder %s21, 0
    %p48 = por %p46, %p47
    %s50 = sadd.s32 %s49, 1
    %p53 = scmp.eq.s32.totalorder %s15, 1
    %p54 = scmp.ne.s32.totalorder %s49, %s51
    %p55 = scmp.eq.s32.totalorder %s15, 0
    %p56 = por %p54, %p55
    %p57 = scmp.ne.s32.totalorder %s49, %s51
    %p58 = scmp.eq.s32.totalorder %s20, 1
    %p59 = por %p57, %p58
    %p60 = scmp.ne.s32.totalorder %s51, %s52
    %p61 = scmp.eq.s32.totalorder %s20, 0
    %p62 = por %p60, %p61
    %p63 = scmp.ne.s32.totalorder %s51, %s52
    %p64 = scmp.eq.s32.totalorder %s21, 1
    %p65 = por %p63, %p64
    %p67 = scmp.ne.s32.totalorder %s52, %s66
    %p68 = scmp.eq.s32.totalorder %s21, 0
    %p69 = por %p67, %p68
    %s71 = sadd.s32 %s70, 1
    %p74 = scmp.eq.s32.totalorder %s15, 1
    %p75 = scmp.ne.s32.totalorder %s70, %s72
    %p76 = scmp.eq.s32.totalorder %s15, 0
    %p77 = por %p75, %p76
    %p78 = scmp.ne.s32.totalorder %s70, %s72
    %p79 = scmp.eq.s32.totalorder %s20, 1
    %p80 = por %p78, %p79
    %p81 = scmp.ne.s32.totalorder %s72, %s73
    %p82 = scmp.eq.s32.totalorder %s20, 0
    %p83 = por %p81, %p82
    %p84 = scmp.ne.s32.totalorder %s72, %s73
    %p85 = scmp.eq.s32.totalorder %s21, 1
    %p86 = por %p84, %p85
    %p88 = scmp.ne.s32.totalorder %s73, %s87
    %p89 = scmp.eq.s32.totalorder %s21, 0
    %p90 = por %p88, %p89
    %s92 = sadd.s32 %s91, 1
    %p95 = scmp.eq.s32.totalorder %s15, 1
    %p96 = scmp.ne.s32.totalorder %s91, %s93
    %p97 = scmp.eq.s32.totalorder %s15, 0
    %p98 = por %p96, %p97
    %p99 = scmp.ne.s32.totalorder %s91, %s93
    %p100 = scmp.eq.s32.totalorder %s20, 1
    %p101 = por %p99, %p100
    %p102 = scmp.ne.s32.totalorder %s93, %s94
    %p103 = scmp.eq.s32.totalorder %s20, 0
    %p104 = por %p102, %p103
    %p105 = scmp.ne.s32.totalorder %s93, %s94
    %p106 = scmp.eq.s32.totalorder %s21, 1
    %p107 = por %p105, %p106
    %p109 = scmp.ne.s32.totalorder %s94, %s108
    %p110 = scmp.eq.s32.totalorder %s21, 0
    %p111 = por %p109, %p110
    %s113 = sadd.s32 %s112, 1
    %p116 = scmp.eq.s32.totalorder %s15, 1
    %p117 = scmp.ne.s32.totalorder %s112, %s114
    %p118 = scmp.eq.s32.totalorder %s15, 0
    %p119 = por %p117, %p118
    %p120 = scmp.ne.s32.totalorder %s112, %s114
    %p121 = scmp.eq.s32.totalorder %s20, 1
    %p122 = por %p120, %p121
    %p123 = scmp.ne.s32.totalorder %s114, %s115
    %p124 = scmp.eq.s32.totalorder %s20, 0
    %p125 = por %p123, %p124
    %p126 = scmp.ne.s32.totalorder %s114, %s115
    %p127 = scmp.eq.s32.totalorder %s21, 1
    %p128 = por %p126, %p127
    %p130 = scmp.ne.s32.totalorder %s115, %s129
    %p131 = scmp.eq.s32.totalorder %s21, 0
    %p132 = por %p130, %p131
    %s134 = sadd.s32 %s133, 1
    %p137 = scmp.eq.s32.totalorder %s15, 1
    %p138 = scmp.ne.s32.totalorder %s133, %s135
    %p139 = scmp.eq.s32.totalorder %s15, 0
    %p140 = por %p138, %p139
    %p141 = scmp.ne.s32.totalorder %s133, %s135
    %p142 = scmp.eq.s32.totalorder %s20, 1
    %p143 = por %p141, %p142
    %p144 = scmp.ne.s32.totalorder %s135, %s136
    %p145 = scmp.eq.s32.totalorder %s20, 0
    %p146 = por %p144, %p145
    %p147 = scmp.ne.s32.totalorder %s135, %s136
    %p148 = scmp.eq.s32.totalorder %s21, 1
    %p149 = por %p147, %p148
    %p151 = scmp.ne.s32.totalorder %s136, %s150
    %p152 = scmp.eq.s32.totalorder %s21, 0
    %p153 = por %p151, %p152
    %s155 = sadd.s32 %s154, 1
    %p158 = scmp.eq.s32.totalorder %s15, 1
    %p159 = scmp.ne.s32.totalorder %s154, %s156
    %p160 = scmp.eq.s32.totalorder %s15, 0
    %p161 = por %p159, %p160
    %p162 = scmp.ne.s32.totalorder %s154, %s156
    %p163 = scmp.eq.s32.totalorder %s20, 1
    %p164 = por %p162, %p163
    %p165 = scmp.ne.s32.totalorder %s156, %s157
    %p166 = scmp.eq.s32.totalorder %s20, 0
    %p167 = por %p165, %p166
    %p168 = scmp.ne.s32.totalorder %s156, %s157
    %p169 = scmp.eq.s32.totalorder %s21, 1
    %p170 = por %p168, %p169
    %p172 = scmp.ne.s32.totalorder %s157, %s171
    %p173 = scmp.eq.s32.totalorder %s21, 0
    %p174 = por %p172, %p173
    %s176 = sadd.s32 %s175, 1
    %p179 = scmp.eq.s32.totalorder %s15, 1
    %p180 = scmp.ne.s32.totalorder %s175, %s177
    %p181 = scmp.eq.s32.totalorder %s15, 0
    %p182 = por %p180, %p181
    %p183 = scmp.ne.s32.totalorder %s175, %s177
    %p184 = scmp.eq.s32.totalorder %s20, 1
    %p185 = por %p183, %p184
    %p186 = scmp.ne.s32.totalorder %s177, %s178
    %p187 = scmp.eq.s32.totalorder %s20, 0
    %p188 = por %p186, %p187
    %p189 = scmp.ne.s32.totalorder %s177, %s178
    %p190 = scmp.eq.s32.totalorder %s21, 1
    %p191 = por %p189, %p190
    %p193 = scmp.ne.s32.totalorder %s178, %s192
    %p194 = scmp.eq.s32.totalorder %s21, 0
    %p195 = por %p193, %p194
    %s197 = sadd.s32 %s196, 1
    %p200 = scmp.eq.s32.totalorder %s15, 1
    %p201 = scmp.ne.s32.totalorder %s196, %s198
    %p202 = scmp.eq.s32.totalorder %s15, 0
    %p203 = por %p201, %p202
    %p204 = scmp.ne.s32.totalorder %s196, %s198
    %p205 = scmp.eq.s32.totalorder %s20, 1
    %p206 = por %p204, %p205
    %p207 = scmp.ne.s32.totalorder %s198, %s199
    %p208 = scmp.eq.s32.totalorder %s20, 0
    %p209 = por %p207, %p208
    %p210 = scmp.ne.s32.totalorder %s198, %s199
    %p211 = scmp.eq.s32.totalorder %s21, 1
    %p212 = por %p210, %p211
    %p214 = scmp.ne.s32.totalorder %s199, %s213
    %p215 = scmp.eq.s32.totalorder %s21, 0
    %p216 = por %p214, %p215
    %s217 = ssub.s32 %s15, %s22
    %p218 = scmp.eq.s32.totalorder %s217, 0
    %s220 = sadd.s32 %s219, 1
    %s221 = scalar_select %p218, %s219, %s220
    %p224 = pneg %p218
    %p225 = scmp.eq.s32.totalorder %s15, 1
    %p226 = por %p224, %p225
    %p227 = scmp.ne.s32.totalorder %s219, %s222
    %p228 = scmp.eq.s32.totalorder %s15, 0
    %p229 = por %p227, %p228
    %p230 = scmp.ne.s32.totalorder %s219, %s222
    %p231 = scmp.eq.s32.totalorder %s20, 1
    %p232 = por %p230, %p231
    %p233 = scmp.ne.s32.totalorder %s222, %s223
    %p234 = scmp.eq.s32.totalorder %s20, 0
    %p235 = por %p233, %p234
    %p236 = scmp.ne.s32.totalorder %s222, %s223
    %p237 = scmp.eq.s32.totalorder %s21, 1
    %p238 = por %p236, %p237
    %p240 = scmp.ne.s32.totalorder %s223, %s239
    %p241 = scmp.eq.s32.totalorder %s21, 0
    %p242 = por %p240, %p241
    %p243 = scmp.le.s32.totalorder 1, %s15
    %p244 = scmp.lt.s32.totalorder %s15, 3
    %p245 = pnand %p243, %p244
    %p246 = pneg %p245
    // Predicated region
    $region9: #{lite_encoder_forward.1} parent=5 // pred_check
      _
    $region10: #{lite_encoder_forward.1} parent=5 // pred_check_branch
      %248 = sbr.rel (%p245) target = $region12
    $region11: #{lite_encoder_forward.1} parent=5 // pred_region
      %s249 = ssub.s32 %s15, 1
      // Predicated region
      $region13: #{lite_encoder_forward.1} parent=11 // pred_check
        %p250 = pneg %p62
      $region14: #{lite_encoder_forward.1} parent=11 // pred_check_branch
        %252 = sbr.rel (%p250) target = $region16
      $region15: #{lite_encoder_forward.1} parent=11 // pred_region
        _
      $region16: #{lite_encoder_forward.1} parent=11 // pred_fallthru
        _
      // Predicated region
      $region17: #{lite_encoder_forward.1} parent=11 // pred_check
        %p253 = pneg %p83
      $region18: #{lite_encoder_forward.1} parent=11 // pred_check_branch
        %255 = sbr.rel (%p253) target = $region20
      $region19: #{lite_encoder_forward.1} parent=11 // pred_region
        _
      $region20: #{lite_encoder_forward.1} parent=11 // pred_fallthru
        _
      // Predicated region
      $region21: #{lite_encoder_forward.1} parent=11 // pred_check
        %p256 = pneg %p104
      $region22: #{lite_encoder_forward.1} parent=11 // pred_check_branch
        %258 = sbr.rel (%p256) target = $region24
      $region23: #{lite_encoder_forward.1} parent=11 // pred_region
        _
      $region24: #{lite_encoder_forward.1} parent=11 // pred_fallthru
        _
      // Predicated region
      $region25: #{lite_encoder_forward.1} parent=11 // pred_check
        %p259 = pneg %p125
      $region26: #{lite_encoder_forward.1} parent=11 // pred_check_branch
        %261 = sbr.rel (%p259) target = $region28
      $region27: #{lite_encoder_forward.1} parent=11 // pred_region
        _
      $region28: #{lite_encoder_forward.1} parent=11 // pred_fallthru
        _
      // Predicated region
      $region29: #{lite_encoder_forward.1} parent=11 // pred_check
        %p262 = pneg %p146
      $region30: #{lite_encoder_forward.1} parent=11 // pred_check_branch
        %264 = sbr.rel (%p262) target = $region32
      $region31: #{lite_encoder_forward.1} parent=11 // pred_region
        _
      $region32: #{lite_encoder_forward.1} parent=11 // pred_fallthru
        _
      // Predicated region
      $region33: #{lite_encoder_forward.1} parent=11 // pred_check
        %p265 = pneg %p167
      $region34: #{lite_encoder_forward.1} parent=11 // pred_check_branch
        %267 = sbr.rel (%p265) target = $region36
      $region35: #{lite_encoder_forward.1} parent=11 // pred_region
        _
      $region36: #{lite_encoder_forward.1} parent=11 // pred_fallthru
        _
      // Predicated region
      $region37: #{lite_encoder_forward.1} parent=11 // pred_check
        %p268 = pneg %p188
      $region38: #{lite_encoder_forward.1} parent=11 // pred_check_branch
        %270 = sbr.rel (%p268) target = $region40
      $region39: #{lite_encoder_forward.1} parent=11 // pred_region
        _
      $region40: #{lite_encoder_forward.1} parent=11 // pred_fallthru
        _
      // Predicated region
      $region41: #{lite_encoder_forward.1} parent=11 // pred_check
        %p271 = pneg %p209
      $region42: #{lite_encoder_forward.1} parent=11 // pred_check_branch
        %273 = sbr.rel (%p271) target = $region44
      $region43: #{lite_encoder_forward.1} parent=11 // pred_region
        _
      $region44: #{lite_encoder_forward.1} parent=11 // pred_fallthru
        _
    $region12: #{lite_encoder_forward.1} parent=5 // pred_fallthru
      _
    %p274 = scmp.lt.s32.totalorder %s15, 2
    // Predicated region
    $region45: #{lite_encoder_forward.1} parent=5 // pred_check
      %p275 = pneg %p274
    $region46: #{lite_encoder_forward.1} parent=5 // pred_check_branch
      %277 = sbr.rel (%p275) target = $region48
    $region47: #{lite_encoder_forward.1} parent=5 // pred_region
      // Predicated region
      $region49: #{lite_encoder_forward.1} parent=47 // pred_check
        %p278 = pneg %p35
      $region50: #{lite_encoder_forward.1} parent=47 // pred_check_branch
        %280 = sbr.rel (%p278) target = $region52
      $region51: #{lite_encoder_forward.1} parent=47 // pred_region
        %p281 = scmp.lt.s32.totalorder %s15, 1
        %s282 = scalar_select %p281, %s15, 1
        %s283 = smul.addr %s282, 8
        %s284 = smul.addr %s283, 8
        %s285 = scalar_lea.vmem %s0, %s284
      $region52: #{lite_encoder_forward.1} parent=47 // pred_fallthru
        _
    $region48: #{lite_encoder_forward.1} parent=5 // pred_fallthru
      _
    %p286 = scmp.le.s32.totalorder 1, %s15
    %p287 = scmp.lt.s32.totalorder %s15, 3
    %p288 = pnand %p286, %p287
    %p289 = pneg %p288
    // Predicated region
    $region53: #{lite_encoder_forward.1} parent=5 // pred_check
      _
    $region54: #{lite_encoder_forward.1} parent=5 // pred_check_branch
      %291 = sbr.rel (%p288) target = $region56
    $region55: #{lite_encoder_forward.1} parent=5 // pred_region
      %s292 = ssub.s32 %s15, 1
      %p293 = scmp.lt.s32.totalorder %s20, 1
      %s294 = scalar_select %p293, %s20, 1
      %s295 = smul.addr %s294, 8
      %s296 = smul.addr %s295, 8
      %s297 = scalar_lea.vmem %s0, %s296
      %p298 = pneg %p41
      %p299 = pneg %p38
      %p300 = pneg %p62
      %p301 = pneg %p59
      %p302 = pneg %p83
      %p303 = pneg %p80
      %p304 = pneg %p104
      %p305 = pneg %p101
      %p306 = pneg %p125
      %p307 = pneg %p122
      %p308 = pneg %p146
      %p309 = pneg %p143
      %p310 = pneg %p167
      %p311 = pneg %p164
      %p312 = pneg %p188
      %p313 = pneg %p185
      %p314 = pneg %p209
      %p315 = pneg %p206
      %p316 = pneg %p235
      %p317 = pneg %p232
      %p318 = scmp.lt.s32.totalorder %s20, 1
      %s319 = scalar_select %p318, %s20, 1
      %s320 = smul.addr %s319, 8
      %s321 = scalar_lea.vmem %s9, %s320
      %p322 = scmp.lt.s32.totalorder %s20, 1
      %s323 = scalar_select %p322, %s20, 1
      %s324 = smul.addr %s323, 8
      %s325 = smul.addr %s324, 8
      %s326 = scalar_lea.vmem %s0, %s325
      %p327 = scmp.lt.s32.totalorder %s20, 1
      %s328 = scalar_select %p327, %s20, 1
      %s329 = smul.addr %s328, 8
      %s330 = scalar_lea.vmem %s9, %s329
      %v334 = vld [vmem:[%s326] sm:$0xff]
      %v335 = vld [vmem:[%s326 + $0x8] sm:$0xff]
      %v336 = vld [vmem:[%s326 + $0x10] sm:$0xff]
      %v337 = vld [vmem:[%s326 + $0x18] sm:$0xff]
      %v338 = vld [vmem:[%s326 + $0x20] sm:$0xff]
      %v339 = vld [vmem:[%s326 + $0x28] sm:$0xff]
      %v340 = vld [vmem:[%s326 + $0x30] sm:$0x1f]
      %v341 = vld [vmem:[%s326 + $0x38] sm:$0x1f]
      %vm342 = vcmask 1044480
      %v343 = vsel %vm342, %v340, 0.0
      %v344 = vsel %vm342, %v341, 0.0
      %v345 = vadd.f32 %v334, %v335
      %346 = vadd.xlane.f32.xlu0 %v345
      %v347 = vpop.xlane.xlu0 %346
      %v348 = vadd.f32 %v336, %v337
      %349 = vadd.xlane.f32.xlu0 %v348
      %v350 = vpop.xlane.xlu0 %349
      %v351 = vadd.f32 %v338, %v339
      %352 = vadd.xlane.f32.xlu0 %v351
      %v353 = vpop.xlane.xlu0 %352
      %v354 = vadd.f32 %v343, %v344
      %355 = vadd.xlane.f32.xlu0 %v354
      %v356 = vpop.xlane.xlu0 %355
      %v357 = vrcp.pop 256.0
      %v358 = vmul.f32 256.0, %v357
      %v359 = vsub.f32 1.0, %v358
      %v360 = vmul.f32 %v357, %v359
      %v361 = vadd.f32 %v357, %v360
      %vm362 = vweird.f32 %v357
      %v363 = vsel %vm362, %v357, %v361
      %v364 = vmul.f32 %v347, %v363
      %v365 = vmul.f32 %v350, %v363
      %v366 = vmul.f32 %v353, %v363
      %v367 = vmul.f32 %v356, %v363
      %v368 = vsub.f32 %v334, %v364
      %v369 = vsub.f32 %v335, %v364
      %v370 = vsub.f32 %v336, %v365
      %v371 = vsub.f32 %v337, %v365
      %v372 = vsub.f32 %v338, %v366
      %v373 = vsub.f32 %v339, %v366
      %v374 = vsub.f32 %v343, %v367
      %v375 = vsub.f32 %v344, %v367
      %v376 = vmul.f32 %v368, %v368
      %v377 = vmul.f32 %v369, %v369
      %v378 = vmul.f32 %v370, %v370
      %v379 = vmul.f32 %v371, %v371
      %v380 = vmul.f32 %v372, %v372
      %v381 = vmul.f32 %v373, %v373
      %v382 = vmul.f32 %v374, %v374
      %v383 = vmul.f32 %v375, %v375
      %v384 = vadd.f32 %v376, %v377
      %385 = vadd.xlane.f32.xlu0 %v384
      %v386 = vpop.xlane.xlu0 %385
      %v387 = vadd.f32 %v378, %v379
      %388 = vadd.xlane.f32.xlu0 %v387
      %v389 = vpop.xlane.xlu0 %388
      %v390 = vadd.f32 %v380, %v381
      %391 = vadd.xlane.f32.xlu0 %v390
      %v392 = vpop.xlane.xlu0 %391
      %v393 = vadd.f32 %v382, %v383
      %394 = vadd.xlane.f32.xlu0 %v393
      %v395 = vpop.xlane.xlu0 %394
      %v396 = vmul.f32 %v386, %v363
      %v397 = vmul.f32 %v389, %v363
      %v398 = vmul.f32 %v392, %v363
      %v399 = vmul.f32 %v395, %v363
      %v400 = vadd.f32 %v396, 1e-30
      %v401 = vadd.f32 %v397, 1e-30
      %v402 = vadd.f32 %v398, 1e-30
      %v403 = vadd.f32 %v399, 1e-30
      %v404 = vrsqrt.pop %v400
      %v405 = vmul.f32 %v404, %v400
      %v406 = vmul.f32 %v405, %v404
      %v407 = vmul.f32 0.5, %v406
      %v408 = vsub.f32 1.5, %v407
      %v409 = vmul.f32 %v404, %v408
      %vm410 = vweird.f32 %v400
      %vm411 = vweird.f32 %v404
      %vm412 = vmor %vm410, %vm411
      %v413 = vsel %vm412, %v404, %v409
      %v414 = vrsqrt.pop %v401
      %v415 = vmul.f32 %v414, %v401
      %v416 = vmul.f32 %v415, %v414
      %v417 = vmul.f32 0.5, %v416
      %v418 = vsub.f32 1.5, %v417
      %v419 = vmul.f32 %v414, %v418
      %vm420 = vweird.f32 %v401
      %vm421 = vweird.f32 %v414
      %vm422 = vmor %vm420, %vm421
      %v423 = vsel %vm422, %v414, %v419
      %v424 = vrsqrt.pop %v402
      %v425 = vmul.f32 %v424, %v402
      %v426 = vmul.f32 %v425, %v424
      %v427 = vmul.f32 0.5, %v426
      %v428 = vsub.f32 1.5, %v427
      %v429 = vmul.f32 %v424, %v428
      %vm430 = vweird.f32 %v402
      %vm431 = vweird.f32 %v424
      %vm432 = vmor %vm430, %vm431
      %v433 = vsel %vm432, %v424, %v429
      %v434 = vrsqrt.pop %v403
      %v435 = vmul.f32 %v434, %v403
      %v436 = vmul.f32 %v435, %v434
      %v437 = vmul.f32 0.5, %v436
      %v438 = vsub.f32 1.5, %v437
      %v439 = vmul.f32 %v434, %v438
      %vm440 = vweird.f32 %v403
      %vm441 = vweird.f32 %v434
      %vm442 = vmor %vm440, %vm441
      %v443 = vsel %vm442, %v434, %v439
      %v444 = vmul.f32 %v368, %v413
      %v445 = vmul.f32 %v369, %v413
      %v446 = vmul.f32 %v370, %v423
      %v447 = vmul.f32 %v371, %v423
      %v448 = vmul.f32 %v372, %v433
      %v449 = vmul.f32 %v373, %v433
      %v450 = vmul.f32 %v374, %v443
      %v451 = vmul.f32 %v375, %v443
      %v452 = vlaneseq
      %v453 = vshrl.u32 %v452, 7
      %v454 = vadd.s32 %v453, 8
      %v455 = vadd.s32 %v453, 16
      %v456 = vadd.s32 %v453, 24
      %vm457 = vcmp.ge.s32.totalorder %v453, 27
      %vm458 = vcmp.ge.s32.totalorder %v454, 27
      %vm459 = vcmp.ge.s32.totalorder %v455, 27
      %vm460 = vcmp.ge.s32.totalorder %v456, 27
      %v461 = vsel %vm457, 1, 0
      %v462 = vsel %vm458, 1, 0
      %v463 = vsel %vm459, 1, 0
      %v464 = vsel %vm460, 1, 0
      %vm465 = vcmp.eq.s32.totalorder %v461, 1
      %vm466 = vcmp.eq.s32.totalorder %v462, 1
      %vm467 = vcmp.eq.s32.totalorder %v463, 1
      %vm468 = vcmp.eq.s32.totalorder %v464, 1
      %v469 = vsel %vm465, %v334, %v444
      %v470 = vsel %vm465, %v335, %v445
      %v471 = vsel %vm466, %v336, %v446
      %v472 = vsel %vm466, %v337, %v447
      %v473 = vsel %vm467, %v338, %v448
      %v474 = vsel %vm467, %v339, %v449
      %v475 = vsel %vm468, %v343, %v450
      %v476 = vsel %vm468, %v344, %v451
      %v477 = vld [vmem:[%s1] sm:$0x77]
      %v478 = vld [vmem:[%s1 + $0x8] sm:$0x77]
      %v479 = vld [vmem:[%s1 + $0x10] sm:$0x77]
      %v480 = vld [vmem:[%s1 + $0x18] sm:$0x7]
      %v481 = vld [vmem:[%s2] sm:$0x1f]
      %v482 = vpack.c.bf16 %v470, %v469
      %v483 = vpack.c.bf16 %v472, %v471
      %v484 = vpack.c.bf16 %v474, %v473
      %v485 = vpack.c.bf16 %v476, %v475
      %v490 = vunpack.c.l.b16 %v482
      %v491 = vunpack.c.h.b16 %v482
      %v492 = vunpack.c.l.b16 %v483
      %v493 = vunpack.c.h.b16 %v483
      %v494 = vunpack.c.l.b16 %v484
      %v495 = vunpack.c.h.b16 %v484
      %v496 = vunpack.c.l.b16 %v485
      %v497 = vunpack.c.h.b16 %v485
      %v498 = vpack.c.b16 %v492, %v490
      %v499 = vpack.c.b16 %v493, %v491
      %v500 = vpack.c.b16 %v496, %v494
      %v501 = vpack.c.b16 %v497, %v495
      %502 = vrot.lane.b32.xlu0 %v498, 34
      %v503 = vpop.permute.xlu0 %502
      %504 = vrot.lane.b32.xlu0 %v499, 34
      %v505 = vpop.permute.xlu0 %504
      %506 = vrot.lane.b32.xlu0 %v500, 34
      %v507 = vpop.permute.xlu0 %506
      %508 = vrot.lane.b32.xlu0 %v501, 34
      %v509 = vpop.permute.xlu0 %508
      %vm510 = vcmask 277504
      %v511 = vsel %vm510, %v503, %v505
      %v512 = vsel %vm510, %v507, %v509
      %vm515 = vcmask 277504
      %v518 = vsel %vm515, 0, %v503
      %v521 = vsel %vm515, 0, %v507
      %v524 = vsel %vm515, %v505, 0
      %v527 = vsel %vm515, %v509, 0
      %v529 = vlaneseq
      %v530 = vand.u32 %v529, 127
      %v531 = vadd.s32 %v530, 128
      %v532 = vand.u32 %v530, 15
      %v533 = vand.u32 %v531, 15
      %v534 = vadd.s32 %v532, 4294967294
      %v535 = vadd.s32 %v533, 4294967294
      %vm536 = vcmp.ge.s32.totalorder %v534, 0
      %vm537 = vcmp.ge.s32.totalorder %v535, 0
      %vm538 = vcmp.lt.s32.totalorder %v534, 16
      %vm539 = vcmp.lt.s32.totalorder %v535, 16
      %vm540 = vmand %vm536, %vm538
      %vm541 = vmand %vm537, %vm539
      %v542 = vsel %vm540, 1, 0
      %v543 = vsel %vm541, 1, 0
      %vm544 = vcmp.eq.s32.totalorder %v542, 1
      %vm545 = vcmp.eq.s32.totalorder %v543, 1
      %vm546 = vmpackc.low %vm545, %vm544
      %v547 = vsel %vm546, 65537, 0
      %v548 = vperm.slane %v547, 0
      %v549 = vperm.slane %v547, 4
      %v550 = vunpack.c.l.b16 %v548
      %v551 = vunpack.c.h.b16 %v548
      %v552 = vunpack.c.l.b16 0
      %v553 = vunpack.c.h.b16 0
      %vm554 = vcmp.ne.s32.totalorder %v550, %v552
      %vm555 = vcmp.ne.s32.totalorder %v551, %v553
      %vm556 = vmpackc.low %vm555, %vm554
      %v557 = vunpack.c.l.b16 %v549
      %v558 = vunpack.c.h.b16 %v549
      %v559 = vunpack.c.l.b16 0
      %v560 = vunpack.c.h.b16 0
      %vm561 = vcmp.ne.s32.totalorder %v557, %v559
      %vm562 = vcmp.ne.s32.totalorder %v558, %v560
      %vm563 = vmpackc.low %vm562, %vm561
      %v564 = vsel %vm556, %v518, 0
      %v565 = vsel %vm563, %v511, 0
      %v566 = vsel %vm556, %v521, 0
      %v567 = vsel %vm563, %v512, 0
      %v568 = vadd.s32 %v532, 4294967295
      %v569 = vadd.s32 %v533, 4294967295
      %vm570 = vcmp.ge.s32.totalorder %v568, 0
      %vm571 = vcmp.ge.s32.totalorder %v569, 0
      %vm572 = vcmp.lt.s32.totalorder %v568, 16
      %vm573 = vcmp.lt.s32.totalorder %v569, 16
      %vm574 = vmand %vm570, %vm572
      %vm575 = vmand %vm571, %vm573
      %v576 = vsel %vm574, 1, 0
      %v577 = vsel %vm575, 1, 0
      %vm578 = vcmp.eq.s32.totalorder %v576, 1
      %vm579 = vcmp.eq.s32.totalorder %v577, 1
      %vm580 = vmpackc.low %vm579, %vm578
      %v581 = vsel %vm580, 65537, 0
      %v582 = vperm.slane %v581, 0
      %v583 = vperm.slane %v581, 4
      %584 = vrot.lane.b32.xlu0 %v582, 1
      %v585 = vpop.permute.xlu0 %584
      %586 = vrot.lane.b32.xlu0 %v583, 1
      %v587 = vpop.permute.xlu0 %586
      %vm588 = vcmask 7168
      %v589 = vsel %vm588, %v585, %v587
      %v590 = vunpack.c.l.b16 %v585
      %v591 = vunpack.c.h.b16 %v585
      %v592 = vunpack.c.l.b16 0
      %v593 = vunpack.c.h.b16 0
      %vm594 = vcmp.ne.s32.totalorder %v590, %v592
      %vm595 = vcmp.ne.s32.totalorder %v591, %v593
      %vm596 = vmpackc.low %vm595, %vm594
      %v597 = vunpack.c.l.b16 %v589
      %v598 = vunpack.c.h.b16 %v589
      %v599 = vunpack.c.l.b16 0
      %v600 = vunpack.c.h.b16 0
      %vm601 = vcmp.ne.s32.totalorder %v597, %v599
      %vm602 = vcmp.ne.s32.totalorder %v598, %v600
      %vm603 = vmpackc.low %vm602, %vm601
      %v604 = vunpack.c.l.b16 %v587
      %v605 = vunpack.c.h.b16 %v587
      %v606 = vunpack.c.l.b16 0
      %v607 = vunpack.c.h.b16 0
      %vm608 = vcmp.ne.s32.totalorder %v604, %v606
      %vm609 = vcmp.ne.s32.totalorder %v605, %v607
      %vm610 = vmpackc.low %vm609, %vm608
      %v611 = vsel %vm596, %v518, 0
      %v612 = vsel %vm603, %v511, 0
      %v613 = vsel %vm610, %v524, 0
      %v614 = vsel %vm596, %v521, 0
      %v615 = vsel %vm603, %v512, 0
      %v616 = vsel %vm610, %v527, 0
      %vm617 = vcmp.ge.s32.totalorder %v532, 0
      %vm618 = vcmp.ge.s32.totalorder %v533, 0
      %vm619 = vcmp.lt.s32.totalorder %v532, 16
      %vm620 = vcmp.lt.s32.totalorder %v533, 16
      %vm621 = vmand %vm617, %vm619
      %vm622 = vmand %vm618, %vm620
      %v623 = vsel %vm621, 1, 0
      %v624 = vsel %vm622, 1, 0
      %vm625 = vcmp.eq.s32.totalorder %v623, 1
      %vm626 = vcmp.eq.s32.totalorder %v624, 1
      %vm627 = vmpackc.low %vm626, %vm625
      %v628 = vsel %vm627, 65537, 0
      %v629 = vperm.slane %v628, 0
      %v630 = vperm.slane %v628, 4
      %631 = vrot.lane.b32.xlu0 %v629, 2
      %v632 = vpop.permute.xlu0 %631
      %633 = vrot.lane.b32.xlu0 %v630, 2
      %v634 = vpop.permute.xlu0 %633
      %vm635 = vcmask 15360
      %v636 = vsel %vm635, %v632, %v634
      %v637 = vunpack.c.l.b16 %v632
      %v638 = vunpack.c.h.b16 %v632
      %v639 = vunpack.c.l.b16 0
      %v640 = vunpack.c.h.b16 0
      %vm641 = vcmp.ne.s32.totalorder %v637, %v639
      %vm642 = vcmp.ne.s32.totalorder %v638, %v640
      %vm643 = vmpackc.low %vm642, %vm641
      %v644 = vunpack.c.l.b16 %v636
      %v645 = vunpack.c.h.b16 %v636
      %v646 = vunpack.c.l.b16 0
      %v647 = vunpack.c.h.b16 0
      %vm648 = vcmp.ne.s32.totalorder %v644, %v646
      %vm649 = vcmp.ne.s32.totalorder %v645, %v647
      %vm650 = vmpackc.low %vm649, %vm648
      %v651 = vunpack.c.l.b16 %v634
      %v652 = vunpack.c.h.b16 %v634
      %v653 = vunpack.c.l.b16 0
      %v654 = vunpack.c.h.b16 0
      %vm655 = vcmp.ne.s32.totalorder %v651, %v653
      %vm656 = vcmp.ne.s32.totalorder %v652, %v654
      %vm657 = vmpackc.low %vm656, %vm655
      %v658 = vsel %vm643, %v518, 0
      %v659 = vsel %vm650, %v511, 0
      %v660 = vsel %vm657, %v524, 0
      %v661 = vsel %vm643, %v521, 0
      %v662 = vsel %vm650, %v512, 0
      %v663 = vsel %vm657, %v527, 0
      %v664 = vadd.s32 %v532, 1
      %v665 = vadd.s32 %v533, 1
      %vm666 = vcmp.ge.s32.totalorder %v664, 0
      %vm667 = vcmp.ge.s32.totalorder %v665, 0
      %vm668 = vcmp.lt.s32.totalorder %v664, 16
      %vm669 = vcmp.lt.s32.totalorder %v665, 16
      %vm670 = vmand %vm666, %vm668
      %vm671 = vmand %vm667, %vm669
      %v672 = vsel %vm670, 1, 0
      %v673 = vsel %vm671, 1, 0
      %vm674 = vcmp.eq.s32.totalorder %v672, 1
      %vm675 = vcmp.eq.s32.totalorder %v673, 1
      %vm676 = vmpackc.low %vm675, %vm674
      %v677 = vsel %vm676, 65537, 0
      %v678 = vperm.slane %v677, 0
      %v679 = vperm.slane %v677, 4
      %680 = vrot.lane.b32.xlu0 %v678, 3
      %v681 = vpop.permute.xlu0 %680
      %682 = vrot.lane.b32.xlu0 %v679, 3
      %v683 = vpop.permute.xlu0 %682
      %vm684 = vcmask 23552
      %v685 = vsel %vm684, %v681, %v683
      %v686 = vunpack.c.l.b16 %v681
      %v687 = vunpack.c.h.b16 %v681
      %v688 = vunpack.c.l.b16 0
      %v689 = vunpack.c.h.b16 0
      %vm690 = vcmp.ne.s32.totalorder %v686, %v688
      %vm691 = vcmp.ne.s32.totalorder %v687, %v689
      %vm692 = vmpackc.low %vm691, %vm690
      %v693 = vunpack.c.l.b16 %v685
      %v694 = vunpack.c.h.b16 %v685
      %v695 = vunpack.c.l.b16 0
      %v696 = vunpack.c.h.b16 0
      %vm697 = vcmp.ne.s32.totalorder %v693, %v695
      %vm698 = vcmp.ne.s32.totalorder %v694, %v696
      %vm699 = vmpackc.low %vm698, %vm697
      %v700 = vunpack.c.l.b16 %v683
      %v701 = vunpack.c.h.b16 %v683
      %v702 = vunpack.c.l.b16 0
      %v703 = vunpack.c.h.b16 0
      %vm704 = vcmp.ne.s32.totalorder %v700, %v702
      %vm705 = vcmp.ne.s32.totalorder %v701, %v703
      %vm706 = vmpackc.low %vm705, %vm704
      %v707 = vsel %vm692, %v518, 0
      %v708 = vsel %vm699, %v511, 0
      %v709 = vsel %vm706, %v524, 0
      %v710 = vsel %vm692, %v521, 0
      %v711 = vsel %vm699, %v512, 0
      %v712 = vsel %vm706, %v527, 0
      %v713 = vadd.s32 %v532, 2
      %v714 = vadd.s32 %v533, 2
      %vm715 = vcmp.ge.s32.totalorder %v713, 0
      %vm716 = vcmp.ge.s32.totalorder %v714, 0
      %vm717 = vcmp.lt.s32.totalorder %v713, 16
      %vm718 = vcmp.lt.s32.totalorder %v714, 16
      %vm719 = vmand %vm715, %vm717
      %vm720 = vmand %vm716, %vm718
      %v721 = vsel %vm719, 1, 0
      %v722 = vsel %vm720, 1, 0
      %vm723 = vcmp.eq.s32.totalorder %v721, 1
      %vm724 = vcmp.eq.s32.totalorder %v722, 1
      %vm725 = vmpackc.low %vm724, %vm723
      %v726 = vsel %vm725, 65537, 0
      %v727 = vperm.slane %v726, 0
      %v728 = vperm.slane %v726, 4
      %729 = vrot.lane.b32.xlu0 %v727, 4
      %v730 = vpop.permute.xlu0 %729
      %731 = vrot.lane.b32.xlu0 %v728, 4
      %v732 = vpop.permute.xlu0 %731
      %vm733 = vcmask 31744
      %v734 = vsel %vm733, %v730, %v732
      %v735 = vunpack.c.l.b16 %v730
      %v736 = vunpack.c.h.b16 %v730
      %v737 = vunpack.c.l.b16 0
      %v738 = vunpack.c.h.b16 0
      %vm739 = vcmp.ne.s32.totalorder %v735, %v737
      %vm740 = vcmp.ne.s32.totalorder %v736, %v738
      %vm741 = vmpackc.low %vm740, %vm739
      %v742 = vunpack.c.l.b16 %v734
      %v743 = vunpack.c.h.b16 %v734
      %v744 = vunpack.c.l.b16 0
      %v745 = vunpack.c.h.b16 0
      %vm746 = vcmp.ne.s32.totalorder %v742, %v744
      %vm747 = vcmp.ne.s32.totalorder %v743, %v745
      %vm748 = vmpackc.low %vm747, %vm746
      %v749 = vunpack.c.l.b16 %v732
      %v750 = vunpack.c.h.b16 %v732
      %v751 = vunpack.c.l.b16 0
      %v752 = vunpack.c.h.b16 0
      %vm753 = vcmp.ne.s32.totalorder %v749, %v751
      %vm754 = vcmp.ne.s32.totalorder %v750, %v752
      %vm755 = vmpackc.low %vm754, %vm753
      %v756 = vsel %vm741, %v518, 0
      %v757 = vsel %vm748, %v511, 0
      %v758 = vsel %vm755, %v524, 0
      %v759 = vsel %vm741, %v521, 0
      %v760 = vsel %vm748, %v512, 0
      %v761 = vsel %vm755, %v527, 0
      %762 = vrot.lane.b32.xlu0 %v548, 16
      %v763 = vpop.permute.xlu0 %762
      %764 = vrot.lane.b32.xlu0 %v549, 16
      %v765 = vpop.permute.xlu0 %764
      %vm766 = vcmask 130048
      %v767 = vsel %vm766, %v763, %v765
      %v768 = vunpack.c.l.b16 %v763
      %v769 = vunpack.c.h.b16 %v763
      %v770 = vunpack.c.l.b16 0
      %v771 = vunpack.c.h.b16 0
      %vm772 = vcmp.ne.s32.totalorder %v768, %v770
      %vm773 = vcmp.ne.s32.totalorder %v769, %v771
      %vm774 = vmpackc.low %vm773, %vm772
      %v775 = vunpack.c.l.b16 %v767
      %v776 = vunpack.c.h.b16 %v767
      %v777 = vunpack.c.l.b16 0
      %v778 = vunpack.c.h.b16 0
      %vm779 = vcmp.ne.s32.totalorder %v775, %v777
      %vm780 = vcmp.ne.s32.totalorder %v776, %v778
      %vm781 = vmpackc.low %vm780, %vm779
      %v782 = vunpack.c.l.b16 %v765
      %v783 = vunpack.c.h.b16 %v765
      %v784 = vunpack.c.l.b16 0
      %v785 = vunpack.c.h.b16 0
      %vm786 = vcmp.ne.s32.totalorder %v782, %v784
      %vm787 = vcmp.ne.s32.totalorder %v783, %v785
      %vm788 = vmpackc.low %vm787, %vm786
      %v789 = vsel %vm774, %v518, 0
      %v790 = vsel %vm781, %v511, 0
      %v791 = vsel %vm788, %v524, 0
      %v792 = vsel %vm774, %v521, 0
      %v793 = vsel %vm781, %v512, 0
      %v794 = vsel %vm788, %v527, 0
      %795 = vrot.lane.b32.xlu0 %v582, 17
      %v796 = vpop.permute.xlu0 %795
      %797 = vrot.lane.b32.xlu0 %v583, 17
      %v798 = vpop.permute.xlu0 %797
      %vm799 = vcmask 138240
      %v800 = vsel %vm799, %v796, %v798
      %v801 = vunpack.c.l.b16 %v796
      %v802 = vunpack.c.h.b16 %v796
      %v803 = vunpack.c.l.b16 0
      %v804 = vunpack.c.h.b16 0
      %vm805 = vcmp.ne.s32.totalorder %v801, %v803
      %vm806 = vcmp.ne.s32.totalorder %v802, %v804
      %vm807 = vmpackc.low %vm806, %vm805
      %v808 = vunpack.c.l.b16 %v800
      %v809 = vunpack.c.h.b16 %v800
      %v810 = vunpack.c.l.b16 0
      %v811 = vunpack.c.h.b16 0
      %vm812 = vcmp.ne.s32.totalorder %v808, %v810
      %vm813 = vcmp.ne.s32.totalorder %v809, %v811
      %vm814 = vmpackc.low %vm813, %vm812
      %v815 = vunpack.c.l.b16 %v798
      %v816 = vunpack.c.h.b16 %v798
      %v817 = vunpack.c.l.b16 0
      %v818 = vunpack.c.h.b16 0
      %vm819 = vcmp.ne.s32.totalorder %v815, %v817
      %vm820 = vcmp.ne.s32.totalorder %v816, %v818
      %vm821 = vmpackc.low %vm820, %vm819
      %v822 = vsel %vm807, %v518, 0
      %v823 = vsel %vm814, %v511, 0
      %v824 = vsel %vm821, %v524, 0
      %v825 = vsel %vm807, %v521, 0
      %v826 = vsel %vm814, %v512, 0
      %v827 = vsel %vm821, %v527, 0
      %828 = vrot.lane.b32.xlu0 %v629, 18
      %v829 = vpop.permute.xlu0 %828
      %830 = vrot.lane.b32.xlu0 %v630, 18
      %v831 = vpop.permute.xlu0 %830
      %vm832 = vcmask 146432
      %v833 = vsel %vm832, %v829, %v831
      %v834 = vunpack.c.l.b16 %v829
      %v835 = vunpack.c.h.b16 %v829
      %v836 = vunpack.c.l.b16 0
      %v837 = vunpack.c.h.b16 0
      %vm838 = vcmp.ne.s32.totalorder %v834, %v836
      %vm839 = vcmp.ne.s32.totalorder %v835, %v837
      %vm840 = vmpackc.low %vm839, %vm838
      %v841 = vunpack.c.l.b16 %v833
      %v842 = vunpack.c.h.b16 %v833
      %v843 = vunpack.c.l.b16 0
      %v844 = vunpack.c.h.b16 0
      %vm845 = vcmp.ne.s32.totalorder %v841, %v843
      %vm846 = vcmp.ne.s32.totalorder %v842, %v844
      %vm847 = vmpackc.low %vm846, %vm845
      %v848 = vunpack.c.l.b16 %v831
      %v849 = vunpack.c.h.b16 %v831
      %v850 = vunpack.c.l.b16 0
      %v851 = vunpack.c.h.b16 0
      %vm852 = vcmp.ne.s32.totalorder %v848, %v850
      %vm853 = vcmp.ne.s32.totalorder %v849, %v851
      %vm854 = vmpackc.low %vm853, %vm852
      %v855 = vsel %vm840, %v518, 0
      %v856 = vsel %vm847, %v511, 0
      %v857 = vsel %vm854, %v524, 0
      %v858 = vsel %vm840, %v521, 0
      %v859 = vsel %vm847, %v512, 0
      %v860 = vsel %vm854, %v527, 0
      %861 = vrot.lane.b32.xlu0 %v678, 19
      %v862 = vpop.permute.xlu0 %861
      %863 = vrot.lane.b32.xlu0 %v679, 19
      %v864 = vpop.permute.xlu0 %863
      %vm865 = vcmask 154624
      %v866 = vsel %vm865, %v862, %v864
      %v867 = vunpack.c.l.b16 %v862
      %v868 = vunpack.c.h.b16 %v862
      %v869 = vunpack.c.l.b16 0
      %v870 = vunpack.c.h.b16 0
      %vm871 = vcmp.ne.s32.totalorder %v867, %v869
      %vm872 = vcmp.ne.s32.totalorder %v868, %v870
      %vm873 = vmpackc.low %vm872, %vm871
      %v874 = vunpack.c.l.b16 %v866
      %v875 = vunpack.c.h.b16 %v866
      %v876 = vunpack.c.l.b16 0
      %v877 = vunpack.c.h.b16 0
      %vm878 = vcmp.ne.s32.totalorder %v874, %v876
      %vm879 = vcmp.ne.s32.totalorder %v875, %v877
      %vm880 = vmpackc.low %vm879, %vm878
      %v881 = vunpack.c.l.b16 %v864
      %v882 = vunpack.c.h.b16 %v864
      %v883 = vunpack.c.l.b16 0
      %v884 = vunpack.c.h.b16 0
      %vm885 = vcmp.ne.s32.totalorder %v881, %v883
      %vm886 = vcmp.ne.s32.totalorder %v882, %v884
      %vm887 = vmpackc.low %vm886, %vm885
      %v888 = vsel %vm873, %v518, 0
      %v889 = vsel %vm880, %v511, 0
      %v890 = vsel %vm887, %v524, 0
      %v891 = vsel %vm873, %v521, 0
      %v892 = vsel %vm880, %v512, 0
      %v893 = vsel %vm887, %v527, 0
      %894 = vrot.lane.b32.xlu0 %v727, 20
      %v895 = vpop.permute.xlu0 %894
      %896 = vrot.lane.b32.xlu0 %v728, 20
      %v897 = vpop.permute.xlu0 %896
      %vm898 = vcmask 162816
      %v899 = vsel %vm898, %v895, %v897
      %v900 = vunpack.c.l.b16 %v895
      %v901 = vunpack.c.h.b16 %v895
      %v902 = vunpack.c.l.b16 0
      %v903 = vunpack.c.h.b16 0
      %vm904 = vcmp.ne.s32.totalorder %v900, %v902
      %vm905 = vcmp.ne.s32.totalorder %v901, %v903
      %vm906 = vmpackc.low %vm905, %vm904
      %v907 = vunpack.c.l.b16 %v899
      %v908 = vunpack.c.h.b16 %v899
      %v909 = vunpack.c.l.b16 0
      %v910 = vunpack.c.h.b16 0
      %vm911 = vcmp.ne.s32.totalorder %v907, %v909
      %vm912 = vcmp.ne.s32.totalorder %v908, %v910
      %vm913 = vmpackc.low %vm912, %vm911
      %v914 = vunpack.c.l.b16 %v897
      %v915 = vunpack.c.h.b16 %v897
      %v916 = vunpack.c.l.b16 0
      %v917 = vunpack.c.h.b16 0
      %vm918 = vcmp.ne.s32.totalorder %v914, %v916
      %vm919 = vcmp.ne.s32.totalorder %v915, %v917
      %vm920 = vmpackc.low %vm919, %vm918
      %v921 = vsel %vm906, %v518, 0
      %v922 = vsel %vm913, %v511, 0
      %v923 = vsel %vm920, %v524, 0
      %v924 = vsel %vm906, %v521, 0
      %v925 = vsel %vm913, %v512, 0
      %v926 = vsel %vm920, %v527, 0
      %927 = vrot.lane.b32.xlu0 %v548, 32
      %v928 = vpop.permute.xlu0 %927
      %929 = vrot.lane.b32.xlu0 %v549, 32
      %v930 = vpop.permute.xlu0 %929
      %vm931 = vcmask 261120
      %v932 = vsel %vm931, %v928, %v930
      %v933 = vunpack.c.l.b16 %v928
      %v934 = vunpack.c.h.b16 %v928
      %v935 = vunpack.c.l.b16 0
      %v936 = vunpack.c.h.b16 0
      %vm937 = vcmp.ne.s32.totalorder %v933, %v935
      %vm938 = vcmp.ne.s32.totalorder %v934, %v936
      %vm939 = vmpackc.low %vm938, %vm937
      %v940 = vunpack.c.l.b16 %v932
      %v941 = vunpack.c.h.b16 %v932
      %v942 = vunpack.c.l.b16 0
      %v943 = vunpack.c.h.b16 0
      %vm944 = vcmp.ne.s32.totalorder %v940, %v942
      %vm945 = vcmp.ne.s32.totalorder %v941, %v943
      %vm946 = vmpackc.low %vm945, %vm944
      %v947 = vunpack.c.l.b16 %v930
      %v948 = vunpack.c.h.b16 %v930
      %v949 = vunpack.c.l.b16 0
      %v950 = vunpack.c.h.b16 0
      %vm951 = vcmp.ne.s32.totalorder %v947, %v949
      %vm952 = vcmp.ne.s32.totalorder %v948, %v950
      %vm953 = vmpackc.low %vm952, %vm951
      %v954 = vsel %vm939, %v518, 0
      %v955 = vsel %vm946, %v511, 0
      %v956 = vsel %vm953, %v524, 0
      %v957 = vsel %vm939, %v521, 0
      %v958 = vsel %vm946, %v512, 0
      %v959 = vsel %vm953, %v527, 0
      %960 = vrot.lane.b32.xlu0 %v582, 33
      %v961 = vpop.permute.xlu0 %960
      %962 = vrot.lane.b32.xlu0 %v583, 33
      %v963 = vpop.permute.xlu0 %962
      %vm964 = vcmask 269312
      %v965 = vsel %vm964, %v961, %v963
      %v966 = vunpack.c.l.b16 %v961
      %v967 = vunpack.c.h.b16 %v961
      %v968 = vunpack.c.l.b16 0
      %v969 = vunpack.c.h.b16 0
      %vm970 = vcmp.ne.s32.totalorder %v966, %v968
      %vm971 = vcmp.ne.s32.totalorder %v967, %v969
      %vm972 = vmpackc.low %vm971, %vm970
      %v973 = vunpack.c.l.b16 %v965
      %v974 = vunpack.c.h.b16 %v965
      %v975 = vunpack.c.l.b16 0
      %v976 = vunpack.c.h.b16 0
      %vm977 = vcmp.ne.s32.totalorder %v973, %v975
      %vm978 = vcmp.ne.s32.totalorder %v974, %v976
      %vm979 = vmpackc.low %vm978, %vm977
      %v980 = vunpack.c.l.b16 %v963
      %v981 = vunpack.c.h.b16 %v963
      %v982 = vunpack.c.l.b16 0
      %v983 = vunpack.c.h.b16 0
      %vm984 = vcmp.ne.s32.totalorder %v980, %v982
      %vm985 = vcmp.ne.s32.totalorder %v981, %v983
      %vm986 = vmpackc.low %vm985, %vm984
      %v987 = vsel %vm972, %v518, 0
      %v988 = vsel %vm979, %v511, 0
      %v989 = vsel %vm986, %v524, 0
      %v990 = vsel %vm972, %v521, 0
      %v991 = vsel %vm979, %v512, 0
      %v992 = vsel %vm986, %v527, 0
      %993 = vrot.lane.b32.xlu0 %v629, 34
      %v994 = vpop.permute.xlu0 %993
      %995 = vrot.lane.b32.xlu0 %v630, 34
      %v996 = vpop.permute.xlu0 %995
      %v997 = vsel %vm510, %v994, %v996
      %v998 = vunpack.c.l.b16 %v994
      %v999 = vunpack.c.h.b16 %v994
      %v1000 = vunpack.c.l.b16 0
      %v1001 = vunpack.c.h.b16 0
      %vm1002 = vcmp.ne.s32.totalorder %v998, %v1000
      %vm1003 = vcmp.ne.s32.totalorder %v999, %v1001
      %vm1004 = vmpackc.low %vm1003, %vm1002
      %v1005 = vunpack.c.l.b16 %v997
      %v1006 = vunpack.c.h.b16 %v997
      %v1007 = vunpack.c.l.b16 0
      %v1008 = vunpack.c.h.b16 0
      %vm1009 = vcmp.ne.s32.totalorder %v1005, %v1007
      %vm1010 = vcmp.ne.s32.totalorder %v1006, %v1008
      %vm1011 = vmpackc.low %vm1010, %vm1009
      %v1012 = vunpack.c.l.b16 %v996
      %v1013 = vunpack.c.h.b16 %v996
      %v1014 = vunpack.c.l.b16 0
      %v1015 = vunpack.c.h.b16 0
      %vm1016 = vcmp.ne.s32.totalorder %v1012, %v1014
      %vm1017 = vcmp.ne.s32.totalorder %v1013, %v1015
      %vm1018 = vmpackc.low %vm1017, %vm1016
      %v1019 = vsel %vm1004, %v518, 0
      %v1020 = vsel %vm1011, %v511, 0
      %v1021 = vsel %vm1018, %v524, 0
      %v1022 = vsel %vm1004, %v521, 0
      %v1023 = vsel %vm1011, %v512, 0
      %v1024 = vsel %vm1018, %v527, 0
      %1025 = vrot.lane.b32.xlu0 %v678, 35
      %v1026 = vpop.permute.xlu0 %1025
      %1027 = vrot.lane.b32.xlu0 %v679, 35
      %v1028 = vpop.permute.xlu0 %1027
      %vm1029 = vcmask 285696
      %v1030 = vsel %vm1029, %v1026, %v1028
      %v1031 = vunpack.c.l.b16 %v1026
      %v1032 = vunpack.c.h.b16 %v1026
      %v1033 = vunpack.c.l.b16 0
      %v1034 = vunpack.c.h.b16 0
      %vm1035 = vcmp.ne.s32.totalorder %v1031, %v1033
      %vm1036 = vcmp.ne.s32.totalorder %v1032, %v1034
      %vm1037 = vmpackc.low %vm1036, %vm1035
      %v1038 = vunpack.c.l.b16 %v1030
      %v1039 = vunpack.c.h.b16 %v1030
      %v1040 = vunpack.c.l.b16 0
      %v1041 = vunpack.c.h.b16 0
      %vm1042 = vcmp.ne.s32.totalorder %v1038, %v1040
      %vm1043 = vcmp.ne.s32.totalorder %v1039, %v1041
      %vm1044 = vmpackc.low %vm1043, %vm1042
      %v1045 = vunpack.c.l.b16 %v1028
      %v1046 = vunpack.c.h.b16 %v1028
      %v1047 = vunpack.c.l.b16 0
      %v1048 = vunpack.c.h.b16 0
      %vm1049 = vcmp.ne.s32.totalorder %v1045, %v1047
      %vm1050 = vcmp.ne.s32.totalorder %v1046, %v1048
      %vm1051 = vmpackc.low %vm1050, %vm1049
      %v1052 = vsel %vm1037, %v518, 0
      %v1053 = vsel %vm1044, %v511, 0
      %v1054 = vsel %vm1051, %v524, 0
      %v1055 = vsel %vm1037, %v521, 0
      %v1056 = vsel %vm1044, %v512, 0
      %v1057 = vsel %vm1051, %v527, 0
      %1058 = vrot.lane.b32.xlu0 %v727, 36
      %v1059 = vpop.permute.xlu0 %1058
      %1060 = vrot.lane.b32.xlu0 %v728, 36
      %v1061 = vpop.permute.xlu0 %1060
      %vm1062 = vcmask 293888
      %v1063 = vsel %vm1062, %v1059, %v1061
      %v1064 = vunpack.c.l.b16 %v1059
      %v1065 = vunpack.c.h.b16 %v1059
      %v1066 = vunpack.c.l.b16 0
      %v1067 = vunpack.c.h.b16 0
      %vm1068 = vcmp.ne.s32.totalorder %v1064, %v1066
      %vm1069 = vcmp.ne.s32.totalorder %v1065, %v1067
      %vm1070 = vmpackc.low %vm1069, %vm1068
      %v1071 = vunpack.c.l.b16 %v1063
      %v1072 = vunpack.c.h.b16 %v1063
      %v1073 = vunpack.c.l.b16 0
      %v1074 = vunpack.c.h.b16 0
      %vm1075 = vcmp.ne.s32.totalorder %v1071, %v1073
      %vm1076 = vcmp.ne.s32.totalorder %v1072, %v1074
      %vm1077 = vmpackc.low %vm1076, %vm1075
      %v1078 = vunpack.c.l.b16 %v1061
      %v1079 = vunpack.c.h.b16 %v1061
      %v1080 = vunpack.c.l.b16 0
      %v1081 = vunpack.c.h.b16 0
      %vm1082 = vcmp.ne.s32.totalorder %v1078, %v1080
      %vm1083 = vcmp.ne.s32.totalorder %v1079, %v1081
      %vm1084 = vmpackc.low %vm1083, %vm1082
      %v1085 = vsel %vm1070, %v518, 0
      %v1086 = vsel %vm1077, %v511, 0
      %v1087 = vsel %vm1084, %v524, 0
      %v1088 = vsel %vm1070, %v521, 0
      %v1089 = vsel %vm1077, %v512, 0
      %v1090 = vsel %vm1084, %v527, 0
      %1091 = vrot.lane.b32.xlu0 %v548, 48
      %v1092 = vpop.permute.xlu0 %1091
      %1093 = vrot.lane.b32.xlu0 %v549, 48
      %v1094 = vpop.permute.xlu0 %1093
      %vm1095 = vcmask 392192
      %v1096 = vsel %vm1095, %v1092, %v1094
      %v1097 = vunpack.c.l.b16 %v1092
      %v1098 = vunpack.c.h.b16 %v1092
      %v1099 = vunpack.c.l.b16 0
      %v1100 = vunpack.c.h.b16 0
      %vm1101 = vcmp.ne.s32.totalorder %v1097, %v1099
      %vm1102 = vcmp.ne.s32.totalorder %v1098, %v1100
      %vm1103 = vmpackc.low %vm1102, %vm1101
      %v1104 = vunpack.c.l.b16 %v1096
      %v1105 = vunpack.c.h.b16 %v1096
      %v1106 = vunpack.c.l.b16 0
      %v1107 = vunpack.c.h.b16 0
      %vm1108 = vcmp.ne.s32.totalorder %v1104, %v1106
      %vm1109 = vcmp.ne.s32.totalorder %v1105, %v1107
      %vm1110 = vmpackc.low %vm1109, %vm1108
      %v1111 = vunpack.c.l.b16 %v1094
      %v1112 = vunpack.c.h.b16 %v1094
      %v1113 = vunpack.c.l.b16 0
      %v1114 = vunpack.c.h.b16 0
      %vm1115 = vcmp.ne.s32.totalorder %v1111, %v1113
      %vm1116 = vcmp.ne.s32.totalorder %v1112, %v1114
      %vm1117 = vmpackc.low %vm1116, %vm1115
      %v1118 = vsel %vm1103, %v518, 0
      %v1119 = vsel %vm1110, %v511, 0
      %v1120 = vsel %vm1117, %v524, 0
      %v1121 = vsel %vm1103, %v521, 0
      %v1122 = vsel %vm1110, %v512, 0
      %v1123 = vsel %vm1117, %v527, 0
      %1124 = vrot.lane.b32.xlu0 %v582, 49
      %v1125 = vpop.permute.xlu0 %1124
      %1126 = vrot.lane.b32.xlu0 %v583, 49
      %v1127 = vpop.permute.xlu0 %1126
      %vm1128 = vcmask 400384
      %v1129 = vsel %vm1128, %v1125, %v1127
      %v1130 = vunpack.c.l.b16 %v1125
      %v1131 = vunpack.c.h.b16 %v1125
      %v1132 = vunpack.c.l.b16 0
      %v1133 = vunpack.c.h.b16 0
      %vm1134 = vcmp.ne.s32.totalorder %v1130, %v1132
      %vm1135 = vcmp.ne.s32.totalorder %v1131, %v1133
      %vm1136 = vmpackc.low %vm1135, %vm1134
      %v1137 = vunpack.c.l.b16 %v1129
      %v1138 = vunpack.c.h.b16 %v1129
      %v1139 = vunpack.c.l.b16 0
      %v1140 = vunpack.c.h.b16 0
      %vm1141 = vcmp.ne.s32.totalorder %v1137, %v1139
      %vm1142 = vcmp.ne.s32.totalorder %v1138, %v1140
      %vm1143 = vmpackc.low %vm1142, %vm1141
      %v1144 = vunpack.c.l.b16 %v1127
      %v1145 = vunpack.c.h.b16 %v1127
      %v1146 = vunpack.c.l.b16 0
      %v1147 = vunpack.c.h.b16 0
      %vm1148 = vcmp.ne.s32.totalorder %v1144, %v1146
      %vm1149 = vcmp.ne.s32.totalorder %v1145, %v1147
      %vm1150 = vmpackc.low %vm1149, %vm1148
      %v1151 = vsel %vm1136, %v518, 0
      %v1152 = vsel %vm1143, %v511, 0
      %v1153 = vsel %vm1150, %v524, 0
      %v1154 = vsel %vm1136, %v521, 0
      %v1155 = vsel %vm1143, %v512, 0
      %v1156 = vsel %vm1150, %v527, 0
      %1157 = vrot.lane.b32.xlu0 %v629, 50
      %v1158 = vpop.permute.xlu0 %1157
      %1159 = vrot.lane.b32.xlu0 %v630, 50
      %v1160 = vpop.permute.xlu0 %1159
      %vm1161 = vcmask 408576
      %v1162 = vsel %vm1161, %v1158, %v1160
      %v1163 = vunpack.c.l.b16 %v1158
      %v1164 = vunpack.c.h.b16 %v1158
      %v1165 = vunpack.c.l.b16 0
      %v1166 = vunpack.c.h.b16 0
      %vm1167 = vcmp.ne.s32.totalorder %v1163, %v1165
      %vm1168 = vcmp.ne.s32.totalorder %v1164, %v1166
      %vm1169 = vmpackc.low %vm1168, %vm1167
      %v1170 = vunpack.c.l.b16 %v1162
      %v1171 = vunpack.c.h.b16 %v1162
      %v1172 = vunpack.c.l.b16 0
      %v1173 = vunpack.c.h.b16 0
      %vm1174 = vcmp.ne.s32.totalorder %v1170, %v1172
      %vm1175 = vcmp.ne.s32.totalorder %v1171, %v1173
      %vm1176 = vmpackc.low %vm1175, %vm1174
      %v1177 = vunpack.c.l.b16 %v1160
      %v1178 = vunpack.c.h.b16 %v1160
      %v1179 = vunpack.c.l.b16 0
      %v1180 = vunpack.c.h.b16 0
      %vm1181 = vcmp.ne.s32.totalorder %v1177, %v1179
      %vm1182 = vcmp.ne.s32.totalorder %v1178, %v1180
      %vm1183 = vmpackc.low %vm1182, %vm1181
      %v1184 = vsel %vm1169, %v518, 0
      %v1185 = vsel %vm1176, %v511, 0
      %v1186 = vsel %vm1183, %v524, 0
      %v1187 = vsel %vm1169, %v521, 0
      %v1188 = vsel %vm1176, %v512, 0
      %v1189 = vsel %vm1183, %v527, 0
      %1190 = vrot.lane.b32.xlu0 %v678, 51
      %v1191 = vpop.permute.xlu0 %1190
      %1192 = vrot.lane.b32.xlu0 %v679, 51
      %v1193 = vpop.permute.xlu0 %1192
      %vm1194 = vcmask 416768
      %v1195 = vsel %vm1194, %v1191, %v1193
      %v1196 = vunpack.c.l.b16 %v1191
      %v1197 = vunpack.c.h.b16 %v1191
      %v1198 = vunpack.c.l.b16 0
      %v1199 = vunpack.c.h.b16 0
      %vm1200 = vcmp.ne.s32.totalorder %v1196, %v1198
      %vm1201 = vcmp.ne.s32.totalorder %v1197, %v1199
      %vm1202 = vmpackc.low %vm1201, %vm1200
      %v1203 = vunpack.c.l.b16 %v1195
      %v1204 = vunpack.c.h.b16 %v1195
      %v1205 = vunpack.c.l.b16 0
      %v1206 = vunpack.c.h.b16 0
      %vm1207 = vcmp.ne.s32.totalorder %v1203, %v1205
      %vm1208 = vcmp.ne.s32.totalorder %v1204, %v1206
      %vm1209 = vmpackc.low %vm1208, %vm1207
      %v1210 = vunpack.c.l.b16 %v1193
      %v1211 = vunpack.c.h.b16 %v1193
      %v1212 = vunpack.c.l.b16 0
      %v1213 = vunpack.c.h.b16 0
      %vm1214 = vcmp.ne.s32.totalorder %v1210, %v1212
      %vm1215 = vcmp.ne.s32.totalorder %v1211, %v1213
      %vm1216 = vmpackc.low %vm1215, %vm1214
      %v1217 = vsel %vm1202, %v518, 0
      %v1218 = vsel %vm1209, %v511, 0
      %v1219 = vsel %vm1216, %v524, 0
      %v1220 = vsel %vm1202, %v521, 0
      %v1221 = vsel %vm1209, %v512, 0
      %v1222 = vsel %vm1216, %v527, 0
      %1223 = vrot.lane.b32.xlu0 %v727, 52
      %v1224 = vpop.permute.xlu0 %1223
      %1225 = vrot.lane.b32.xlu0 %v728, 52
      %v1226 = vpop.permute.xlu0 %1225
      %vm1227 = vcmask 424960
      %v1228 = vsel %vm1227, %v1224, %v1226
      %v1229 = vunpack.c.l.b16 %v1224
      %v1230 = vunpack.c.h.b16 %v1224
      %v1231 = vunpack.c.l.b16 0
      %v1232 = vunpack.c.h.b16 0
      %vm1233 = vcmp.ne.s32.totalorder %v1229, %v1231
      %vm1234 = vcmp.ne.s32.totalorder %v1230, %v1232
      %vm1235 = vmpackc.low %vm1234, %vm1233
      %v1236 = vunpack.c.l.b16 %v1228
      %v1237 = vunpack.c.h.b16 %v1228
      %v1238 = vunpack.c.l.b16 0
      %v1239 = vunpack.c.h.b16 0
      %vm1240 = vcmp.ne.s32.totalorder %v1236, %v1238
      %vm1241 = vcmp.ne.s32.totalorder %v1237, %v1239
      %vm1242 = vmpackc.low %vm1241, %vm1240
      %v1243 = vunpack.c.l.b16 %v1226
      %v1244 = vunpack.c.h.b16 %v1226
      %v1245 = vunpack.c.l.b16 0
      %v1246 = vunpack.c.h.b16 0
      %vm1247 = vcmp.ne.s32.totalorder %v1243, %v1245
      %vm1248 = vcmp.ne.s32.totalorder %v1244, %v1246
      %vm1249 = vmpackc.low %vm1248, %vm1247
      %v1250 = vsel %vm1235, %v518, 0
      %v1251 = vsel %vm1242, %v511, 0
      %v1252 = vsel %vm1249, %v524, 0
      %v1253 = vsel %vm1235, %v521, 0
      %v1254 = vsel %vm1242, %v512, 0
      %v1255 = vsel %vm1249, %v527, 0
      %1256 = vrot.lane.b32.xlu0 %v548, 64
      %v1257 = vpop.permute.xlu0 %1256
      %1258 = vrot.lane.b32.xlu0 %v549, 64
      %v1259 = vpop.permute.xlu0 %1258
      %vm1260 = vcmask 523264
      %v1261 = vsel %vm1260, %v1257, %v1259
      %v1262 = vunpack.c.l.b16 %v1257
      %v1263 = vunpack.c.h.b16 %v1257
      %v1264 = vunpack.c.l.b16 0
      %v1265 = vunpack.c.h.b16 0
      %vm1266 = vcmp.ne.s32.totalorder %v1262, %v1264
      %vm1267 = vcmp.ne.s32.totalorder %v1263, %v1265
      %vm1268 = vmpackc.low %vm1267, %vm1266
      %v1269 = vunpack.c.l.b16 %v1261
      %v1270 = vunpack.c.h.b16 %v1261
      %v1271 = vunpack.c.l.b16 0
      %v1272 = vunpack.c.h.b16 0
      %vm1273 = vcmp.ne.s32.totalorder %v1269, %v1271
      %vm1274 = vcmp.ne.s32.totalorder %v1270, %v1272
      %vm1275 = vmpackc.low %vm1274, %vm1273
      %v1276 = vunpack.c.l.b16 %v1259
      %v1277 = vunpack.c.h.b16 %v1259
      %v1278 = vunpack.c.l.b16 0
      %v1279 = vunpack.c.h.b16 0
      %vm1280 = vcmp.ne.s32.totalorder %v1276, %v1278
      %vm1281 = vcmp.ne.s32.totalorder %v1277, %v1279
      %vm1282 = vmpackc.low %vm1281, %vm1280
      %v1283 = vsel %vm1268, %v518, 0
      %v1284 = vsel %vm1275, %v511, 0
      %v1285 = vsel %vm1282, %v524, 0
      %v1286 = vsel %vm1268, %v521, 0
      %v1287 = vsel %vm1275, %v512, 0
      %v1288 = vsel %vm1282, %v527, 0
      %1289 = vrot.lane.b32.xlu0 %v582, 65
      %v1290 = vpop.permute.xlu0 %1289
      %1291 = vrot.lane.b32.xlu0 %v583, 65
      %v1292 = vpop.permute.xlu0 %1291
      %vm1293 = vcmask 531456
      %v1294 = vsel %vm1293, %v1290, %v1292
      %v1295 = vunpack.c.l.b16 %v1290
      %v1296 = vunpack.c.h.b16 %v1290
      %v1297 = vunpack.c.l.b16 0
      %v1298 = vunpack.c.h.b16 0
      %vm1299 = vcmp.ne.s32.totalorder %v1295, %v1297
      %vm1300 = vcmp.ne.s32.totalorder %v1296, %v1298
      %vm1301 = vmpackc.low %vm1300, %vm1299
      %v1302 = vunpack.c.l.b16 %v1294
      %v1303 = vunpack.c.h.b16 %v1294
      %v1304 = vunpack.c.l.b16 0
      %v1305 = vunpack.c.h.b16 0
      %vm1306 = vcmp.ne.s32.totalorder %v1302, %v1304
      %vm1307 = vcmp.ne.s32.totalorder %v1303, %v1305
      %vm1308 = vmpackc.low %vm1307, %vm1306
      %v1309 = vunpack.c.l.b16 %v1292
      %v1310 = vunpack.c.h.b16 %v1292
      %v1311 = vunpack.c.l.b16 0
      %v1312 = vunpack.c.h.b16 0
      %vm1313 = vcmp.ne.s32.totalorder %v1309, %v1311
      %vm1314 = vcmp.ne.s32.totalorder %v1310, %v1312
      %vm1315 = vmpackc.low %vm1314, %vm1313
      %v1316 = vsel %vm1301, %v518, 0
      %v1317 = vsel %vm1308, %v511, 0
      %v1318 = vsel %vm1315, %v524, 0
      %v1319 = vsel %vm1301, %v521, 0
      %v1320 = vsel %vm1308, %v512, 0
      %v1321 = vsel %vm1315, %v527, 0
      %1322 = vrot.lane.b32.xlu0 %v629, 66
      %v1323 = vpop.permute.xlu0 %1322
      %1324 = vrot.lane.b32.xlu0 %v630, 66
      %v1325 = vpop.permute.xlu0 %1324
      %vm1326 = vcmask 539648
      %v1327 = vsel %vm1326, %v1323, %v1325
      %v1328 = vunpack.c.l.b16 %v1323
      %v1329 = vunpack.c.h.b16 %v1323
      %v1330 = vunpack.c.l.b16 0
      %v1331 = vunpack.c.h.b16 0
      %vm1332 = vcmp.ne.s32.totalorder %v1328, %v1330
      %vm1333 = vcmp.ne.s32.totalorder %v1329, %v1331
      %vm1334 = vmpackc.low %vm1333, %vm1332
      %v1335 = vunpack.c.l.b16 %v1327
      %v1336 = vunpack.c.h.b16 %v1327
      %v1337 = vunpack.c.l.b16 0
      %v1338 = vunpack.c.h.b16 0
      %vm1339 = vcmp.ne.s32.totalorder %v1335, %v1337
      %vm1340 = vcmp.ne.s32.totalorder %v1336, %v1338
      %vm1341 = vmpackc.low %vm1340, %vm1339
      %v1342 = vunpack.c.l.b16 %v1325
      %v1343 = vunpack.c.h.b16 %v1325
      %v1344 = vunpack.c.l.b16 0
      %v1345 = vunpack.c.h.b16 0
      %vm1346 = vcmp.ne.s32.totalorder %v1342, %v1344
      %vm1347 = vcmp.ne.s32.totalorder %v1343, %v1345
      %vm1348 = vmpackc.low %vm1347, %vm1346
      %v1349 = vsel %vm1334, %v518, 0
      %v1350 = vsel %vm1341, %v511, 0
      %v1351 = vsel %vm1348, %v524, 0
      %v1352 = vsel %vm1334, %v521, 0
      %v1353 = vsel %vm1341, %v512, 0
      %v1354 = vsel %vm1348, %v527, 0
      %1355 = vrot.lane.b32.xlu0 %v678, 67
      %v1356 = vpop.permute.xlu0 %1355
      %1357 = vrot.lane.b32.xlu0 %v679, 67
      %v1358 = vpop.permute.xlu0 %1357
      %vm1359 = vcmask 547840
      %v1360 = vsel %vm1359, %v1356, %v1358
      %v1361 = vunpack.c.l.b16 %v1356
      %v1362 = vunpack.c.h.b16 %v1356
      %v1363 = vunpack.c.l.b16 0
      %v1364 = vunpack.c.h.b16 0
      %vm1365 = vcmp.ne.s32.totalorder %v1361, %v1363
      %vm1366 = vcmp.ne.s32.totalorder %v1362, %v1364
      %vm1367 = vmpackc.low %vm1366, %vm1365
      %v1368 = vunpack.c.l.b16 %v1360
      %v1369 = vunpack.c.h.b16 %v1360
      %v1370 = vunpack.c.l.b16 0
      %v1371 = vunpack.c.h.b16 0
      %vm1372 = vcmp.ne.s32.totalorder %v1368, %v1370
      %vm1373 = vcmp.ne.s32.totalorder %v1369, %v1371
      %vm1374 = vmpackc.low %vm1373, %vm1372
      %v1375 = vunpack.c.l.b16 %v1358
      %v1376 = vunpack.c.h.b16 %v1358
      %v1377 = vunpack.c.l.b16 0
      %v1378 = vunpack.c.h.b16 0
      %vm1379 = vcmp.ne.s32.totalorder %v1375, %v1377
      %vm1380 = vcmp.ne.s32.totalorder %v1376, %v1378
      %vm1381 = vmpackc.low %vm1380, %vm1379
      %v1382 = vsel %vm1367, %v518, 0
      %v1383 = vsel %vm1374, %v511, 0
      %v1384 = vsel %vm1381, %v524, 0
      %v1385 = vsel %vm1367, %v521, 0
      %v1386 = vsel %vm1374, %v512, 0
      %v1387 = vsel %vm1381, %v527, 0
      %1388 = vrot.lane.b32.xlu0 %v727, 68
      %v1389 = vpop.permute.xlu0 %1388
      %1390 = vrot.lane.b32.xlu0 %v728, 68
      %v1391 = vpop.permute.xlu0 %1390
      %vm1392 = vcmask 556032
      %v1393 = vsel %vm1392, %v1389, %v1391
      %v1394 = vunpack.c.l.b16 %v1389
      %v1395 = vunpack.c.h.b16 %v1389
      %v1396 = vunpack.c.l.b16 0
      %v1397 = vunpack.c.h.b16 0
      %vm1398 = vcmp.ne.s32.totalorder %v1394, %v1396
      %vm1399 = vcmp.ne.s32.totalorder %v1395, %v1397
      %vm1400 = vmpackc.low %vm1399, %vm1398
      %v1401 = vunpack.c.l.b16 %v1393
      %v1402 = vunpack.c.h.b16 %v1393
      %v1403 = vunpack.c.l.b16 0
      %v1404 = vunpack.c.h.b16 0
      %vm1405 = vcmp.ne.s32.totalorder %v1401, %v1403
      %vm1406 = vcmp.ne.s32.totalorder %v1402, %v1404
      %vm1407 = vmpackc.low %vm1406, %vm1405
      %v1408 = vunpack.c.l.b16 %v1391
      %v1409 = vunpack.c.h.b16 %v1391
      %v1410 = vunpack.c.l.b16 0
      %v1411 = vunpack.c.h.b16 0
      %vm1412 = vcmp.ne.s32.totalorder %v1408, %v1410
      %vm1413 = vcmp.ne.s32.totalorder %v1409, %v1411
      %vm1414 = vmpackc.low %vm1413, %vm1412
      %v1415 = vsel %vm1400, %v518, 0
      %v1416 = vsel %vm1407, %v511, 0
      %v1417 = vsel %vm1414, %v524, 0
      %v1418 = vsel %vm1400, %v521, 0
      %v1419 = vsel %vm1407, %v512, 0
      %v1420 = vsel %vm1414, %v527, 0
      %1427 = vrot.lane.b32.xlu0 %v611, 127
      %v1428 = vpop.permute.xlu0 %1427
      %1429 = vrot.lane.b32.xlu0 %v612, 127
      %v1430 = vpop.permute.xlu0 %1429
      %1431 = vrot.lane.b32.xlu0 %v613, 127
      %v1432 = vpop.permute.xlu0 %1431
      %1433 = vrot.lane.b32.xlu0 %v614, 127
      %v1434 = vpop.permute.xlu0 %1433
      %1435 = vrot.lane.b32.xlu0 %v615, 127
      %v1436 = vpop.permute.xlu0 %1435
      %1437 = vrot.lane.b32.xlu0 %v616, 127
      %v1438 = vpop.permute.xlu0 %1437
      %vm1439 = vcmask 1039360
      %v1440 = vsel %vm1439, %v1428, %v1430
      %v1441 = vsel %vm1439, %v1430, %v1432
      %v1442 = vsel %vm1439, %v1434, %v1436
      %v1443 = vsel %vm1439, %v1436, %v1438
      %1454 = vrot.lane.b32.xlu0 %v658, 126
      %v1455 = vpop.permute.xlu0 %1454
      %1456 = vrot.lane.b32.xlu0 %v659, 126
      %v1457 = vpop.permute.xlu0 %1456
      %1458 = vrot.lane.b32.xlu0 %v660, 126
      %v1459 = vpop.permute.xlu0 %1458
      %1460 = vrot.lane.b32.xlu0 %v661, 126
      %v1461 = vpop.permute.xlu0 %1460
      %1462 = vrot.lane.b32.xlu0 %v662, 126
      %v1463 = vpop.permute.xlu0 %1462
      %1464 = vrot.lane.b32.xlu0 %v663, 126
      %v1465 = vpop.permute.xlu0 %1464
      %vm1466 = vcmask 1031168
      %v1467 = vsel %vm1466, %v1455, %v1457
      %v1468 = vsel %vm1466, %v1457, %v1459
      %v1469 = vsel %vm1466, %v1461, %v1463
      %v1470 = vsel %vm1466, %v1463, %v1465
      %1481 = vrot.lane.b32.xlu0 %v707, 125
      %v1482 = vpop.permute.xlu0 %1481
      %1483 = vrot.lane.b32.xlu0 %v708, 125
      %v1484 = vpop.permute.xlu0 %1483
      %1485 = vrot.lane.b32.xlu0 %v709, 125
      %v1486 = vpop.permute.xlu0 %1485
      %1487 = vrot.lane.b32.xlu0 %v710, 125
      %v1488 = vpop.permute.xlu0 %1487
      %1489 = vrot.lane.b32.xlu0 %v711, 125
      %v1490 = vpop.permute.xlu0 %1489
      %1491 = vrot.lane.b32.xlu0 %v712, 125
      %v1492 = vpop.permute.xlu0 %1491
      %vm1493 = vcmask 1022976
      %v1494 = vsel %vm1493, %v1482, %v1484
      %v1495 = vsel %vm1493, %v1484, %v1486
      %v1496 = vsel %vm1493, %v1488, %v1490
      %v1497 = vsel %vm1493, %v1490, %v1492
      %1508 = vrot.lane.b32.xlu0 %v756, 124
      %v1509 = vpop.permute.xlu0 %1508
      %1510 = vrot.lane.b32.xlu0 %v757, 124
      %v1511 = vpop.permute.xlu0 %1510
      %1512 = vrot.lane.b32.xlu0 %v758, 124
      %v1513 = vpop.permute.xlu0 %1512
      %1514 = vrot.lane.b32.xlu0 %v759, 124
      %v1515 = vpop.permute.xlu0 %1514
      %1516 = vrot.lane.b32.xlu0 %v760, 124
      %v1517 = vpop.permute.xlu0 %1516
      %1518 = vrot.lane.b32.xlu0 %v761, 124
      %v1519 = vpop.permute.xlu0 %1518
      %vm1520 = vcmask 1014784
      %v1521 = vsel %vm1520, %v1509, %v1511
      %v1522 = vsel %vm1520, %v1511, %v1513
      %v1523 = vsel %vm1520, %v1515, %v1517
      %v1524 = vsel %vm1520, %v1517, %v1519
      %1535 = vrot.lane.b32.xlu0 %v789, 112
      %v1536 = vpop.permute.xlu0 %1535
      %1537 = vrot.lane.b32.xlu0 %v790, 112
      %v1538 = vpop.permute.xlu0 %1537
      %1539 = vrot.lane.b32.xlu0 %v791, 112
      %v1540 = vpop.permute.xlu0 %1539
      %1541 = vrot.lane.b32.xlu0 %v792, 112
      %v1542 = vpop.permute.xlu0 %1541
      %1543 = vrot.lane.b32.xlu0 %v793, 112
      %v1544 = vpop.permute.xlu0 %1543
      %1545 = vrot.lane.b32.xlu0 %v794, 112
      %v1546 = vpop.permute.xlu0 %1545
      %vm1547 = vcmask 916480
      %v1548 = vsel %vm1547, %v1536, %v1538
      %v1549 = vsel %vm1547, %v1538, %v1540
      %v1550 = vsel %vm1547, %v1542, %v1544
      %v1551 = vsel %vm1547, %v1544, %v1546
      %1562 = vrot.lane.b32.xlu0 %v822, 111
      %v1563 = vpop.permute.xlu0 %1562
      %1564 = vrot.lane.b32.xlu0 %v823, 111
      %v1565 = vpop.permute.xlu0 %1564
      %1566 = vrot.lane.b32.xlu0 %v824, 111
      %v1567 = vpop.permute.xlu0 %1566
      %1568 = vrot.lane.b32.xlu0 %v825, 111
      %v1569 = vpop.permute.xlu0 %1568
      %1570 = vrot.lane.b32.xlu0 %v826, 111
      %v1571 = vpop.permute.xlu0 %1570
      %1572 = vrot.lane.b32.xlu0 %v827, 111
      %v1573 = vpop.permute.xlu0 %1572
      %vm1574 = vcmask 908288
      %v1575 = vsel %vm1574, %v1563, %v1565
      %v1576 = vsel %vm1574, %v1565, %v1567
      %v1577 = vsel %vm1574, %v1569, %v1571
      %v1578 = vsel %vm1574, %v1571, %v1573
      %1589 = vrot.lane.b32.xlu0 %v855, 110
      %v1590 = vpop.permute.xlu0 %1589
      %1591 = vrot.lane.b32.xlu0 %v856, 110
      %v1592 = vpop.permute.xlu0 %1591
      %1593 = vrot.lane.b32.xlu0 %v857, 110
      %v1594 = vpop.permute.xlu0 %1593
      %1595 = vrot.lane.b32.xlu0 %v858, 110
      %v1596 = vpop.permute.xlu0 %1595
      %1597 = vrot.lane.b32.xlu0 %v859, 110
      %v1598 = vpop.permute.xlu0 %1597
      %1599 = vrot.lane.b32.xlu0 %v860, 110
      %v1600 = vpop.permute.xlu0 %1599
      %vm1601 = vcmask 900096
      %v1602 = vsel %vm1601, %v1590, %v1592
      %v1603 = vsel %vm1601, %v1592, %v1594
      %v1604 = vsel %vm1601, %v1596, %v1598
      %v1605 = vsel %vm1601, %v1598, %v1600
      %1616 = vrot.lane.b32.xlu0 %v888, 109
      %v1617 = vpop.permute.xlu0 %1616
      %1618 = vrot.lane.b32.xlu0 %v889, 109
      %v1619 = vpop.permute.xlu0 %1618
      %1620 = vrot.lane.b32.xlu0 %v890, 109
      %v1621 = vpop.permute.xlu0 %1620
      %1622 = vrot.lane.b32.xlu0 %v891, 109
      %v1623 = vpop.permute.xlu0 %1622
      %1624 = vrot.lane.b32.xlu0 %v892, 109
      %v1625 = vpop.permute.xlu0 %1624
      %1626 = vrot.lane.b32.xlu0 %v893, 109
      %v1627 = vpop.permute.xlu0 %1626
      %vm1628 = vcmask 891904
      %v1629 = vsel %vm1628, %v1617, %v1619
      %v1630 = vsel %vm1628, %v1619, %v1621
      %v1631 = vsel %vm1628, %v1623, %v1625
      %v1632 = vsel %vm1628, %v1625, %v1627
      %1643 = vrot.lane.b32.xlu0 %v921, 108
      %v1644 = vpop.permute.xlu0 %1643
      %1645 = vrot.lane.b32.xlu0 %v922, 108
      %v1646 = vpop.permute.xlu0 %1645
      %1647 = vrot.lane.b32.xlu0 %v923, 108
      %v1648 = vpop.permute.xlu0 %1647
      %1649 = vrot.lane.b32.xlu0 %v924, 108
      %v1650 = vpop.permute.xlu0 %1649
      %1651 = vrot.lane.b32.xlu0 %v925, 108
      %v1652 = vpop.permute.xlu0 %1651
      %1653 = vrot.lane.b32.xlu0 %v926, 108
      %v1654 = vpop.permute.xlu0 %1653
      %vm1655 = vcmask 883712
      %v1656 = vsel %vm1655, %v1644, %v1646
      %v1657 = vsel %vm1655, %v1646, %v1648
      %v1658 = vsel %vm1655, %v1650, %v1652
      %v1659 = vsel %vm1655, %v1652, %v1654
      %1670 = vrot.lane.b32.xlu0 %v954, 96
      %v1671 = vpop.permute.xlu0 %1670
      %1672 = vrot.lane.b32.xlu0 %v955, 96
      %v1673 = vpop.permute.xlu0 %1672
      %1674 = vrot.lane.b32.xlu0 %v956, 96
      %v1675 = vpop.permute.xlu0 %1674
      %1676 = vrot.lane.b32.xlu0 %v957, 96
      %v1677 = vpop.permute.xlu0 %1676
      %1678 = vrot.lane.b32.xlu0 %v958, 96
      %v1679 = vpop.permute.xlu0 %1678
      %1680 = vrot.lane.b32.xlu0 %v959, 96
      %v1681 = vpop.permute.xlu0 %1680
      %vm1682 = vcmask 785408
      %v1683 = vsel %vm1682, %v1671, %v1673
      %v1684 = vsel %vm1682, %v1673, %v1675
      %v1685 = vsel %vm1682, %v1677, %v1679
      %v1686 = vsel %vm1682, %v1679, %v1681
      %1697 = vrot.lane.b32.xlu0 %v987, 95
      %v1698 = vpop.permute.xlu0 %1697
      %1699 = vrot.lane.b32.xlu0 %v988, 95
      %v1700 = vpop.permute.xlu0 %1699
      %1701 = vrot.lane.b32.xlu0 %v989, 95
      %v1702 = vpop.permute.xlu0 %1701
      %1703 = vrot.lane.b32.xlu0 %v990, 95
      %v1704 = vpop.permute.xlu0 %1703
      %1705 = vrot.lane.b32.xlu0 %v991, 95
      %v1706 = vpop.permute.xlu0 %1705
      %1707 = vrot.lane.b32.xlu0 %v992, 95
      %v1708 = vpop.permute.xlu0 %1707
      %vm1709 = vcmask 777216
      %v1710 = vsel %vm1709, %v1698, %v1700
      %v1711 = vsel %vm1709, %v1700, %v1702
      %v1712 = vsel %vm1709, %v1704, %v1706
      %v1713 = vsel %vm1709, %v1706, %v1708
      %1724 = vrot.lane.b32.xlu0 %v1019, 94
      %v1725 = vpop.permute.xlu0 %1724
      %1726 = vrot.lane.b32.xlu0 %v1020, 94
      %v1727 = vpop.permute.xlu0 %1726
      %1728 = vrot.lane.b32.xlu0 %v1021, 94
      %v1729 = vpop.permute.xlu0 %1728
      %1730 = vrot.lane.b32.xlu0 %v1022, 94
      %v1731 = vpop.permute.xlu0 %1730
      %1732 = vrot.lane.b32.xlu0 %v1023, 94
      %v1733 = vpop.permute.xlu0 %1732
      %1734 = vrot.lane.b32.xlu0 %v1024, 94
      %v1735 = vpop.permute.xlu0 %1734
      %vm1736 = vcmask 769024
      %v1737 = vsel %vm1736, %v1725, %v1727
      %v1738 = vsel %vm1736, %v1727, %v1729
      %v1739 = vsel %vm1736, %v1731, %v1733
      %v1740 = vsel %vm1736, %v1733, %v1735
      %1751 = vrot.lane.b32.xlu0 %v1052, 93
      %v1752 = vpop.permute.xlu0 %1751
      %1753 = vrot.lane.b32.xlu0 %v1053, 93
      %v1754 = vpop.permute.xlu0 %1753
      %1755 = vrot.lane.b32.xlu0 %v1054, 93
      %v1756 = vpop.permute.xlu0 %1755
      %1757 = vrot.lane.b32.xlu0 %v1055, 93
      %v1758 = vpop.permute.xlu0 %1757
      %1759 = vrot.lane.b32.xlu0 %v1056, 93
      %v1760 = vpop.permute.xlu0 %1759
      %1761 = vrot.lane.b32.xlu0 %v1057, 93
      %v1762 = vpop.permute.xlu0 %1761
      %vm1763 = vcmask 760832
      %v1764 = vsel %vm1763, %v1752, %v1754
      %v1765 = vsel %vm1763, %v1754, %v1756
      %v1766 = vsel %vm1763, %v1758, %v1760
      %v1767 = vsel %vm1763, %v1760, %v1762
      %1778 = vrot.lane.b32.xlu0 %v1085, 92
      %v1779 = vpop.permute.xlu0 %1778
      %1780 = vrot.lane.b32.xlu0 %v1086, 92
      %v1781 = vpop.permute.xlu0 %1780
      %1782 = vrot.lane.b32.xlu0 %v1087, 92
      %v1783 = vpop.permute.xlu0 %1782
      %1784 = vrot.lane.b32.xlu0 %v1088, 92
      %v1785 = vpop.permute.xlu0 %1784
      %1786 = vrot.lane.b32.xlu0 %v1089, 92
      %v1787 = vpop.permute.xlu0 %1786
      %1788 = vrot.lane.b32.xlu0 %v1090, 92
      %v1789 = vpop.permute.xlu0 %1788
      %vm1790 = vcmask 752640
      %v1791 = vsel %vm1790, %v1779, %v1781
      %v1792 = vsel %vm1790, %v1781, %v1783
      %v1793 = vsel %vm1790, %v1785, %v1787
      %v1794 = vsel %vm1790, %v1787, %v1789
      %1805 = vrot.lane.b32.xlu0 %v1118, 80
      %v1806 = vpop.permute.xlu0 %1805
      %1807 = vrot.lane.b32.xlu0 %v1119, 80
      %v1808 = vpop.permute.xlu0 %1807
      %1809 = vrot.lane.b32.xlu0 %v1120, 80
      %v1810 = vpop.permute.xlu0 %1809
      %1811 = vrot.lane.b32.xlu0 %v1121, 80
      %v1812 = vpop.permute.xlu0 %1811
      %1813 = vrot.lane.b32.xlu0 %v1122, 80
      %v1814 = vpop.permute.xlu0 %1813
      %1815 = vrot.lane.b32.xlu0 %v1123, 80
      %v1816 = vpop.permute.xlu0 %1815
      %vm1817 = vcmask 654336
      %v1818 = vsel %vm1817, %v1806, %v1808
      %v1819 = vsel %vm1817, %v1808, %v1810
      %v1820 = vsel %vm1817, %v1812, %v1814
      %v1821 = vsel %vm1817, %v1814, %v1816
      %1832 = vrot.lane.b32.xlu0 %v1184, 127
      %v1833 = vpop.permute.xlu0 %1832
      %1834 = vrot.lane.b32.xlu0 %v1185, 127
      %v1835 = vpop.permute.xlu0 %1834
      %1836 = vrot.lane.b32.xlu0 %v1186, 127
      %v1837 = vpop.permute.xlu0 %1836
      %1838 = vrot.lane.b32.xlu0 %v1187, 127
      %v1839 = vpop.permute.xlu0 %1838
      %1840 = vrot.lane.b32.xlu0 %v1188, 127
      %v1841 = vpop.permute.xlu0 %1840
      %1842 = vrot.lane.b32.xlu0 %v1189, 127
      %v1843 = vpop.permute.xlu0 %1842
      %v1844 = vsel %vm1439, %v1833, %v1835
      %v1845 = vsel %vm1439, %v1835, %v1837
      %v1846 = vsel %vm1439, %v1839, %v1841
      %v1847 = vsel %vm1439, %v1841, %v1843
      %1854 = vrot.lane.b32.xlu0 %v1217, 126
      %v1855 = vpop.permute.xlu0 %1854
      %1856 = vrot.lane.b32.xlu0 %v1218, 126
      %v1857 = vpop.permute.xlu0 %1856
      %1858 = vrot.lane.b32.xlu0 %v1219, 126
      %v1859 = vpop.permute.xlu0 %1858
      %1860 = vrot.lane.b32.xlu0 %v1220, 126
      %v1861 = vpop.permute.xlu0 %1860
      %1862 = vrot.lane.b32.xlu0 %v1221, 126
      %v1863 = vpop.permute.xlu0 %1862
      %1864 = vrot.lane.b32.xlu0 %v1222, 126
      %v1865 = vpop.permute.xlu0 %1864
      %v1866 = vsel %vm1466, %v1855, %v1857
      %v1867 = vsel %vm1466, %v1857, %v1859
      %v1868 = vsel %vm1466, %v1861, %v1863
      %v1869 = vsel %vm1466, %v1863, %v1865
      %1876 = vrot.lane.b32.xlu0 %v1250, 125
      %v1877 = vpop.permute.xlu0 %1876
      %1878 = vrot.lane.b32.xlu0 %v1251, 125
      %v1879 = vpop.permute.xlu0 %1878
      %1880 = vrot.lane.b32.xlu0 %v1252, 125
      %v1881 = vpop.permute.xlu0 %1880
      %1882 = vrot.lane.b32.xlu0 %v1253, 125
      %v1883 = vpop.permute.xlu0 %1882
      %1884 = vrot.lane.b32.xlu0 %v1254, 125
      %v1885 = vpop.permute.xlu0 %1884
      %1886 = vrot.lane.b32.xlu0 %v1255, 125
      %v1887 = vpop.permute.xlu0 %1886
      %v1888 = vsel %vm1493, %v1877, %v1879
      %v1889 = vsel %vm1493, %v1879, %v1881
      %v1890 = vsel %vm1493, %v1883, %v1885
      %v1891 = vsel %vm1493, %v1885, %v1887
      %1898 = vrot.lane.b32.xlu0 %v1283, 113
      %v1899 = vpop.permute.xlu0 %1898
      %1900 = vrot.lane.b32.xlu0 %v1284, 113
      %v1901 = vpop.permute.xlu0 %1900
      %1902 = vrot.lane.b32.xlu0 %v1285, 113
      %v1903 = vpop.permute.xlu0 %1902
      %1904 = vrot.lane.b32.xlu0 %v1286, 113
      %v1905 = vpop.permute.xlu0 %1904
      %1906 = vrot.lane.b32.xlu0 %v1287, 113
      %v1907 = vpop.permute.xlu0 %1906
      %1908 = vrot.lane.b32.xlu0 %v1288, 113
      %v1909 = vpop.permute.xlu0 %1908
      %vm1910 = vcmask 924672
      %v1911 = vsel %vm1910, %v1899, %v1901
      %v1912 = vsel %vm1910, %v1901, %v1903
      %v1913 = vsel %vm1910, %v1905, %v1907
      %v1914 = vsel %vm1910, %v1907, %v1909
      %1921 = vrot.lane.b32.xlu0 %v1316, 112
      %v1922 = vpop.permute.xlu0 %1921
      %1923 = vrot.lane.b32.xlu0 %v1317, 112
      %v1924 = vpop.permute.xlu0 %1923
      %1925 = vrot.lane.b32.xlu0 %v1318, 112
      %v1926 = vpop.permute.xlu0 %1925
      %1927 = vrot.lane.b32.xlu0 %v1319, 112
      %v1928 = vpop.permute.xlu0 %1927
      %1929 = vrot.lane.b32.xlu0 %v1320, 112
      %v1930 = vpop.permute.xlu0 %1929
      %1931 = vrot.lane.b32.xlu0 %v1321, 112
      %v1932 = vpop.permute.xlu0 %1931
      %v1933 = vsel %vm1547, %v1922, %v1924
      %v1934 = vsel %vm1547, %v1924, %v1926
      %v1935 = vsel %vm1547, %v1928, %v1930
      %v1936 = vsel %vm1547, %v1930, %v1932
      %1943 = vrot.lane.b32.xlu0 %v1349, 111
      %v1944 = vpop.permute.xlu0 %1943
      %1945 = vrot.lane.b32.xlu0 %v1350, 111
      %v1946 = vpop.permute.xlu0 %1945
      %1947 = vrot.lane.b32.xlu0 %v1351, 111
      %v1948 = vpop.permute.xlu0 %1947
      %1949 = vrot.lane.b32.xlu0 %v1352, 111
      %v1950 = vpop.permute.xlu0 %1949
      %1951 = vrot.lane.b32.xlu0 %v1353, 111
      %v1952 = vpop.permute.xlu0 %1951
      %1953 = vrot.lane.b32.xlu0 %v1354, 111
      %v1954 = vpop.permute.xlu0 %1953
      %v1955 = vsel %vm1574, %v1944, %v1946
      %v1956 = vsel %vm1574, %v1946, %v1948
      %v1957 = vsel %vm1574, %v1950, %v1952
      %v1958 = vsel %vm1574, %v1952, %v1954
      %1965 = vrot.lane.b32.xlu0 %v1382, 110
      %v1966 = vpop.permute.xlu0 %1965
      %1967 = vrot.lane.b32.xlu0 %v1383, 110
      %v1968 = vpop.permute.xlu0 %1967
      %1969 = vrot.lane.b32.xlu0 %v1384, 110
      %v1970 = vpop.permute.xlu0 %1969
      %1971 = vrot.lane.b32.xlu0 %v1385, 110
      %v1972 = vpop.permute.xlu0 %1971
      %1973 = vrot.lane.b32.xlu0 %v1386, 110
      %v1974 = vpop.permute.xlu0 %1973
      %1975 = vrot.lane.b32.xlu0 %v1387, 110
      %v1976 = vpop.permute.xlu0 %1975
      %v1977 = vsel %vm1601, %v1966, %v1968
      %v1978 = vsel %vm1601, %v1968, %v1970
      %v1979 = vsel %vm1601, %v1972, %v1974
      %v1980 = vsel %vm1601, %v1974, %v1976
      %1987 = vrot.lane.b32.xlu0 %v1415, 109
      %v1988 = vpop.permute.xlu0 %1987
      %1989 = vrot.lane.b32.xlu0 %v1416, 109
      %v1990 = vpop.permute.xlu0 %1989
      %1991 = vrot.lane.b32.xlu0 %v1417, 109
      %v1992 = vpop.permute.xlu0 %1991
      %1993 = vrot.lane.b32.xlu0 %v1418, 109
      %v1994 = vpop.permute.xlu0 %1993
      %1995 = vrot.lane.b32.xlu0 %v1419, 109
      %v1996 = vpop.permute.xlu0 %1995
      %1997 = vrot.lane.b32.xlu0 %v1420, 109
      %v1998 = vpop.permute.xlu0 %1997
      %v1999 = vsel %vm1628, %v1988, %v1990
      %v2000 = vsel %vm1628, %v1990, %v1992
      %v2001 = vsel %vm1628, %v1994, %v1996
      %v2002 = vsel %vm1628, %v1996, %v1998
      %2009 = vrot.lane.b32.xlu0 %v1151, 79
      %v2010 = vpop.permute.xlu0 %2009
      %2011 = vrot.lane.b32.xlu0 %v1152, 79
      %v2012 = vpop.permute.xlu0 %2011
      %2013 = vrot.lane.b32.xlu0 %v1153, 79
      %v2014 = vpop.permute.xlu0 %2013
      %2015 = vrot.lane.b32.xlu0 %v1154, 79
      %v2016 = vpop.permute.xlu0 %2015
      %2017 = vrot.lane.b32.xlu0 %v1155, 79
      %v2018 = vpop.permute.xlu0 %2017
      %2019 = vrot.lane.b32.xlu0 %v1156, 79
      %v2020 = vpop.permute.xlu0 %2019
      %2021 = vrot.lane.b32.xlu0 %v1844, 79
      %v2022 = vpop.permute.xlu0 %2021
      %2023 = vrot.lane.b32.xlu0 %v1845, 79
      %v2024 = vpop.permute.xlu0 %2023
      %2025 = vrot.lane.b32.xlu0 %v1837, 79
      %v2026 = vpop.permute.xlu0 %2025
      %2027 = vrot.lane.b32.xlu0 %v1846, 79
      %v2028 = vpop.permute.xlu0 %2027
      %2029 = vrot.lane.b32.xlu0 %v1847, 79
      %v2030 = vpop.permute.xlu0 %2029
      %2031 = vrot.lane.b32.xlu0 %v1843, 79
      %v2032 = vpop.permute.xlu0 %2031
      %2033 = vrot.lane.b32.xlu0 %v1866, 79
      %v2034 = vpop.permute.xlu0 %2033
      %2035 = vrot.lane.b32.xlu0 %v1867, 79
      %v2036 = vpop.permute.xlu0 %2035
      %2037 = vrot.lane.b32.xlu0 %v1859, 79
      %v2038 = vpop.permute.xlu0 %2037
      %2039 = vrot.lane.b32.xlu0 %v1868, 79
      %v2040 = vpop.permute.xlu0 %2039
      %2041 = vrot.lane.b32.xlu0 %v1869, 79
      %v2042 = vpop.permute.xlu0 %2041
      %2043 = vrot.lane.b32.xlu0 %v1865, 79
      %v2044 = vpop.permute.xlu0 %2043
      %2045 = vrot.lane.b32.xlu0 %v1888, 79
      %v2046 = vpop.permute.xlu0 %2045
      %2047 = vrot.lane.b32.xlu0 %v1889, 79
      %v2048 = vpop.permute.xlu0 %2047
      %2049 = vrot.lane.b32.xlu0 %v1881, 79
      %v2050 = vpop.permute.xlu0 %2049
      %2051 = vrot.lane.b32.xlu0 %v1890, 79
      %v2052 = vpop.permute.xlu0 %2051
      %2053 = vrot.lane.b32.xlu0 %v1891, 79
      %v2054 = vpop.permute.xlu0 %2053
      %2055 = vrot.lane.b32.xlu0 %v1887, 79
      %v2056 = vpop.permute.xlu0 %2055
      %2057 = vrot.lane.b32.xlu0 %v1911, 79
      %v2058 = vpop.permute.xlu0 %2057
      %2059 = vrot.lane.b32.xlu0 %v1912, 79
      %v2060 = vpop.permute.xlu0 %2059
      %2061 = vrot.lane.b32.xlu0 %v1903, 79
      %v2062 = vpop.permute.xlu0 %2061
      %2063 = vrot.lane.b32.xlu0 %v1913, 79
      %v2064 = vpop.permute.xlu0 %2063
      %2065 = vrot.lane.b32.xlu0 %v1914, 79
      %v2066 = vpop.permute.xlu0 %2065
      %2067 = vrot.lane.b32.xlu0 %v1909, 79
      %v2068 = vpop.permute.xlu0 %2067
      %2069 = vrot.lane.b32.xlu0 %v1933, 79
      %v2070 = vpop.permute.xlu0 %2069
      %2071 = vrot.lane.b32.xlu0 %v1934, 79
      %v2072 = vpop.permute.xlu0 %2071
      %2073 = vrot.lane.b32.xlu0 %v1926, 79
      %v2074 = vpop.permute.xlu0 %2073
      %2075 = vrot.lane.b32.xlu0 %v1935, 79
      %v2076 = vpop.permute.xlu0 %2075
      %2077 = vrot.lane.b32.xlu0 %v1936, 79
      %v2078 = vpop.permute.xlu0 %2077
      %2079 = vrot.lane.b32.xlu0 %v1932, 79
      %v2080 = vpop.permute.xlu0 %2079
      %2081 = vrot.lane.b32.xlu0 %v1955, 79
      %v2082 = vpop.permute.xlu0 %2081
      %2083 = vrot.lane.b32.xlu0 %v1956, 79
      %v2084 = vpop.permute.xlu0 %2083
      %2085 = vrot.lane.b32.xlu0 %v1948, 79
      %v2086 = vpop.permute.xlu0 %2085
      %2087 = vrot.lane.b32.xlu0 %v1957, 79
      %v2088 = vpop.permute.xlu0 %2087
      %2089 = vrot.lane.b32.xlu0 %v1958, 79
      %v2090 = vpop.permute.xlu0 %2089
      %2091 = vrot.lane.b32.xlu0 %v1954, 79
      %v2092 = vpop.permute.xlu0 %2091
      %2093 = vrot.lane.b32.xlu0 %v1977, 79
      %v2094 = vpop.permute.xlu0 %2093
      %2095 = vrot.lane.b32.xlu0 %v1978, 79
      %v2096 = vpop.permute.xlu0 %2095
      %2097 = vrot.lane.b32.xlu0 %v1970, 79
      %v2098 = vpop.permute.xlu0 %2097
      %2099 = vrot.lane.b32.xlu0 %v1979, 79
      %v2100 = vpop.permute.xlu0 %2099
      %2101 = vrot.lane.b32.xlu0 %v1980, 79
      %v2102 = vpop.permute.xlu0 %2101
      %2103 = vrot.lane.b32.xlu0 %v1976, 79
      %v2104 = vpop.permute.xlu0 %2103
      %2105 = vrot.lane.b32.xlu0 %v1999, 79
      %v2106 = vpop.permute.xlu0 %2105
      %2107 = vrot.lane.b32.xlu0 %v2000, 79
      %v2108 = vpop.permute.xlu0 %2107
      %2109 = vrot.lane.b32.xlu0 %v1992, 79
      %v2110 = vpop.permute.xlu0 %2109
      %2111 = vrot.lane.b32.xlu0 %v2001, 79
      %v2112 = vpop.permute.xlu0 %2111
      %2113 = vrot.lane.b32.xlu0 %v2002, 79
      %v2114 = vpop.permute.xlu0 %2113
      %2115 = vrot.lane.b32.xlu0 %v1998, 79
      %v2116 = vpop.permute.xlu0 %2115
      %vm2117 = vcmask 646144
      %v2118 = vsel %vm2117, %v2010, %v2012
      %v2119 = vsel %vm2117, %v2012, %v2014
      %v2120 = vsel %vm2117, %v2016, %v2018
      %v2121 = vsel %vm2117, %v2018, %v2020
      %v2122 = vsel %vm2117, %v2022, %v2024
      %v2123 = vsel %vm2117, %v2024, %v2026
      %v2124 = vsel %vm2117, %v2028, %v2030
      %v2125 = vsel %vm2117, %v2030, %v2032
      %v2126 = vsel %vm2117, %v2034, %v2036
      %v2127 = vsel %vm2117, %v2036, %v2038
      %v2128 = vsel %vm2117, %v2040, %v2042
      %v2129 = vsel %vm2117, %v2042, %v2044
      %v2130 = vsel %vm2117, %v2046, %v2048
      %v2131 = vsel %vm2117, %v2048, %v2050
      %v2132 = vsel %vm2117, %v2052, %v2054
      %v2133 = vsel %vm2117, %v2054, %v2056
      %v2134 = vsel %vm2117, %v2058, %v2060
      %v2135 = vsel %vm2117, %v2060, %v2062
      %v2136 = vsel %vm2117, %v2064, %v2066
      %v2137 = vsel %vm2117, %v2066, %v2068
      %v2138 = vsel %vm2117, %v2070, %v2072
      %v2139 = vsel %vm2117, %v2072, %v2074
      %v2140 = vsel %vm2117, %v2076, %v2078
      %v2141 = vsel %vm2117, %v2078, %v2080
      %v2142 = vsel %vm2117, %v2082, %v2084
      %v2143 = vsel %vm2117, %v2084, %v2086
      %v2144 = vsel %vm2117, %v2088, %v2090
      %v2145 = vsel %vm2117, %v2090, %v2092
      %v2146 = vsel %vm2117, %v2094, %v2096
      %v2147 = vsel %vm2117, %v2096, %v2098
      %v2148 = vsel %vm2117, %v2100, %v2102
      %v2149 = vsel %vm2117, %v2102, %v2104
      %v2150 = vsel %vm2117, %v2106, %v2108
      %v2151 = vsel %vm2117, %v2108, %v2110
      %v2152 = vsel %vm2117, %v2112, %v2114
      %v2153 = vsel %vm2117, %v2114, %v2116
      %2191 = vset.pattern.permute.xlu0 0
      %2192 = vperm.xlu0 %2191, %v481
      %v2193 = vpop.permute.xlu0 %2192
      %v2199 = vunpack.c.l.b16 %v477
      %v2200 = vunpack.c.h.b16 %v477
      %v2201 = vunpack.c.l.b16 %v478
      %v2202 = vunpack.c.h.b16 %v478
      %v2203 = vunpack.c.l.b16 %v479
      %v2204 = vunpack.c.h.b16 %v479
      %v2205 = vunpack.c.l.b16 %v480
      %v2206 = vpack.c.b16 %v2199, %v2199
      %v2207 = vpack.c.b16 %v2200, %v2200
      %v2208 = vpack.c.b16 %v2201, %v2201
      %v2209 = vpack.c.b16 %v2202, %v2202
      %v2210 = vpack.c.b16 %v2203, %v2203
      %v2211 = vpack.c.b16 %v2204, %v2204
      %v2212 = vpack.c.b16 %v2205, %v2205
      %vm2219 = vcmask 261120
      %v2221 = vsel %vm2219, %v2212, 0
      %2223 = vmatpush.bf16.msra.mxu0 %v1496
      %2224 = vmatpush.bf16.msra.mxu0 %v1494
      %2225 = vmatpush.bf16.msra.mxu0 %v1469
      %2226 = vmatpush.bf16.msra.mxu0 %v1467
      %2227 = vmatpush.bf16.msra.mxu0 %v1442
      %2228 = vmatpush.bf16.msra.mxu0 %v1440
      %2229 = vmatpush.bf16.msra.mxu0 %v566
      %2230 = vmatpush.bf16.msra.mxu0 %v564
      %2231 = vmatmul.bf16.gmra.mxu0 %v2206
      %v2232 = vpop.f32.mrf.mxu0
      %v2233 = vadd.f32 %v2193, %v2232
      %v2234 = vpop.f32.mrf.mxu0
      %2235 = vdwg.mxu0
      %2236 = vmatpush.bf16.msra.mxu0 %v1604
      %2237 = vmatpush.bf16.msra.mxu0 %v1602
      %2238 = vmatpush.bf16.msra.mxu0 %v1577
      %2239 = vmatpush.bf16.msra.mxu0 %v1575
      %2240 = vmatpush.bf16.msra.mxu0 %v1550
      %2241 = vmatpush.bf16.msra.mxu0 %v1548
      %2242 = vmatpush.bf16.msra.mxu0 %v1523
      %2243 = vmatpush.bf16.msra.mxu0 %v1521
      %2244 = vmatmul.bf16.gmra.mxu0 %v2207
      %v2245 = vpop.f32.mrf.mxu0
      %v2246 = vadd.f32 %v2233, %v2245
      %v2247 = vpop.f32.mrf.mxu0
      %2248 = vdwg.mxu0
      %2249 = vmatpush.bf16.msra.mxu0 %v1712
      %2250 = vmatpush.bf16.msra.mxu0 %v1710
      %2251 = vmatpush.bf16.msra.mxu0 %v1685
      %2252 = vmatpush.bf16.msra.mxu0 %v1683
      %2253 = vmatpush.bf16.msra.mxu0 %v1658
      %2254 = vmatpush.bf16.msra.mxu0 %v1656
      %2255 = vmatpush.bf16.msra.mxu0 %v1631
      %2256 = vmatpush.bf16.msra.mxu0 %v1629
      %2257 = vmatmul.bf16.gmra.mxu0 %v2208
      %v2258 = vpop.f32.mrf.mxu0
      %v2259 = vadd.f32 %v2246, %v2258
      %v2260 = vpop.f32.mrf.mxu0
      %2261 = vdwg.mxu0
      %2262 = vmatpush.bf16.msra.mxu0 %v1820
      %2263 = vmatpush.bf16.msra.mxu0 %v1818
      %2264 = vmatpush.bf16.msra.mxu0 %v1793
      %2265 = vmatpush.bf16.msra.mxu0 %v1791
      %2266 = vmatpush.bf16.msra.mxu0 %v1766
      %2267 = vmatpush.bf16.msra.mxu0 %v1764
      %2268 = vmatpush.bf16.msra.mxu0 %v1739
      %2269 = vmatpush.bf16.msra.mxu0 %v1737
      %2270 = vmatmul.bf16.gmra.mxu0 %v2209
      %v2271 = vpop.f32.mrf.mxu0
      %v2272 = vadd.f32 %v2259, %v2271
      %v2273 = vpop.f32.mrf.mxu0
      %2274 = vdwg.mxu0
      %2275 = vmatpush.bf16.msra.mxu0 %v2132
      %2276 = vmatpush.bf16.msra.mxu0 %v2130
      %2277 = vmatpush.bf16.msra.mxu0 %v2128
      %2278 = vmatpush.bf16.msra.mxu0 %v2126
      %2279 = vmatpush.bf16.msra.mxu0 %v2124
      %2280 = vmatpush.bf16.msra.mxu0 %v2122
      %2281 = vmatpush.bf16.msra.mxu0 %v2120
      %2282 = vmatpush.bf16.msra.mxu0 %v2118
      %2283 = vmatmul.bf16.gmra.mxu0 %v2210
      %v2284 = vpop.f32.mrf.mxu0
      %v2285 = vadd.f32 %v2272, %v2284
      %v2286 = vpop.f32.mrf.mxu0
      %2287 = vdwg.mxu0
      %2288 = vmatpush.bf16.msra.mxu0 %v2148
      %2289 = vmatpush.bf16.msra.mxu0 %v2146
      %2290 = vmatpush.bf16.msra.mxu0 %v2144
      %2291 = vmatpush.bf16.msra.mxu0 %v2142
      %2292 = vmatpush.bf16.msra.mxu0 %v2140
      %2293 = vmatpush.bf16.msra.mxu0 %v2138
      %2294 = vmatpush.bf16.msra.mxu0 %v2136
      %2295 = vmatpush.bf16.msra.mxu0 %v2134
      %2296 = vmatmul.bf16.gmra.mxu0 %v2211
      %v2297 = vpop.f32.mrf.mxu0
      %v2298 = vadd.f32 %v2285, %v2297
      %v2299 = vpop.f32.mrf.mxu0
      %2300 = vdwg.mxu0
      %2301 = vmatpush.bf16.msra.mxu0 0
      %2302 = vmatpush.bf16.msra.mxu0 0
      %2303 = vmatpush.bf16.msra.mxu0 0
      %2304 = vmatpush.bf16.msra.mxu0 0
      %2305 = vmatpush.bf16.msra.mxu0 0
      %2306 = vmatpush.bf16.msra.mxu0 0
      %2307 = vmatpush.bf16.msra.mxu0 %v2152
      %2308 = vmatpush.bf16.msra.mxu0 %v2150
      %2309 = vmatmul.bf16.gmra.mxu0 %v2221
      %v2310 = vpop.f32.mrf.mxu0
      %v2311 = vadd.f32 %v2298, %v2310
      %v2312 = vpop.f32.mrf.mxu0
      %2313 = vdwg.mxu0
      %2314 = vmatpush.bf16.msra.mxu0 %v1497
      %2315 = vmatpush.bf16.msra.mxu0 %v1495
      %2316 = vmatpush.bf16.msra.mxu0 %v1470
      %2317 = vmatpush.bf16.msra.mxu0 %v1468
      %2318 = vmatpush.bf16.msra.mxu0 %v1443
      %2319 = vmatpush.bf16.msra.mxu0 %v1441
      %2320 = vmatpush.bf16.msra.mxu0 %v567
      %2321 = vmatpush.bf16.msra.mxu0 %v565
      %2322 = vmatmul.bf16.gmra.mxu0 %v2206
      %v2323 = vpop.f32.mrf.mxu0
      %v2324 = vadd.f32 %v2193, %v2323
      %v2325 = vpop.f32.mrf.mxu0
      %2326 = vdwg.mxu0
      %2327 = vmatpush.bf16.msra.mxu0 %v1605
      %2328 = vmatpush.bf16.msra.mxu0 %v1603
      %2329 = vmatpush.bf16.msra.mxu0 %v1578
      %2330 = vmatpush.bf16.msra.mxu0 %v1576
      %2331 = vmatpush.bf16.msra.mxu0 %v1551
      %2332 = vmatpush.bf16.msra.mxu0 %v1549
      %2333 = vmatpush.bf16.msra.mxu0 %v1524
      %2334 = vmatpush.bf16.msra.mxu0 %v1522
      %2335 = vmatmul.bf16.gmra.mxu0 %v2207
      %v2336 = vpop.f32.mrf.mxu0
      %v2337 = vadd.f32 %v2324, %v2336
      %v2338 = vpop.f32.mrf.mxu0
      %2339 = vdwg.mxu0
      %2340 = vmatpush.bf16.msra.mxu0 %v1713
      %2341 = vmatpush.bf16.msra.mxu0 %v1711
      %2342 = vmatpush.bf16.msra.mxu0 %v1686
      %2343 = vmatpush.bf16.msra.mxu0 %v1684
      %2344 = vmatpush.bf16.msra.mxu0 %v1659
      %2345 = vmatpush.bf16.msra.mxu0 %v1657
      %2346 = vmatpush.bf16.msra.mxu0 %v1632
      %2347 = vmatpush.bf16.msra.mxu0 %v1630
      %2348 = vmatmul.bf16.gmra.mxu0 %v2208
      %v2349 = vpop.f32.mrf.mxu0
      %v2350 = vadd.f32 %v2337, %v2349
      %v2351 = vpop.f32.mrf.mxu0
      %2352 = vdwg.mxu0
      %2353 = vmatpush.bf16.msra.mxu0 %v1821
      %2354 = vmatpush.bf16.msra.mxu0 %v1819
      %2355 = vmatpush.bf16.msra.mxu0 %v1794
      %2356 = vmatpush.bf16.msra.mxu0 %v1792
      %2357 = vmatpush.bf16.msra.mxu0 %v1767
      %2358 = vmatpush.bf16.msra.mxu0 %v1765
      %2359 = vmatpush.bf16.msra.mxu0 %v1740
      %2360 = vmatpush.bf16.msra.mxu0 %v1738
      %2361 = vmatmul.bf16.gmra.mxu0 %v2209
      %v2362 = vpop.f32.mrf.mxu0
      %v2363 = vadd.f32 %v2350, %v2362
      %v2364 = vpop.f32.mrf.mxu0
      %2365 = vdwg.mxu0
      %2366 = vmatpush.bf16.msra.mxu0 %v2133
      %2367 = vmatpush.bf16.msra.mxu0 %v2131
      %2368 = vmatpush.bf16.msra.mxu0 %v2129
      %2369 = vmatpush.bf16.msra.mxu0 %v2127
      %2370 = vmatpush.bf16.msra.mxu0 %v2125
      %2371 = vmatpush.bf16.msra.mxu0 %v2123
      %2372 = vmatpush.bf16.msra.mxu0 %v2121
      %2373 = vmatpush.bf16.msra.mxu0 %v2119
      %2374 = vmatmul.bf16.gmra.mxu0 %v2210
      %v2375 = vpop.f32.mrf.mxu0
      %v2376 = vadd.f32 %v2363, %v2375
      %v2377 = vpop.f32.mrf.mxu0
      %2378 = vdwg.mxu0
      %2379 = vmatpush.bf16.msra.mxu0 %v2149
      %2380 = vmatpush.bf16.msra.mxu0 %v2147
      %2381 = vmatpush.bf16.msra.mxu0 %v2145
      %2382 = vmatpush.bf16.msra.mxu0 %v2143
      %2383 = vmatpush.bf16.msra.mxu0 %v2141
      %2384 = vmatpush.bf16.msra.mxu0 %v2139
      %2385 = vmatpush.bf16.msra.mxu0 %v2137
      %2386 = vmatpush.bf16.msra.mxu0 %v2135
      %2387 = vmatmul.bf16.gmra.mxu0 %v2211
      %v2388 = vpop.f32.mrf.mxu0
      %v2389 = vadd.f32 %v2376, %v2388
      %v2390 = vpop.f32.mrf.mxu0
      %2391 = vdwg.mxu0
      %2392 = vmatpush.bf16.msra.mxu0 0
      %2393 = vmatpush.bf16.msra.mxu0 0
      %2394 = vmatpush.bf16.msra.mxu0 0
      %2395 = vmatpush.bf16.msra.mxu0 0
      %2396 = vmatpush.bf16.msra.mxu0 0
      %2397 = vmatpush.bf16.msra.mxu0 0
      %2398 = vmatpush.bf16.msra.mxu0 %v2153
      %2399 = vmatpush.bf16.msra.mxu0 %v2151
      %2400 = vmatmul.bf16.gmra.mxu0 %v2221
      %v2401 = vpop.f32.mrf.mxu0
      %v2402 = vadd.f32 %v2389, %v2401
      %v2403 = vpop.f32.mrf.mxu0
      %2404 = vdwg.mxu0
      %v2405 = vmax.f32 %v2311, 0.0
      %v2406 = vmax.f32 %v2402, 0.0
      %2410 = vrot.lane.b32.xlu0 %v2405, 127
      %v2411 = vpop.permute.xlu0 %2410
      %2412 = vrot.lane.b32.xlu0 %v2406, 127
      %v2413 = vpop.permute.xlu0 %2412
      %2414 = vrot.lane.b32.xlu0 0.0, 127
      %v2415 = vpop.permute.xlu0 %2414
      %vm2416 = vcmask 1039360
      %v2417 = vsel %vm2416, %v2411, %v2413
      %v2418 = vsel %vm2416, %v2413, %v2415
      %v2421 = vmax.f32 %v2405, %v2417
      %v2422 = vmax.f32 %v2406, %v2418
      %2423 = vrot.lane.b32.xlu0 %v2405, 126
      %v2424 = vpop.permute.xlu0 %2423
      %2425 = vrot.lane.b32.xlu0 %v2406, 126
      %v2426 = vpop.permute.xlu0 %2425
      %2427 = vrot.lane.b32.xlu0 0.0, 126
      %v2428 = vpop.permute.xlu0 %2427
      %vm2429 = vcmask 1031168
      %v2430 = vsel %vm2429, %v2424, %v2426
      %v2431 = vsel %vm2429, %v2426, %v2428
      %v2434 = vmax.f32 %v2421, %v2430
      %v2435 = vmax.f32 %v2422, %v2431
      %2436 = vrot.lane.b32.xlu0 %v2405, 125
      %v2437 = vpop.permute.xlu0 %2436
      %2438 = vrot.lane.b32.xlu0 %v2406, 125
      %v2439 = vpop.permute.xlu0 %2438
      %2440 = vrot.lane.b32.xlu0 0.0, 125
      %v2441 = vpop.permute.xlu0 %2440
      %vm2442 = vcmask 1022976
      %v2443 = vsel %vm2442, %v2437, %v2439
      %v2444 = vsel %vm2442, %v2439, %v2441
      %v2447 = vmax.f32 %v2434, %v2443
      %v2448 = vmax.f32 %v2435, %v2444
      %2449 = vrot.lane.b32.xlu0 %v2405, 112
      %v2450 = vpop.permute.xlu0 %2449
      %2451 = vrot.lane.b32.xlu0 %v2406, 112
      %v2452 = vpop.permute.xlu0 %2451
      %2453 = vrot.lane.b32.xlu0 0.0, 112
      %v2454 = vpop.permute.xlu0 %2453
      %vm2455 = vcmask 916480
      %v2456 = vsel %vm2455, %v2450, %v2452
      %v2457 = vsel %vm2455, %v2452, %v2454
      %v2460 = vmax.f32 %v2447, %v2456
      %v2461 = vmax.f32 %v2448, %v2457
      %2462 = vrot.lane.b32.xlu0 %v2405, 111
      %v2463 = vpop.permute.xlu0 %2462
      %2464 = vrot.lane.b32.xlu0 %v2406, 111
      %v2465 = vpop.permute.xlu0 %2464
      %2466 = vrot.lane.b32.xlu0 0.0, 111
      %v2467 = vpop.permute.xlu0 %2466
      %vm2468 = vcmask 908288
      %v2469 = vsel %vm2468, %v2463, %v2465
      %v2470 = vsel %vm2468, %v2465, %v2467
      %v2473 = vmax.f32 %v2460, %v2469
      %v2474 = vmax.f32 %v2461, %v2470
      %2475 = vrot.lane.b32.xlu0 %v2405, 110
      %v2476 = vpop.permute.xlu0 %2475
      %2477 = vrot.lane.b32.xlu0 %v2406, 110
      %v2478 = vpop.permute.xlu0 %2477
      %2479 = vrot.lane.b32.xlu0 0.0, 110
      %v2480 = vpop.permute.xlu0 %2479
      %vm2481 = vcmask 900096
      %v2482 = vsel %vm2481, %v2476, %v2478
      %v2483 = vsel %vm2481, %v2478, %v2480
      %v2486 = vmax.f32 %v2473, %v2482
      %v2487 = vmax.f32 %v2474, %v2483
      %2488 = vrot.lane.b32.xlu0 %v2405, 109
      %v2489 = vpop.permute.xlu0 %2488
      %2490 = vrot.lane.b32.xlu0 %v2406, 109
      %v2491 = vpop.permute.xlu0 %2490
      %2492 = vrot.lane.b32.xlu0 0.0, 109
      %v2493 = vpop.permute.xlu0 %2492
      %vm2494 = vcmask 891904
      %v2495 = vsel %vm2494, %v2489, %v2491
      %v2496 = vsel %vm2494, %v2491, %v2493
      %v2499 = vmax.f32 %v2486, %v2495
      %v2500 = vmax.f32 %v2487, %v2496
      %2501 = vrot.lane.b32.xlu0 %v2405, 96
      %v2502 = vpop.permute.xlu0 %2501
      %2503 = vrot.lane.b32.xlu0 %v2406, 96
      %v2504 = vpop.permute.xlu0 %2503
      %2505 = vrot.lane.b32.xlu0 0.0, 96
      %v2506 = vpop.permute.xlu0 %2505
      %vm2507 = vcmask 785408
      %v2508 = vsel %vm2507, %v2502, %v2504
      %v2509 = vsel %vm2507, %v2504, %v2506
      %v2512 = vmax.f32 %v2499, %v2508
      %v2513 = vmax.f32 %v2500, %v2509
      %2514 = vrot.lane.b32.xlu0 %v2405, 95
      %v2515 = vpop.permute.xlu0 %2514
      %2516 = vrot.lane.b32.xlu0 %v2406, 95
      %v2517 = vpop.permute.xlu0 %2516
      %2518 = vrot.lane.b32.xlu0 0.0, 95
      %v2519 = vpop.permute.xlu0 %2518
      %vm2520 = vcmask 777216
      %v2521 = vsel %vm2520, %v2515, %v2517
      %v2522 = vsel %vm2520, %v2517, %v2519
      %v2525 = vmax.f32 %v2512, %v2521
      %v2526 = vmax.f32 %v2513, %v2522
      %2527 = vrot.lane.b32.xlu0 %v2405, 94
      %v2528 = vpop.permute.xlu0 %2527
      %2529 = vrot.lane.b32.xlu0 %v2406, 94
      %v2530 = vpop.permute.xlu0 %2529
      %2531 = vrot.lane.b32.xlu0 0.0, 94
      %v2532 = vpop.permute.xlu0 %2531
      %vm2533 = vcmask 769024
      %v2534 = vsel %vm2533, %v2528, %v2530
      %v2535 = vsel %vm2533, %v2530, %v2532
      %v2538 = vmax.f32 %v2525, %v2534
      %v2539 = vmax.f32 %v2526, %v2535
      %2540 = vrot.lane.b32.xlu0 %v2405, 93
      %v2541 = vpop.permute.xlu0 %2540
      %2542 = vrot.lane.b32.xlu0 %v2406, 93
      %v2543 = vpop.permute.xlu0 %2542
      %2544 = vrot.lane.b32.xlu0 0.0, 93
      %v2545 = vpop.permute.xlu0 %2544
      %vm2546 = vcmask 760832
      %v2547 = vsel %vm2546, %v2541, %v2543
      %v2548 = vsel %vm2546, %v2543, %v2545
      %v2551 = vmax.f32 %v2538, %v2547
      %v2552 = vmax.f32 %v2539, %v2548
      %2553 = vrot.lane.b32.xlu0 %v2405, 80
      %v2554 = vpop.permute.xlu0 %2553
      %2555 = vrot.lane.b32.xlu0 %v2406, 80
      %v2556 = vpop.permute.xlu0 %2555
      %2557 = vrot.lane.b32.xlu0 0.0, 80
      %v2558 = vpop.permute.xlu0 %2557
      %vm2559 = vcmask 654336
      %v2560 = vsel %vm2559, %v2554, %v2556
      %v2561 = vsel %vm2559, %v2556, %v2558
      %v2564 = vmax.f32 %v2551, %v2560
      %v2565 = vmax.f32 %v2552, %v2561
      %2566 = vrot.lane.b32.xlu0 %v2405, 79
      %v2567 = vpop.permute.xlu0 %2566
      %2568 = vrot.lane.b32.xlu0 %v2406, 79
      %v2569 = vpop.permute.xlu0 %2568
      %2570 = vrot.lane.b32.xlu0 0.0, 79
      %v2571 = vpop.permute.xlu0 %2570
      %vm2572 = vcmask 646144
      %v2573 = vsel %vm2572, %v2567, %v2569
      %v2574 = vsel %vm2572, %v2569, %v2571
      %v2577 = vmax.f32 %v2564, %v2573
      %v2578 = vmax.f32 %v2565, %v2574
      %2579 = vrot.lane.b32.xlu0 %v2405, 78
      %v2580 = vpop.permute.xlu0 %2579
      %2581 = vrot.lane.b32.xlu0 %v2406, 78
      %v2582 = vpop.permute.xlu0 %2581
      %2583 = vrot.lane.b32.xlu0 0.0, 78
      %v2584 = vpop.permute.xlu0 %2583
      %vm2585 = vcmask 637952
      %v2586 = vsel %vm2585, %v2580, %v2582
      %v2587 = vsel %vm2585, %v2582, %v2584
      %v2590 = vmax.f32 %v2577, %v2586
      %v2591 = vmax.f32 %v2578, %v2587
      %2592 = vrot.lane.b32.xlu0 %v2405, 77
      %v2593 = vpop.permute.xlu0 %2592
      %2594 = vrot.lane.b32.xlu0 %v2406, 77
      %v2595 = vpop.permute.xlu0 %2594
      %2596 = vrot.lane.b32.xlu0 0.0, 77
      %v2597 = vpop.permute.xlu0 %2596
      %vm2598 = vcmask 629760
      %v2599 = vsel %vm2598, %v2593, %v2595
      %v2600 = vsel %vm2598, %v2595, %v2597
      %v2603 = vmax.f32 %v2590, %v2599
      %v2604 = vmax.f32 %v2591, %v2600
      %2606 = vrot.lane.b32.xlu0 %v2603, 125
      %v2607 = vpop.permute.xlu0 %2606
      %2609 = vrot.lane.b32.xlu0 %v2603, 122
      %v2610 = vpop.permute.xlu0 %2609
      %2612 = vrot.lane.b32.xlu0 %v2603, 119
      %v2613 = vpop.permute.xlu0 %2612
      %2615 = vrot.lane.b32.xlu0 %v2603, 68
      %v2616 = vpop.permute.xlu0 %2615
      %2618 = vrot.lane.b32.xlu0 %v2603, 65
      %v2619 = vpop.permute.xlu0 %2618
      %2621 = vrot.lane.b32.xlu0 %v2603, 62
      %v2622 = vpop.permute.xlu0 %2621
      %2624 = vrot.lane.b32.xlu0 %v2603, 59
      %v2625 = vpop.permute.xlu0 %2624
      %2628 = vrot.lane.b32.xlu0 %v2604, 8
      %v2629 = vpop.permute.xlu0 %2628
      %2631 = vrot.lane.b32.xlu0 %v2604, 5
      %v2632 = vpop.permute.xlu0 %2631
      %2634 = vrot.lane.b32.xlu0 %v2604, 2
      %v2635 = vpop.permute.xlu0 %2634
      %2637 = vrot.lane.b32.xlu0 %v2604, 127
      %v2638 = vpop.permute.xlu0 %2637
      %2640 = vrot.lane.b32.xlu0 %v2604, 76
      %v2641 = vpop.permute.xlu0 %2640
      %2643 = vrot.lane.b32.xlu0 %v2604, 73
      %v2644 = vpop.permute.xlu0 %2643
      %2646 = vrot.lane.b32.xlu0 %v2604, 70
      %v2647 = vpop.permute.xlu0 %2646
      %2649 = vrot.lane.b32.xlu0 %v2604, 67
      %v2650 = vpop.permute.xlu0 %2649
      %vm2652 = vcmask 7168
      %v2653 = vsel %vm2652, %v2603, %v2607
      %vm2654 = vcmask 15360
      %v2655 = vsel %vm2654, %v2653, %v2610
      %vm2656 = vcmask 23552
      %v2657 = vsel %vm2656, %v2655, %v2613
      %vm2658 = vcmask 31744
      %v2659 = vsel %vm2658, %v2657, %v2616
      %vm2660 = vcmask 39936
      %v2661 = vsel %vm2660, %v2659, %v2619
      %vm2662 = vcmask 48128
      %v2663 = vsel %vm2662, %v2661, %v2622
      %vm2664 = vcmask 56320
      %v2665 = vsel %vm2664, %v2663, %v2625
      %vm2666 = vcmask 64512
      %v2667 = vsel %vm2666, %v2665, %v2629
      %vm2668 = vcmask 72704
      %v2669 = vsel %vm2668, %v2667, %v2632
      %vm2670 = vcmask 80896
      %v2671 = vsel %vm2670, %v2669, %v2635
      %vm2672 = vcmask 89088
      %v2673 = vsel %vm2672, %v2671, %v2638
      %vm2674 = vcmask 97280
      %v2675 = vsel %vm2674, %v2673, %v2641
      %vm2676 = vcmask 105472
      %v2677 = vsel %vm2676, %v2675, %v2644
      %vm2678 = vcmask 113664
      %v2679 = vsel %vm2678, %v2677, %v2647
      %vm2680 = vcmask 121856
      %v2681 = vsel %vm2680, %v2679, %v2650
      %vm2682 = vcmask 126976
      %v2683 = vsel %vm2682, %v2681, 0.0
      %2684 = vadd.xlane.f32.xlu0 %v2683
      %v2685 = vpop.xlane.xlu0 %2684
      %v2686 = vrot.slane %v2685, 4
      %v2687 = vadd.f32 %v2685, %v2686
      %v2688 = vrot.slane %v2687, 2
      %v2689 = vadd.f32 %v2687, %v2688
      %v2690 = vrot.slane %v2689, 1
      %v2691 = vadd.f32 %v2689, %v2690
      %s2692 = vtos %v2691
      %v2693 = vstv %s2692
      %v2694 = vrcp.pop 80.0
      %v2695 = vmul.f32 80.0, %v2694
      %v2696 = vsub.f32 1.0, %v2695
      %v2697 = vmul.f32 %v2694, %v2696
      %v2698 = vadd.f32 %v2694, %v2697
      %vm2699 = vweird.f32 %v2694
      %v2700 = vsel %vm2699, %v2694, %v2698
      %v2701 = vmul.f32 %v2693, %v2700
      %v2702 = vsub.f32 %v2681, %v2701
      %v2703 = vmul.f32 %v2702, %v2702
      %v2704 = vsel %vm2682, %v2703, 0.0
      %2705 = vadd.xlane.f32.xlu0 %v2704
      %v2706 = vpop.xlane.xlu0 %2705
      %v2707 = vrot.slane %v2706, 4
      %v2708 = vadd.f32 %v2706, %v2707
      %v2709 = vrot.slane %v2708, 2
      %v2710 = vadd.f32 %v2708, %v2709
      %v2711 = vrot.slane %v2710, 1
      %v2712 = vadd.f32 %v2710, %v2711
      %s2713 = vtos %v2712
      %v2714 = vstv %s2713
      %v2715 = vmul.f32 %v2714, %v2700
      %v2716 = vadd.f32 %v2715, 1e-05
      %v2717 = vrsqrt.pop %v2716
      %v2718 = vmul.f32 %v2717, %v2716
      %v2719 = vmul.f32 %v2718, %v2717
      %v2720 = vmul.f32 0.5, %v2719
      %v2721 = vsub.f32 1.5, %v2720
      %v2722 = vmul.f32 %v2717, %v2721
      %vm2723 = vweird.f32 %v2716
      %vm2724 = vweird.f32 %v2717
      %vm2725 = vmor %vm2723, %vm2724
      %v2726 = vsel %vm2725, %v2717, %v2722
      %v2727 = vmul.f32 %v2702, %v2726
      %v2728 = vld [vmem:[%s3] sm:$0x1f]
      %v2729 = vmul.f32 %v2727, %v2728
      %v2730 = vld [vmem:[%s4] sm:$0x1f]
      %v2731 = vadd.f32 %v2729, %v2730
      %v2732 = vsel %vm342, %v2731, 0.0
      %v2733 = vld [vmem:[%s5] sm:$0xff]
      %v2734 = vld [vmem:[%s6] sm:$0xff]
      %v2735 = vpack.c.bf16 %v2732, %v2732
      %v2737 = vunpack.c.l.b16 %v2735
      %v2738 = vpack.c.b16 %v2737, %v2737
      %2739 = vrot.lane.b32.xlu0 %v2738, 10
      %v2740 = vpop.permute.xlu0 %2739
      %v2742 = vsel %vm2670, 0, %v2740
      %vm2743 = vcmask 211968
      %v2744 = vsel %vm2743, %v2742, 0
      %v2746 = vand.u32 %v530, 3
      %v2747 = vadd.s32 %v2746, 4294967294
      %vm2748 = vcmp.ge.s32.totalorder %v2747, 0
      %vm2749 = vcmp.lt.s32.totalorder %v2747, 4
      %vm2750 = vmand %vm2748, %vm2749
      %v2751 = vsel %vm2750, 1, 0
      %vm2752 = vcmp.eq.s32.totalorder %v2751, 1
      %vm2753 = vmpackc.low %vm2752, %vm2752
      %v2754 = vsel %vm2753, %v2744, 0
      %v2755 = vadd.s32 %v2746, 4294967295
      %vm2756 = vcmp.ge.s32.totalorder %v2755, 0
      %vm2757 = vcmp.lt.s32.totalorder %v2755, 4
      %vm2758 = vmand %vm2756, %vm2757
      %v2759 = vsel %vm2758, 1, 0
      %vm2760 = vcmp.eq.s32.totalorder %v2759, 1
      %vm2761 = vmpackc.low %vm2760, %vm2760
      %v2762 = vsel %vm2761, 65537, 0
      %v2763 = vperm.slane %v2762, 0
      %2764 = vrot.lane.b32.xlu0 %v2763, 1
      %v2765 = vpop.permute.xlu0 %2764
      %v2766 = vunpack.c.l.b16 %v2765
      %v2767 = vunpack.c.h.b16 %v2765
      %v2768 = vunpack.c.l.b16 0
      %v2769 = vunpack.c.h.b16 0
      %vm2770 = vcmp.ne.s32.totalorder %v2766, %v2768
      %vm2771 = vcmp.ne.s32.totalorder %v2767, %v2769
      %vm2772 = vmpackc.low %vm2771, %vm2770
      %v2773 = vsel %vm2772, %v2744, 0
      %vm2774 = vcmp.ge.s32.totalorder %v2746, 0
      %vm2775 = vcmp.lt.s32.totalorder %v2746, 4
      %vm2776 = vmand %vm2774, %vm2775
      %v2777 = vsel %vm2776, 1, 0
      %vm2778 = vcmp.eq.s32.totalorder %v2777, 1
      %vm2779 = vmpackc.low %vm2778, %vm2778
      %v2780 = vsel %vm2779, 65537, 0
      %v2781 = vperm.slane %v2780, 0
      %2782 = vrot.lane.b32.xlu0 %v2781, 2
      %v2783 = vpop.permute.xlu0 %2782
      %v2784 = vunpack.c.l.b16 %v2783
      %v2785 = vunpack.c.h.b16 %v2783
      %v2786 = vunpack.c.l.b16 0
      %v2787 = vunpack.c.h.b16 0
      %vm2788 = vcmp.ne.s32.totalorder %v2784, %v2786
      %vm2789 = vcmp.ne.s32.totalorder %v2785, %v2787
      %vm2790 = vmpackc.low %vm2789, %vm2788
      %v2791 = vsel %vm2790, %v2744, 0
      %v2792 = vadd.s32 %v2746, 1
      %vm2793 = vcmp.ge.s32.totalorder %v2792, 0
      %vm2794 = vcmp.lt.s32.totalorder %v2792, 4
      %vm2795 = vmand %vm2793, %vm2794
      %v2796 = vsel %vm2795, 1, 0
      %vm2797 = vcmp.eq.s32.totalorder %v2796, 1
      %vm2798 = vmpackc.low %vm2797, %vm2797
      %v2799 = vsel %vm2798, 65537, 0
      %v2800 = vperm.slane %v2799, 0
      %2801 = vrot.lane.b32.xlu0 %v2800, 3
      %v2802 = vpop.permute.xlu0 %2801
      %v2803 = vunpack.c.l.b16 %v2802
      %v2804 = vunpack.c.h.b16 %v2802
      %v2805 = vunpack.c.l.b16 0
      %v2806 = vunpack.c.h.b16 0
      %vm2807 = vcmp.ne.s32.totalorder %v2803, %v2805
      %vm2808 = vcmp.ne.s32.totalorder %v2804, %v2806
      %vm2809 = vmpackc.low %vm2808, %vm2807
      %v2810 = vsel %vm2809, %v2744, 0
      %v2811 = vadd.s32 %v2746, 2
      %vm2812 = vcmp.ge.s32.totalorder %v2811, 0
      %vm2813 = vcmp.lt.s32.totalorder %v2811, 4
      %vm2814 = vmand %vm2812, %vm2813
      %v2815 = vsel %vm2814, 1, 0
      %vm2816 = vcmp.eq.s32.totalorder %v2815, 1
      %vm2817 = vmpackc.low %vm2816, %vm2816
      %v2818 = vsel %vm2817, 65537, 0
      %v2819 = vperm.slane %v2818, 0
      %2820 = vrot.lane.b32.xlu0 %v2819, 4
      %v2821 = vpop.permute.xlu0 %2820
      %v2822 = vunpack.c.l.b16 %v2821
      %v2823 = vunpack.c.h.b16 %v2821
      %v2824 = vunpack.c.l.b16 0
      %v2825 = vunpack.c.h.b16 0
      %vm2826 = vcmp.ne.s32.totalorder %v2822, %v2824
      %vm2827 = vcmp.ne.s32.totalorder %v2823, %v2825
      %vm2828 = vmpackc.low %vm2827, %vm2826
      %v2829 = vsel %vm2828, %v2744, 0
      %v2830 = vsel %vm2753, 65537, 0
      %v2831 = vperm.slane %v2830, 0
      %2832 = vrot.lane.b32.xlu0 %v2831, 4
      %v2833 = vpop.permute.xlu0 %2832
      %v2834 = vunpack.c.l.b16 %v2833
      %v2835 = vunpack.c.h.b16 %v2833
      %v2836 = vunpack.c.l.b16 0
      %v2837 = vunpack.c.h.b16 0
      %vm2838 = vcmp.ne.s32.totalorder %v2834, %v2836
      %vm2839 = vcmp.ne.s32.totalorder %v2835, %v2837
      %vm2840 = vmpackc.low %vm2839, %vm2838
      %v2841 = vsel %vm2840, %v2744, 0
      %2842 = vrot.lane.b32.xlu0 %v2763, 5
      %v2843 = vpop.permute.xlu0 %2842
      %v2844 = vunpack.c.l.b16 %v2843
      %v2845 = vunpack.c.h.b16 %v2843
      %v2846 = vunpack.c.l.b16 0
      %v2847 = vunpack.c.h.b16 0
      %vm2848 = vcmp.ne.s32.totalorder %v2844, %v2846
      %vm2849 = vcmp.ne.s32.totalorder %v2845, %v2847
      %vm2850 = vmpackc.low %vm2849, %vm2848
      %v2851 = vsel %vm2850, %v2744, 0
      %2852 = vrot.lane.b32.xlu0 %v2781, 6
      %v2853 = vpop.permute.xlu0 %2852
      %v2854 = vunpack.c.l.b16 %v2853
      %v2855 = vunpack.c.h.b16 %v2853
      %v2856 = vunpack.c.l.b16 0
      %v2857 = vunpack.c.h.b16 0
      %vm2858 = vcmp.ne.s32.totalorder %v2854, %v2856
      %vm2859 = vcmp.ne.s32.totalorder %v2855, %v2857
      %vm2860 = vmpackc.low %vm2859, %vm2858
      %v2861 = vsel %vm2860, %v2744, 0
      %2862 = vrot.lane.b32.xlu0 %v2800, 7
      %v2863 = vpop.permute.xlu0 %2862
      %v2864 = vunpack.c.l.b16 %v2863
      %v2865 = vunpack.c.h.b16 %v2863
      %v2866 = vunpack.c.l.b16 0
      %v2867 = vunpack.c.h.b16 0
      %vm2868 = vcmp.ne.s32.totalorder %v2864, %v2866
      %vm2869 = vcmp.ne.s32.totalorder %v2865, %v2867
      %vm2870 = vmpackc.low %vm2869, %vm2868
      %v2871 = vsel %vm2870, %v2744, 0
      %2872 = vrot.lane.b32.xlu0 %v2819, 8
      %v2873 = vpop.permute.xlu0 %2872
      %v2874 = vunpack.c.l.b16 %v2873
      %v2875 = vunpack.c.h.b16 %v2873
      %v2876 = vunpack.c.l.b16 0
      %v2877 = vunpack.c.h.b16 0
      %vm2878 = vcmp.ne.s32.totalorder %v2874, %v2876
      %vm2879 = vcmp.ne.s32.totalorder %v2875, %v2877
      %vm2880 = vmpackc.low %vm2879, %vm2878
      %v2881 = vsel %vm2880, %v2744, 0
      %2882 = vrot.lane.b32.xlu0 %v2831, 8
      %v2883 = vpop.permute.xlu0 %2882
      %v2884 = vunpack.c.l.b16 %v2883
      %v2885 = vunpack.c.h.b16 %v2883
      %v2886 = vunpack.c.l.b16 0
      %v2887 = vunpack.c.h.b16 0
      %vm2888 = vcmp.ne.s32.totalorder %v2884, %v2886
      %vm2889 = vcmp.ne.s32.totalorder %v2885, %v2887
      %vm2890 = vmpackc.low %vm2889, %vm2888
      %v2891 = vsel %vm2890, %v2744, 0
      %2892 = vrot.lane.b32.xlu0 %v2763, 9
      %v2893 = vpop.permute.xlu0 %2892
      %v2894 = vunpack.c.l.b16 %v2893
      %v2895 = vunpack.c.h.b16 %v2893
      %v2896 = vunpack.c.l.b16 0
      %v2897 = vunpack.c.h.b16 0
      %vm2898 = vcmp.ne.s32.totalorder %v2894, %v2896
      %vm2899 = vcmp.ne.s32.totalorder %v2895, %v2897
      %vm2900 = vmpackc.low %vm2899, %vm2898
      %v2901 = vsel %vm2900, %v2744, 0
      %2902 = vrot.lane.b32.xlu0 %v2781, 10
      %v2903 = vpop.permute.xlu0 %2902
      %v2904 = vunpack.c.l.b16 %v2903
      %v2905 = vunpack.c.h.b16 %v2903
      %v2906 = vunpack.c.l.b16 0
      %v2907 = vunpack.c.h.b16 0
      %vm2908 = vcmp.ne.s32.totalorder %v2904, %v2906
      %vm2909 = vcmp.ne.s32.totalorder %v2905, %v2907
      %vm2910 = vmpackc.low %vm2909, %vm2908
      %v2911 = vsel %vm2910, %v2744, 0
      %2912 = vrot.lane.b32.xlu0 %v2800, 11
      %v2913 = vpop.permute.xlu0 %2912
      %v2914 = vunpack.c.l.b16 %v2913
      %v2915 = vunpack.c.h.b16 %v2913
      %v2916 = vunpack.c.l.b16 0
      %v2917 = vunpack.c.h.b16 0
      %vm2918 = vcmp.ne.s32.totalorder %v2914, %v2916
      %vm2919 = vcmp.ne.s32.totalorder %v2915, %v2917
      %vm2920 = vmpackc.low %vm2919, %vm2918
      %v2921 = vsel %vm2920, %v2744, 0
      %2922 = vrot.lane.b32.xlu0 %v2819, 12
      %v2923 = vpop.permute.xlu0 %2922
      %v2924 = vunpack.c.l.b16 %v2923
      %v2925 = vunpack.c.h.b16 %v2923
      %v2926 = vunpack.c.l.b16 0
      %v2927 = vunpack.c.h.b16 0
      %vm2928 = vcmp.ne.s32.totalorder %v2924, %v2926
      %vm2929 = vcmp.ne.s32.totalorder %v2925, %v2927
      %vm2930 = vmpackc.low %vm2929, %vm2928
      %v2931 = vsel %vm2930, %v2744, 0
      %2932 = vrot.lane.b32.xlu0 %v2831, 12
      %v2933 = vpop.permute.xlu0 %2932
      %v2934 = vunpack.c.l.b16 %v2933
      %v2935 = vunpack.c.h.b16 %v2933
      %v2936 = vunpack.c.l.b16 0
      %v2937 = vunpack.c.h.b16 0
      %vm2938 = vcmp.ne.s32.totalorder %v2934, %v2936
      %vm2939 = vcmp.ne.s32.totalorder %v2935, %v2937
      %vm2940 = vmpackc.low %vm2939, %vm2938
      %v2941 = vsel %vm2940, %v2744, 0
      %2942 = vrot.lane.b32.xlu0 %v2763, 13
      %v2943 = vpop.permute.xlu0 %2942
      %v2944 = vunpack.c.l.b16 %v2943
      %v2945 = vunpack.c.h.b16 %v2943
      %v2946 = vunpack.c.l.b16 0
      %v2947 = vunpack.c.h.b16 0
      %vm2948 = vcmp.ne.s32.totalorder %v2944, %v2946
      %vm2949 = vcmp.ne.s32.totalorder %v2945, %v2947
      %vm2950 = vmpackc.low %vm2949, %vm2948
      %v2951 = vsel %vm2950, %v2744, 0
      %2952 = vrot.lane.b32.xlu0 %v2781, 14
      %v2953 = vpop.permute.xlu0 %2952
      %v2954 = vunpack.c.l.b16 %v2953
      %v2955 = vunpack.c.h.b16 %v2953
      %v2956 = vunpack.c.l.b16 0
      %v2957 = vunpack.c.h.b16 0
      %vm2958 = vcmp.ne.s32.totalorder %v2954, %v2956
      %vm2959 = vcmp.ne.s32.totalorder %v2955, %v2957
      %vm2960 = vmpackc.low %vm2959, %vm2958
      %v2961 = vsel %vm2960, %v2744, 0
      %2962 = vrot.lane.b32.xlu0 %v2800, 15
      %v2963 = vpop.permute.xlu0 %2962
      %v2964 = vunpack.c.l.b16 %v2963
      %v2965 = vunpack.c.h.b16 %v2963
      %v2966 = vunpack.c.l.b16 0
      %v2967 = vunpack.c.h.b16 0
      %vm2968 = vcmp.ne.s32.totalorder %v2964, %v2966
      %vm2969 = vcmp.ne.s32.totalorder %v2965, %v2967
      %vm2970 = vmpackc.low %vm2969, %vm2968
      %v2971 = vsel %vm2970, %v2744, 0
      %2972 = vrot.lane.b32.xlu0 %v2819, 16
      %v2973 = vpop.permute.xlu0 %2972
      %v2974 = vunpack.c.l.b16 %v2973
      %v2975 = vunpack.c.h.b16 %v2973
      %v2976 = vunpack.c.l.b16 0
      %v2977 = vunpack.c.h.b16 0
      %vm2978 = vcmp.ne.s32.totalorder %v2974, %v2976
      %vm2979 = vcmp.ne.s32.totalorder %v2975, %v2977
      %vm2980 = vmpackc.low %vm2979, %vm2978
      %v2981 = vsel %vm2980, %v2744, 0
      %2982 = vrot.lane.b32.xlu0 %v2831, 16
      %v2983 = vpop.permute.xlu0 %2982
      %v2984 = vunpack.c.l.b16 %v2983
      %v2985 = vunpack.c.h.b16 %v2983
      %v2986 = vunpack.c.l.b16 0
      %v2987 = vunpack.c.h.b16 0
      %vm2988 = vcmp.ne.s32.totalorder %v2984, %v2986
      %vm2989 = vcmp.ne.s32.totalorder %v2985, %v2987
      %vm2990 = vmpackc.low %vm2989, %vm2988
      %v2991 = vsel %vm2990, %v2744, 0
      %2992 = vrot.lane.b32.xlu0 %v2763, 17
      %v2993 = vpop.permute.xlu0 %2992
      %v2994 = vunpack.c.l.b16 %v2993
      %v2995 = vunpack.c.h.b16 %v2993
      %v2996 = vunpack.c.l.b16 0
      %v2997 = vunpack.c.h.b16 0
      %vm2998 = vcmp.ne.s32.totalorder %v2994, %v2996
      %vm2999 = vcmp.ne.s32.totalorder %v2995, %v2997
      %vm3000 = vmpackc.low %vm2999, %vm2998
      %v3001 = vsel %vm3000, %v2744, 0
      %3002 = vrot.lane.b32.xlu0 %v2781, 18
      %v3003 = vpop.permute.xlu0 %3002
      %v3004 = vunpack.c.l.b16 %v3003
      %v3005 = vunpack.c.h.b16 %v3003
      %v3006 = vunpack.c.l.b16 0
      %v3007 = vunpack.c.h.b16 0
      %vm3008 = vcmp.ne.s32.totalorder %v3004, %v3006
      %vm3009 = vcmp.ne.s32.totalorder %v3005, %v3007
      %vm3010 = vmpackc.low %vm3009, %vm3008
      %v3011 = vsel %vm3010, %v2744, 0
      %3012 = vrot.lane.b32.xlu0 %v2800, 19
      %v3013 = vpop.permute.xlu0 %3012
      %v3014 = vunpack.c.l.b16 %v3013
      %v3015 = vunpack.c.h.b16 %v3013
      %v3016 = vunpack.c.l.b16 0
      %v3017 = vunpack.c.h.b16 0
      %vm3018 = vcmp.ne.s32.totalorder %v3014, %v3016
      %vm3019 = vcmp.ne.s32.totalorder %v3015, %v3017
      %vm3020 = vmpackc.low %vm3019, %vm3018
      %v3021 = vsel %vm3020, %v2744, 0
      %3022 = vrot.lane.b32.xlu0 %v2819, 20
      %v3023 = vpop.permute.xlu0 %3022
      %v3024 = vunpack.c.l.b16 %v3023
      %v3025 = vunpack.c.h.b16 %v3023
      %v3026 = vunpack.c.l.b16 0
      %v3027 = vunpack.c.h.b16 0
      %vm3028 = vcmp.ne.s32.totalorder %v3024, %v3026
      %vm3029 = vcmp.ne.s32.totalorder %v3025, %v3027
      %vm3030 = vmpackc.low %vm3029, %vm3028
      %v3031 = vsel %vm3030, %v2744, 0
      %v3033 = vrot.slane %v2773, 4
      %3034 = vrot.lane.b32.xlu0 %v3033, 127
      %v3035 = vpop.permute.xlu0 %3034
      %3037 = vrot.lane.b32.xlu0 %v2791, 126
      %v3038 = vpop.permute.xlu0 %3037
      %v3040 = vrot.slane %v2810, 4
      %3041 = vrot.lane.b32.xlu0 %v3040, 125
      %v3042 = vpop.permute.xlu0 %3041
      %3044 = vrot.lane.b32.xlu0 %v2829, 124
      %v3045 = vpop.permute.xlu0 %3044
      %v3047 = vrot.slane %v2841, 4
      %3048 = vrot.lane.b32.xlu0 %v3047, 124
      %v3049 = vpop.permute.xlu0 %3048
      %3051 = vrot.lane.b32.xlu0 %v2851, 123
      %v3052 = vpop.permute.xlu0 %3051
      %v3054 = vrot.slane %v2861, 4
      %3055 = vrot.lane.b32.xlu0 %v3054, 122
      %v3056 = vpop.permute.xlu0 %3055
      %3058 = vrot.lane.b32.xlu0 %v2871, 121
      %v3059 = vpop.permute.xlu0 %3058
      %v3061 = vrot.slane %v2881, 4
      %3062 = vrot.lane.b32.xlu0 %v3061, 120
      %v3063 = vpop.permute.xlu0 %3062
      %3065 = vrot.lane.b32.xlu0 %v2891, 120
      %v3066 = vpop.permute.xlu0 %3065
      %v3068 = vrot.slane %v2901, 4
      %3069 = vrot.lane.b32.xlu0 %v3068, 119
      %v3070 = vpop.permute.xlu0 %3069
      %3072 = vrot.lane.b32.xlu0 %v2911, 118
      %v3073 = vpop.permute.xlu0 %3072
      %v3075 = vrot.slane %v2921, 4
      %3076 = vrot.lane.b32.xlu0 %v3075, 117
      %v3077 = vpop.permute.xlu0 %3076
      %3079 = vrot.lane.b32.xlu0 %v2931, 116
      %v3080 = vpop.permute.xlu0 %3079
      %v3082 = vrot.slane %v2941, 4
      %3083 = vrot.lane.b32.xlu0 %v3082, 116
      %v3084 = vpop.permute.xlu0 %3083
      %vm3085 = vcmask 1043456
      %v3088 = vsel %vm3085, %v2754, %v3035
      %v3092 = vsel %vm3085, %v3038, %v3042
      %v3096 = vsel %vm3085, %v3045, %v3049
      %v3100 = vsel %vm3085, %v3052, %v3056
      %v3104 = vsel %vm3085, %v3059, %v3063
      %v3108 = vsel %vm3085, %v3066, %v3070
      %v3112 = vsel %vm3085, %v3073, %v3077
      %v3116 = vsel %vm3085, %v3080, %v3084
      %v3119 = vrot.slane %v2961, 4
      %3120 = vrot.lane.b32.xlu0 %v3119, 127
      %v3121 = vpop.permute.xlu0 %3120
      %3123 = vrot.lane.b32.xlu0 %v2971, 126
      %v3124 = vpop.permute.xlu0 %3123
      %v3126 = vrot.slane %v2981, 4
      %3127 = vrot.lane.b32.xlu0 %v3126, 125
      %v3128 = vpop.permute.xlu0 %3127
      %3130 = vrot.lane.b32.xlu0 %v2991, 125
      %v3131 = vpop.permute.xlu0 %3130
      %v3133 = vrot.slane %v3001, 4
      %3134 = vrot.lane.b32.xlu0 %v3133, 124
      %v3135 = vpop.permute.xlu0 %3134
      %3137 = vrot.lane.b32.xlu0 %v3011, 123
      %v3138 = vpop.permute.xlu0 %3137
      %v3140 = vrot.slane %v3021, 4
      %3141 = vrot.lane.b32.xlu0 %v3140, 122
      %v3142 = vpop.permute.xlu0 %3141
      %3144 = vrot.lane.b32.xlu0 %v3031, 121
      %v3145 = vpop.permute.xlu0 %3144
      %v3148 = vsel %vm3085, %v2951, %v3121
      %v3151 = vsel %vm3085, %v3124, %v3128
      %v3154 = vsel %vm3085, %v3131, %v3135
      %v3157 = vsel %vm3085, %v3138, %v3142
      %3162 = vrot.lane.b32.xlu0 %v3148, 115
      %v3163 = vpop.permute.xlu0 %3162
      %3164 = vrot.lane.b32.xlu0 %v3151, 115
      %v3165 = vpop.permute.xlu0 %3164
      %3166 = vrot.lane.b32.xlu0 %v3154, 115
      %v3167 = vpop.permute.xlu0 %3166
      %3168 = vrot.lane.b32.xlu0 %v3157, 115
      %v3169 = vpop.permute.xlu0 %3168
      %3170 = vrot.lane.b32.xlu0 %v3145, 115
      %v3171 = vpop.permute.xlu0 %3170
      %3177 = vset.pattern.permute.xlu0 0
      %3178 = vperm.xlu0 %3177, %v2734
      %v3179 = vpop.permute.xlu0 %3178
      %v3182 = vunpack.c.l.b16 %v2733
      %v3183 = vunpack.c.h.b16 %v2733
      %v3184 = vpack.c.b16 %v3182, %v3182
      %v3185 = vpack.c.b16 %v3183, %v3183
      %vm3187 = vcmask 588800
      %v3189 = vsel %vm3187, %v3185, 0
      %v3192 = vsel %vm3085, %v3171, 0
      %3194 = vmatpush.bf16.msra.mxu0 %v3116
      %3195 = vmatpush.bf16.msra.mxu0 %v3112
      %3196 = vmatpush.bf16.msra.mxu0 %v3108
      %3197 = vmatpush.bf16.msra.mxu0 %v3104
      %3198 = vmatpush.bf16.msra.mxu0 %v3100
      %3199 = vmatpush.bf16.msra.mxu0 %v3096
      %3200 = vmatpush.bf16.msra.mxu0 %v3092
      %3201 = vmatpush.bf16.msra.mxu0 %v3088
      %3202 = vmatmul.bf16.gmra.mxu0 %v3184
      %v3203 = vpop.f32.mrf.mxu0
      %v3204 = vadd.f32 %v3179, %v3203
      %v3205 = vpop.f32.mrf.mxu0
      %3206 = vdwg.mxu0
      %3207 = vmatpush.bf16.msra.mxu0 0
      %3208 = vmatpush.bf16.msra.mxu0 0
      %3209 = vmatpush.bf16.msra.mxu0 0
      %3210 = vmatpush.bf16.msra.mxu0 %v3192
      %3211 = vmatpush.bf16.msra.mxu0 %v3169
      %3212 = vmatpush.bf16.msra.mxu0 %v3167
      %3213 = vmatpush.bf16.msra.mxu0 %v3165
      %3214 = vmatpush.bf16.msra.mxu0 %v3163
      %3215 = vmatmul.bf16.gmra.mxu0 %v3189
      %v3216 = vpop.f32.mrf.mxu0
      %v3217 = vadd.f32 %v3204, %v3216
      %v3218 = vpop.f32.mrf.mxu0
      %3219 = vdwg.mxu0
      %v3220 = vmax.f32 %v3217, 0.0
      %v3221 = vld [vmem:[%s7] sm:$0xff]
      %v3222 = vld [vmem:[%s8] sm:$0xff]
      %v3223 = vpack.c.bf16 %v3220, %v3220
      %v3225 = vunpack.c.l.b16 %v3223
      %v3226 = vpack.c.b16 %v3225, %v3225
      %3227 = vrot.lane.b32.xlu0 %v3226, 10
      %v3228 = vpop.permute.xlu0 %3227
      %v3230 = vsel %vm2670, 0, %v3228
      %v3231 = vsel %vm2743, %v3230, 0
      %v3233 = vsel %vm2753, %v3231, 0
      %v3234 = vsel %vm2772, %v3231, 0
      %v3235 = vsel %vm2790, %v3231, 0
      %v3236 = vsel %vm2809, %v3231, 0
      %v3237 = vsel %vm2828, %v3231, 0
      %v3238 = vsel %vm2840, %v3231, 0
      %v3239 = vsel %vm2850, %v3231, 0
      %v3240 = vsel %vm2860, %v3231, 0
      %v3241 = vsel %vm2870, %v3231, 0
      %v3242 = vsel %vm2880, %v3231, 0
      %v3243 = vsel %vm2890, %v3231, 0
      %v3244 = vsel %vm2900, %v3231, 0
      %v3245 = vsel %vm2910, %v3231, 0
      %v3246 = vsel %vm2920, %v3231, 0
      %v3247 = vsel %vm2930, %v3231, 0
      %v3248 = vsel %vm2940, %v3231, 0
      %v3249 = vsel %vm2950, %v3231, 0
      %v3250 = vsel %vm2960, %v3231, 0
      %v3251 = vsel %vm2970, %v3231, 0
      %v3252 = vsel %vm2980, %v3231, 0
      %v3253 = vsel %vm2990, %v3231, 0
      %v3254 = vsel %vm3000, %v3231, 0
      %v3255 = vsel %vm3010, %v3231, 0
      %v3256 = vsel %vm3020, %v3231, 0
      %v3257 = vsel %vm3030, %v3231, 0
      %v3259 = vrot.slane %v3234, 4
      %3260 = vrot.lane.b32.xlu0 %v3259, 127
      %v3261 = vpop.permute.xlu0 %3260
      %3263 = vrot.lane.b32.xlu0 %v3235, 126
      %v3264 = vpop.permute.xlu0 %3263
      %v3266 = vrot.slane %v3236, 4
      %3267 = vrot.lane.b32.xlu0 %v3266, 125
      %v3268 = vpop.permute.xlu0 %3267
      %3270 = vrot.lane.b32.xlu0 %v3237, 124
      %v3271 = vpop.permute.xlu0 %3270
      %v3273 = vrot.slane %v3238, 4
      %3274 = vrot.lane.b32.xlu0 %v3273, 124
      %v3275 = vpop.permute.xlu0 %3274
      %3277 = vrot.lane.b32.xlu0 %v3239, 123
      %v3278 = vpop.permute.xlu0 %3277
      %v3280 = vrot.slane %v3240, 4
      %3281 = vrot.lane.b32.xlu0 %v3280, 122
      %v3282 = vpop.permute.xlu0 %3281
      %3284 = vrot.lane.b32.xlu0 %v3241, 121
      %v3285 = vpop.permute.xlu0 %3284
      %v3287 = vrot.slane %v3242, 4
      %3288 = vrot.lane.b32.xlu0 %v3287, 120
      %v3289 = vpop.permute.xlu0 %3288
      %3291 = vrot.lane.b32.xlu0 %v3243, 120
      %v3292 = vpop.permute.xlu0 %3291
      %v3294 = vrot.slane %v3244, 4
      %3295 = vrot.lane.b32.xlu0 %v3294, 119
      %v3296 = vpop.permute.xlu0 %3295
      %3298 = vrot.lane.b32.xlu0 %v3245, 118
      %v3299 = vpop.permute.xlu0 %3298
      %v3301 = vrot.slane %v3246, 4
      %3302 = vrot.lane.b32.xlu0 %v3301, 117
      %v3303 = vpop.permute.xlu0 %3302
      %3305 = vrot.lane.b32.xlu0 %v3247, 116
      %v3306 = vpop.permute.xlu0 %3305
      %v3308 = vrot.slane %v3248, 4
      %3309 = vrot.lane.b32.xlu0 %v3308, 116
      %v3310 = vpop.permute.xlu0 %3309
      %v3313 = vsel %vm3085, %v3233, %v3261
      %v3317 = vsel %vm3085, %v3264, %v3268
      %v3321 = vsel %vm3085, %v3271, %v3275
      %v3325 = vsel %vm3085, %v3278, %v3282
      %v3329 = vsel %vm3085, %v3285, %v3289
      %v3333 = vsel %vm3085, %v3292, %v3296
      %v3337 = vsel %vm3085, %v3299, %v3303
      %v3341 = vsel %vm3085, %v3306, %v3310
      %v3344 = vrot.slane %v3250, 4
      %3345 = vrot.lane.b32.xlu0 %v3344, 127
      %v3346 = vpop.permute.xlu0 %3345
      %3348 = vrot.lane.b32.xlu0 %v3251, 126
      %v3349 = vpop.permute.xlu0 %3348
      %v3351 = vrot.slane %v3252, 4
      %3352 = vrot.lane.b32.xlu0 %v3351, 125
      %v3353 = vpop.permute.xlu0 %3352
      %3355 = vrot.lane.b32.xlu0 %v3253, 125
      %v3356 = vpop.permute.xlu0 %3355
      %v3358 = vrot.slane %v3254, 4
      %3359 = vrot.lane.b32.xlu0 %v3358, 124
      %v3360 = vpop.permute.xlu0 %3359
      %3362 = vrot.lane.b32.xlu0 %v3255, 123
      %v3363 = vpop.permute.xlu0 %3362
      %v3365 = vrot.slane %v3256, 4
      %3366 = vrot.lane.b32.xlu0 %v3365, 122
      %v3367 = vpop.permute.xlu0 %3366
      %3369 = vrot.lane.b32.xlu0 %v3257, 121
      %v3370 = vpop.permute.xlu0 %3369
      %v3373 = vsel %vm3085, %v3249, %v3346
      %v3376 = vsel %vm3085, %v3349, %v3353
      %v3379 = vsel %vm3085, %v3356, %v3360
      %v3382 = vsel %vm3085, %v3363, %v3367
      %3387 = vrot.lane.b32.xlu0 %v3373, 115
      %v3388 = vpop.permute.xlu0 %3387
      %3389 = vrot.lane.b32.xlu0 %v3376, 115
      %v3390 = vpop.permute.xlu0 %3389
      %3391 = vrot.lane.b32.xlu0 %v3379, 115
      %v3392 = vpop.permute.xlu0 %3391
      %3393 = vrot.lane.b32.xlu0 %v3382, 115
      %v3394 = vpop.permute.xlu0 %3393
      %3395 = vrot.lane.b32.xlu0 %v3370, 115
      %v3396 = vpop.permute.xlu0 %3395
      %3402 = vset.pattern.permute.xlu0 0
      %3403 = vperm.xlu0 %3402, %v3222
      %v3404 = vpop.permute.xlu0 %3403
      %v3407 = vunpack.c.l.b16 %v3221
      %v3408 = vunpack.c.h.b16 %v3221
      %v3409 = vpack.c.b16 %v3407, %v3407
      %v3410 = vpack.c.b16 %v3408, %v3408
      %v3413 = vsel %vm3187, %v3410, 0
      %v3416 = vsel %vm3085, %v3396, 0
      %3418 = vmatpush.bf16.msra.mxu0 %v3341
      %3419 = vmatpush.bf16.msra.mxu0 %v3337
      %3420 = vmatpush.bf16.msra.mxu0 %v3333
      %3421 = vmatpush.bf16.msra.mxu0 %v3329
      %3422 = vmatpush.bf16.msra.mxu0 %v3325
      %3423 = vmatpush.bf16.msra.mxu0 %v3321
      %3424 = vmatpush.bf16.msra.mxu0 %v3317
      %3425 = vmatpush.bf16.msra.mxu0 %v3313
      %3426 = vmatmul.bf16.gmra.mxu0 %v3409
      %v3427 = vpop.f32.mrf.mxu0
      %v3428 = vadd.f32 %v3404, %v3427
      %v3429 = vpop.f32.mrf.mxu0
      %3430 = vdwg.mxu0
      %3431 = vmatpush.bf16.msra.mxu0 0
      %3432 = vmatpush.bf16.msra.mxu0 0
      %3433 = vmatpush.bf16.msra.mxu0 0
      %3434 = vmatpush.bf16.msra.mxu0 %v3416
      %3435 = vmatpush.bf16.msra.mxu0 %v3394
      %3436 = vmatpush.bf16.msra.mxu0 %v3392
      %3437 = vmatpush.bf16.msra.mxu0 %v3390
      %3438 = vmatpush.bf16.msra.mxu0 %v3388
      %3439 = vmatmul.bf16.gmra.mxu0 %v3413
      %v3440 = vpop.f32.mrf.mxu0
      %v3441 = vadd.f32 %v3428, %v3440
      %v3442 = vpop.f32.mrf.mxu0
      %3443 = vdwg.mxu0
      %v3444 = vmax.f32 %v3441, 0.0
      %vm3445 = vcmask 130048
      %3446 = vst.msk [vmem:[%s330] sm:$0xff] %vm3445, %v3444
      %p3447 = scmp.lt.s32.totalorder %s20, 1
      %s3448 = scalar_select %p3447, %s20, 1
      %s3449 = smul.addr %s3448, 8
      %s3450 = scalar_lea.vmem %s9, %s3449
      // Predicated region
      $region57: #{lite_encoder_forward.1} parent=55 // pred_check
        %p3451 = pneg %p232
      $region58: #{lite_encoder_forward.1} parent=55 // pred_check_branch
        %3453 = sbr.rel (%p3451) target = $region60
      $region59: #{lite_encoder_forward.1} parent=55 // pred_region
        _
      $region60: #{lite_encoder_forward.1} parent=55 // pred_fallthru
        _
    $region56: #{lite_encoder_forward.1} parent=5 // pred_fallthru
      _
    %p3454 = scmp.le.s32.totalorder 2, %s15
    // Predicated region
    $region61: #{lite_encoder_forward.1} parent=5 // pred_check
      %p3455 = pneg %p3454
    $region62: #{lite_encoder_forward.1} parent=5 // pred_check_branch
      %3457 = sbr.rel (%p3455) target = $region64
    $region63: #{lite_encoder_forward.1} parent=5 // pred_region
      %s3458 = ssub.s32 %s15, 2
      // Predicated region
      $region65: #{lite_encoder_forward.1} parent=63 // pred_check
        %p3459 = pneg %p238
      $region66: #{lite_encoder_forward.1} parent=63 // pred_check_branch
        %3461 = sbr.rel (%p3459) target = $region68
      $region67: #{lite_encoder_forward.1} parent=63 // pred_region
        %p3462 = scmp.lt.s32.totalorder %s21, 1
        %s3463 = scalar_select %p3462, %s21, 1
        %s3464 = smul.addr %s3463, 8
        %s3465 = scalar_lea.vmem %s9, %s3464
      $region68: #{lite_encoder_forward.1} parent=63 // pred_fallthru
        _
    $region64: #{lite_encoder_forward.1} parent=5 // pred_fallthru
      _
  $region6: #{lite_encoder_forward.1} parent=0 // loop_footer
    %s19 = sadd.s32 1, %s15
  $region7: #{lite_encoder_forward.1} parent=0 // loop_footer_branch
    %14 = sbr.rel target = $region3
  $region8: #{lite_encoder_forward.1} parent=0 // loop_exit
    _

</llo_original>
